<compile_context>
chip_gen: v7x
topology: tpu7x:2x2x1
jax: 0.10.0
libtpu: 0.0.40
codegen_flags: <defaults>
</compile_context>

<pallas_src>
import functools

import jax
import jax.numpy as jnp
from jax.experimental import pallas as pl
from jax.experimental.pallas import tpu as pltpu

KERNEL_SIZE = 11
SIGMA = 1.5
K1 = 0.01
K2 = 0.03
DATA_RANGE = 1.0

_VMEM_BUDGET_BYTES = 24 * 1024 * 1024   # conservative per-step working set
_VMEM_LIMIT_BYTES = 48 * 1024 * 1024    # explicit scoped-VMEM limit (fits v7x)


def _gaussian_1d(kernel_size=KERNEL_SIZE, sigma=SIGMA):
    d = jnp.arange(kernel_size, dtype=jnp.float32) - (kernel_size - 1) / 2.0
    g = jnp.exp(-0.5 * jnp.square(d / sigma))
    return g / jnp.sum(g)


def _filter_matrix(size, kernel_size, g):
    """Toeplitz matrix (size - k + 1, size) so that (G @ x) == valid 1D corr."""
    out = size - kernel_size + 1
    rows = jnp.arange(out)[:, None]
    cols = jnp.arange(size)[None, :]
    idx = cols - rows
    valid = (idx >= 0) & (idx < kernel_size)
    return jnp.where(valid, g[jnp.clip(idx, 0, kernel_size - 1)], 0.0).astype(
        jnp.float32
    )


def _choose_batch_tile(b, h, w):
    """Largest divisor of b whose per-step working set fits the VMEM budget."""
    h_out = h - KERNEL_SIZE + 1
    w_out = w - KERNEL_SIZE + 1
    per_img = 4 * (
        4 * h * w            # x, y (double-buffered inputs)
        + 5 * h * w          # stacked [x, y, xx, yy, xy] slab
        + 5 * h_out * h      # broadcast Gh for the batched matmul
        + 5 * h_out * w      # H-filtered intermediate
        + 10 * h_out * w_out  # filtered quantities + SSIM-map temporaries
    )
    max_tb = max(1, _VMEM_BUDGET_BYTES // max(per_img, 1))
    tb = 1
    for d in range(1, b + 1):
        if b % d == 0 and d <= max_tb:
            tb = d
    return tb


def _mse_ssim_kernel(x_ref, y_ref, gh_ref, gwt_ref, out_ref, *, c1, c2):
    x = x_ref[...]                     # (TB, H, W) f32
    y = y_ref[...]
    tb, h, w = x.shape
    h_out = gh_ref.shape[0]
    w_out = gwt_ref.shape[1]

    # ---- partial MSE sum over this tile ----
    d = x - y
    mse_part = jnp.sum(d * d)

    # ---- SSIM: filter all five quantities in one pass ----
    s = jnp.concatenate([x, y, x * x, y * y, x * y], axis=0)     # (5*TB, H, W)

    # H-direction gaussian (VALID) as a single batched MXU matmul.
    gh_b = jnp.broadcast_to(gh_ref[...], (5 * tb, h_out, h))
    th = jnp.einsum("boh,bhw->bow", gh_b, s,
                    preferred_element_type=jnp.float32)          # (5*TB, H_out, W)

    # W-direction gaussian as ONE large 2-D MXU matmul (shared Gw^T, no broadcast).
    tw = jnp.dot(th.reshape(5 * tb * h_out, w), gwt_ref[...],
                 preferred_element_type=jnp.float32)             # (5*TB*H_out, W_out)

    f = tw.reshape(5, tb * h_out, w_out)
    mu_x, mu_y, sxx, syy, sxy = f[0], f[1], f[2], f[3], f[4]

    mu_x2 = mu_x * mu_x
    mu_y2 = mu_y * mu_y
    mu_xy = mu_x * mu_y
    sig_x = sxx - mu_x2
    sig_y = syy - mu_y2
    sig_xy = sxy - mu_xy

    num = (2.0 * mu_xy + c1) * (2.0 * sig_xy + c2)
    den = (mu_x2 + mu_y2 + c1) * (sig_x + sig_y + c2)
    ssim_part = jnp.sum(num / den)

    # ---- per-tile partial sums written into a lane-dense (1, 8, 128) row ----
    sub = jax.lax.broadcasted_iota(jnp.int32, (1, 8, 128), 1)
    lane = jax.lax.broadcasted_iota(jnp.int32, (1, 8, 128), 2)
    first_row = sub == 0
    out_ref[...] = jnp.where(first_row & (lane == 0), mse_part,
                             jnp.where(first_row & (lane == 1), ssim_part, 0.0))


def mse_ssim_loss(output, target, *, ssim_weight=0.5, mse_weight=0.5, tb=None):
    """output, target: NCHW float arrays in [0, data_range]."""
    n, c, h, w = output.shape
    b = n * c
    h_out = h - KERNEL_SIZE + 1
    w_out = w - KERNEL_SIZE + 1
    assert h_out >= 1 and w_out >= 1, "image smaller than the SSIM window"

    x = output.reshape(b, h, w).astype(jnp.float32)
    y = target.reshape(b, h, w).astype(jnp.float32)

    g = _gaussian_1d()
    gh = _filter_matrix(h, KERNEL_SIZE, g)        # (H_out, H)
    gwt = _filter_matrix(w, KERNEL_SIZE, g).T     # (W, W_out) — right-multiply

    if tb is None:
        tb = _choose_batch_tile(b, h, w)
    if b % tb != 0:
        raise ValueError(f"batch tile {tb} must divide folded batch {b}")
    num_tiles = b // tb

    c1 = (K1 * DATA_RANGE) ** 2
    c2 = (K2 * DATA_RANGE) ** 2
    kernel = functools.partial(_mse_ssim_kernel, c1=float(c1), c2=float(c2))

    matmul_flops = 10 * b * h_out * w * (h + w_out)
    cost = pl.CostEstimate(
        flops=int(matmul_flops + 12 * b * h_out * w_out + 3 * b * h * w),
        transcendentals=0,
        bytes_accessed=int(2 * b * h * w * 4 + num_tiles * 8 * 128 * 4
                           + (h_out * h + w * w_out) * 4),
    )

    grid_spec = pltpu.PrefetchScalarGridSpec(
        num_scalar_prefetch=0,
        grid=(num_tiles,),
        in_specs=[
            pl.BlockSpec((tb, h, w), lambda i: (i, 0, 0)),    # x tile
            pl.BlockSpec((tb, h, w), lambda i: (i, 0, 0)),    # y tile
            pl.BlockSpec((h_out, h), lambda i: (0, 0)),       # Gh (resident)
            pl.BlockSpec((w, w_out), lambda i: (0, 0)),       # Gw^T (resident)
        ],
        out_specs=pl.BlockSpec((1, 8, 128), lambda i: (i, 0, 0)),
    )

    partials = pl.pallas_call(
        kernel,
        out_shape=jax.ShapeDtypeStruct((num_tiles, 8, 128), jnp.float32),
        grid_spec=grid_spec,
        compiler_params=pltpu.CompilerParams(
            dimension_semantics=("parallel",),
            vmem_limit_bytes=_VMEM_LIMIT_BYTES,
        ),
        cost_estimate=cost,
    )(x, y, gh, gwt)

    mse = jnp.sum(partials[:, 0, 0]) / (b * h * w)
    ssim_mean = jnp.sum(partials[:, 0, 1]) / (b * h_out * w_out)
    return mse_weight * mse + ssim_weight * (1.0 - ssim_mean)


def _reference_loss(output, target, *, ssim_weight=0.5, mse_weight=0.5):
    """Pure-JAX reference mirroring torchmetrics SSIM + nn.MSELoss."""
    output = output.astype(jnp.float32)
    target = target.astype(jnp.float32)
    mse = jnp.mean((output - target) ** 2)

    g = _gaussian_1d()
    k2d = jnp.outer(g, g)
    n, c, h, w = output.shape
    kern = jnp.broadcast_to(k2d, (c, 1, KERNEL_SIZE, KERNEL_SIZE))

    def f(z):
        return jax.lax.conv_general_dilated(
            z, kern, window_strides=(1, 1), padding="VALID",
            dimension_numbers=("NCHW", "OIHW", "NCHW"), feature_group_count=c)

    mu_x = f(output)
    mu_y = f(target)
    sxx = f(output * output) - mu_x * mu_x
    syy = f(target * target) - mu_y * mu_y
    sxy = f(output * target) - mu_x * mu_y
    c1 = (K1 * DATA_RANGE) ** 2
    c2 = (K2 * DATA_RANGE) ** 2
    ssim_map = ((2 * mu_x * mu_y + c1) * (2 * sxy + c2)) / (
        (mu_x * mu_x + mu_y * mu_y + c1) * (sxx + syy + c2))
    ssim = jnp.mean(ssim_map.reshape(n, -1).mean(-1))
    return mse_weight * mse + ssim_weight * (1.0 - ssim)


if __name__ == "__main__":
    key = jax.random.PRNGKey(0)
    ka, kb = jax.random.split(key)
    shape = (2, 4, 16, 16)  # N, C, H, W  (data_range=1.0 -> inputs in [0, 1])
    output = jax.random.uniform(ka, shape, dtype=jnp.float32)
    target = jax.random.uniform(kb, shape, dtype=jnp.float32)

    ref = jax.block_until_ready(_reference_loss(output, target))

    # Auto-chosen tile (single grid step at this small size) ...
    loss_auto = jax.block_until_ready(mse_ssim_loss(output, target))
    # ... and an explicit small tile to exercise the multi-step parallel grid
    # with per-tile partial sums.
    loss_tiled = jax.block_until_ready(mse_ssim_loss(output, target, tb=2))

    for loss in (loss_auto, loss_tiled):
        assert jnp.isfinite(loss), loss
        assert jnp.allclose(loss, ref, atol=1e-5, rtol=1e-5), (float(loss), float(ref))
    print("KERNEL_OK")
</pallas_src>

<mosaic_0001>
module attributes {stable_mosaic.version = 11 : i64} {
  func.func @_mse_ssim_kernel(%arg0: i32, %arg1: memref<8x16x16xf32, #tpu.memory_space<vmem>>, %arg2: memref<8x16x16xf32, #tpu.memory_space<vmem>>, %arg3: memref<6x16xf32, #tpu.memory_space<vmem>>, %arg4: memref<16x6xf32, #tpu.memory_space<vmem>>, %arg5: memref<1x8x128xf32, #tpu.memory_space<vmem>>) attributes {dimension_semantics = [#tpu.dimension_semantics<parallel>], iteration_bounds = array<i64: 1>, scalar_prefetch = 0 : i64, scratch_operands = 0 : i64, tpu.core_type = #tpu.core_type<tc>, window_params = [{transform_indices = @transform_0, window_bounds = array<i64: 8, 16, 16>}, {transform_indices = @transform_1, window_bounds = array<i64: 8, 16, 16>}, {pipeline_mode = #tpu.pipeline_mode<synchronous>, transform_indices = @transform_2, window_bounds = array<i64: 6, 16>}, {pipeline_mode = #tpu.pipeline_mode<synchronous>, transform_indices = @transform_3, window_bounds = array<i64: 16, 6>}, {transform_indices = @transform_4, window_bounds = array<i64: 1, 8, 128>}]} {
    %c0 = arith.constant 0 : index
    %c0_0 = arith.constant 0 : index
    %c0_1 = arith.constant 0 : index
    %0 = vector.load %arg1[%c0, %c0_0, %c0_1] : memref<8x16x16xf32, #tpu.memory_space<vmem>>, vector<8x16x16xf32>
    %c0_2 = arith.constant 0 : index
    %c0_3 = arith.constant 0 : index
    %c0_4 = arith.constant 0 : index
    %1 = vector.load %arg2[%c0_2, %c0_3, %c0_4] : memref<8x16x16xf32, #tpu.memory_space<vmem>>, vector<8x16x16xf32>
    %2 = arith.subf %0, %1 : vector<8x16x16xf32>
    %3 = arith.mulf %2, %2 : vector<8x16x16xf32>
    %4 = vector.shape_cast %3 : vector<8x16x16xf32> to vector<1x8x16x16xf32>
    %cst = arith.constant dense<0.000000e+00> : vector<1xf32>
    %5 = vector.multi_reduction <add>, %4, %cst [1, 2, 3] : vector<1x8x16x16xf32> to vector<1xf32>
    %6 = vector.shape_cast %5 : vector<1xf32> to vector<1x1x1x1xf32>
    %7 = vector.extract %6[0, 0, 0, 0] : f32 from vector<1x1x1x1xf32>
    %8 = arith.mulf %0, %0 : vector<8x16x16xf32>
    %9 = arith.mulf %1, %1 : vector<8x16x16xf32>
    %10 = arith.mulf %0, %1 : vector<8x16x16xf32>
    %11 = tpu.concatenate %0, %1, %8, %9, %10 in 0 : vector<8x16x16xf32>, vector<8x16x16xf32>, vector<8x16x16xf32>, vector<8x16x16xf32>, vector<8x16x16xf32> -> vector<40x16x16xf32>
    %c0_5 = arith.constant 0 : index
    %c0_6 = arith.constant 0 : index
    %12 = vector.load %arg3[%c0_5, %c0_6] : memref<6x16xf32, #tpu.memory_space<vmem>>, vector<6x16xf32>
    %13 = vector.shape_cast %12 : vector<6x16xf32> to vector<1x6x16xf32>
    %14 = vector.broadcast %13 : vector<1x6x16xf32> to vector<40x6x16xf32>
    "tpu.trace_start"() <{level = 10 : i32, message = "boh,bhw->bow"}> : () -> ()
    %cst_7 = arith.constant dense<0.000000e+00> : vector<40x6x16xf32>
    %15 = tpu.matmul %14, %11, %cst_7 {dimension_numbers = #tpu.dot_dimension_numbers<[2], [1], [1], [2], [0, 0, 0, 1, 1, 2], [0], [0]>} : vector<40x6x16xf32>, vector<40x16x16xf32>, vector<40x6x16xf32> -> vector<40x6x16xf32>
    "tpu.trace_stop"() : () -> ()
    %16 = vector.shape_cast %15 : vector<40x6x16xf32> to vector<240x16xf32>
    %c0_8 = arith.constant 0 : index
    %c0_9 = arith.constant 0 : index
    %17 = vector.load %arg4[%c0_8, %c0_9] : memref<16x6xf32, #tpu.memory_space<vmem>>, vector<16x6xf32>
    %cst_10 = arith.constant dense<0.000000e+00> : vector<240x6xf32>
    %18 = tpu.matmul %16, %17, %cst_10 {dimension_numbers = #tpu.dot_dimension_numbers<[1], [0], [0], [1], [0, 0, 1, 1], [], []>} : vector<240x16xf32>, vector<16x6xf32>, vector<240x6xf32> -> vector<240x6xf32>
    %19 = vector.shape_cast %18 : vector<240x6xf32> to vector<5x48x6xf32>
    %20 = vector.extract_strided_slice %19 {offsets = [0, 0, 0], sizes = [1, 48, 6], strides = [1, 1, 1]} : vector<5x48x6xf32> to vector<1x48x6xf32>
    %21 = vector.shape_cast %20 : vector<1x48x6xf32> to vector<48x6xf32>
    %22 = vector.extract_strided_slice %19 {offsets = [1, 0, 0], sizes = [1, 48, 6], strides = [1, 1, 1]} : vector<5x48x6xf32> to vector<1x48x6xf32>
    %23 = vector.shape_cast %22 : vector<1x48x6xf32> to vector<48x6xf32>
    %24 = vector.extract_strided_slice %19 {offsets = [2, 0, 0], sizes = [1, 48, 6], strides = [1, 1, 1]} : vector<5x48x6xf32> to vector<1x48x6xf32>
    %25 = vector.shape_cast %24 : vector<1x48x6xf32> to vector<48x6xf32>
    %26 = vector.extract_strided_slice %19 {offsets = [3, 0, 0], sizes = [1, 48, 6], strides = [1, 1, 1]} : vector<5x48x6xf32> to vector<1x48x6xf32>
    %27 = vector.shape_cast %26 : vector<1x48x6xf32> to vector<48x6xf32>
    %28 = vector.extract_strided_slice %19 {offsets = [4, 0, 0], sizes = [1, 48, 6], strides = [1, 1, 1]} : vector<5x48x6xf32> to vector<1x48x6xf32>
    %29 = vector.shape_cast %28 : vector<1x48x6xf32> to vector<48x6xf32>
    %30 = arith.mulf %21, %21 : vector<48x6xf32>
    %31 = arith.mulf %23, %23 : vector<48x6xf32>
    %32 = arith.mulf %21, %23 : vector<48x6xf32>
    %33 = arith.subf %25, %30 : vector<48x6xf32>
    %34 = arith.subf %27, %31 : vector<48x6xf32>
    %35 = arith.subf %29, %32 : vector<48x6xf32>
    %cst_11 = arith.constant 2.000000e+00 : f32
    %36 = vector.broadcast %cst_11 : f32 to vector<48x6xf32>
    %37 = arith.mulf %36, %32 : vector<48x6xf32>
    %cst_12 = arith.constant 9.99999974E-5 : f32
    %38 = vector.broadcast %cst_12 : f32 to vector<48x6xf32>
    %39 = arith.addf %37, %38 : vector<48x6xf32>
    %cst_13 = arith.constant 2.000000e+00 : f32
    %40 = vector.broadcast %cst_13 : f32 to vector<48x6xf32>
    %41 = arith.mulf %40, %35 : vector<48x6xf32>
    %cst_14 = arith.constant 8.99999984E-4 : f32
    %42 = vector.broadcast %cst_14 : f32 to vector<48x6xf32>
    %43 = arith.addf %41, %42 : vector<48x6xf32>
    %44 = arith.mulf %39, %43 : vector<48x6xf32>
    %45 = arith.addf %30, %31 : vector<48x6xf32>
    %cst_15 = arith.constant 9.99999974E-5 : f32
    %46 = vector.broadcast %cst_15 : f32 to vector<48x6xf32>
    %47 = arith.addf %45, %46 : vector<48x6xf32>
    %48 = arith.addf %33, %34 : vector<48x6xf32>
    %cst_16 = arith.constant 8.99999984E-4 : f32
    %49 = vector.broadcast %cst_16 : f32 to vector<48x6xf32>
    %50 = arith.addf %48, %49 : vector<48x6xf32>
    %51 = arith.mulf %47, %50 : vector<48x6xf32>
    %52 = arith.divf %44, %51 : vector<48x6xf32>
    %53 = vector.shape_cast %52 : vector<48x6xf32> to vector<1x48x6xf32>
    %cst_17 = arith.constant dense<0.000000e+00> : vector<1xf32>
    %54 = vector.multi_reduction <add>, %53, %cst_17 [1, 2] : vector<1x48x6xf32> to vector<1xf32>
    %55 = vector.shape_cast %54 : vector<1xf32> to vector<1x1x1xf32>
    %56 = vector.extract %55[0, 0, 0] : f32 from vector<1x1x1xf32>
    %57 = tpu.iota {dimensions = array<i32: 1>} : vector<1x8x128xi32>
    %58 = tpu.iota {dimensions = array<i32: 2>} : vector<1x8x128xi32>
    %c0_i32 = arith.constant 0 : i32
    %59 = vector.broadcast %c0_i32 : i32 to vector<1x8x128xi32>
    %60 = arith.cmpi eq, %57, %59 : vector<1x8x128xi32>
    %c0_i32_18 = arith.constant 0 : i32
    %61 = vector.broadcast %c0_i32_18 : i32 to vector<1x8x128xi32>
    %62 = arith.cmpi eq, %58, %61 : vector<1x8x128xi32>
    %63 = arith.andi %60, %62 : vector<1x8x128xi1>
    %c1_i32 = arith.constant 1 : i32
    %64 = vector.broadcast %c1_i32 : i32 to vector<1x8x128xi32>
    %65 = arith.cmpi eq, %58, %64 : vector<1x8x128xi32>
    %66 = arith.andi %60, %65 : vector<1x8x128xi1>
    %cst_19 = arith.constant 0.000000e+00 : f32
    %67 = vector.broadcast %56 : f32 to vector<1x8x128xf32>
    %68 = vector.broadcast %cst_19 : f32 to vector<1x8x128xf32>
    %69 = arith.select %66, %67, %68 : vector<1x8x128xi1>, vector<1x8x128xf32>
    %70 = vector.broadcast %7 : f32 to vector<1x8x128xf32>
    %71 = arith.select %63, %70, %69 : vector<1x8x128xi1>, vector<1x8x128xf32>
    %c0_20 = arith.constant 0 : index
    %c0_21 = arith.constant 0 : index
    %c0_22 = arith.constant 0 : index
    %72 = vector.load %arg5[%c0_20, %c0_21, %c0_22] : memref<1x8x128xf32, #tpu.memory_space<vmem>>, vector<1x8x128xf32>
    tpu.vector_store %arg5[%c0_20, %c0_21, %c0_22], %71 {strides = array<i32>} : memref<1x8x128xf32, #tpu.memory_space<vmem>>, vector<1x8x128xf32>,
    return
  }
  func.func @transform_0(%arg0: i32) -> (i32, i32, i32) {
    %c0_i32 = arith.constant 0 : i32
    %c0_i32_0 = arith.constant 0 : i32
    %c0_i32_1 = arith.constant 0 : i32
    return %arg0, %c0_i32, %c0_i32_0 : i32, i32, i32
  }
  func.func @transform_1(%arg0: i32) -> (i32, i32, i32) {
    %c0_i32 = arith.constant 0 : i32
    %c0_i32_0 = arith.constant 0 : i32
    %c0_i32_1 = arith.constant 0 : i32
    return %arg0, %c0_i32, %c0_i32_0 : i32, i32, i32
  }
  func.func @transform_2(%arg0: i32) -> (i32, i32) {
    %c0_i32 = arith.constant 0 : i32
    %c0_i32_0 = arith.constant 0 : i32
    %c0_i32_1 = arith.constant 0 : i32
    return %c0_i32, %c0_i32_0 : i32, i32
  }
  func.func @transform_3(%arg0: i32) -> (i32, i32) {
    %c0_i32 = arith.constant 0 : i32
    %c0_i32_0 = arith.constant 0 : i32
    %c0_i32_1 = arith.constant 0 : i32
    return %c0_i32, %c0_i32_0 : i32, i32
  }
  func.func @transform_4(%arg0: i32) -> (i32, i32, i32) {
    %c0_i32 = arith.constant 0 : i32
    %c0_i32_0 = arith.constant 0 : i32
    %c0_i32_1 = arith.constant 0 : i32
    return %arg0, %c0_i32, %c0_i32_0 : i32, i32, i32
  }
}

</mosaic_0001>

<llo_original>
// kernel: tpu_custom_call.1
$region0: #{tpu_custom_call.1}
  #allocation0 [shape = 'u32[]', space=smem, size = 0x4, offset = 0x4, fixed_abs, tag = 'smem constant byte address 0x4 - core index']
  #allocation1 [shape = 'u32[144,128]{1,0:T(1,128)}', space=vmem, size = 0x12000, scoped, tag = 'internal scratch']
  %s0 = inlined_call_operand.hbm [shape: f32[8,16,16], index: 0, kind: input, shape index: {}]
  %s1 = inlined_call_operand.hbm [shape: f32[8,16,16], index: 1, kind: input, shape index: {}]
  %s2 = inlined_call_operand.vmem [shape: f32[6,16], index: 2, kind: input, shape index: {}]
  %s3 = inlined_call_operand.vmem [shape: f32[16,6], index: 3, kind: input, shape index: {}]
  %s4 = inlined_call_operand.hbm [shape: f32[1,8,128], index: 4, kind: output, shape index: {}]
  %s5 = sld [smem:[#allocation0]]
  $region34: #{tpu_custom_call.1} parent=0
    _
  %s7 = ssub.s32 1, %s5
  %s8 = scalar_select 0, %s7, %s5
  $region1: #{tpu_custom_call.1} parent=0
    #allocation2 [shape = 'u8[65536]{0}', space=vmem, size = 0x10000, scoped, tag = 'input window, operand 0, single buffered']
    #allocation3 [shape = 's32[1]{0}', space=sflag, size = 0x4, scoped, tag = 'scoped memory for tpu_custom_call.1']
    #allocation4 [shape = 's32[1]{0}', space=sflag, size = 0x4, scoped, tag = 'scoped memory for tpu_custom_call.1']
    #allocation5 [shape = 'u8[65536]{0}', space=vmem, size = 0x10000, scoped, tag = 'input window, operand 1, single buffered']
    #allocation6 [shape = 's32[1]{0}', space=sflag, size = 0x4, scoped, tag = 'scoped memory for tpu_custom_call.1']
    #allocation7 [shape = 'u8[4096]{0}', space=vmem, size = 0x1000, scoped, tag = 'output window, operand 0, single buffered']
    %9 = vsyncpa [#allocation3], 0
    %10 = vsyncpa [#allocation6], 0
    %11 = vsyncpa [#allocation4], 0
    // Predicated region
    $region2: #{tpu_custom_call.1} parent=1 // pred_check
      _
    $region3: #{tpu_custom_call.1} parent=1 // pred_check_branch
      %13 = sbr.rel (0) target = $region5
    $region4: #{tpu_custom_call.1} parent=1 // pred_region
      %s15 = ssub.s32 2048, 2048
      %16 = vsyncadd [#allocation3], %s15
      %s17 = sshll.u32 [#allocation2], 4
      %s18 = int_to_ptr.vmem [resolvable:$true] %s17
      %23 = dma.hbm_to_vmem [thread:$0]  %s0, 2048, %s18, [#allocation3], 128, 128, 8
    $region5: #{tpu_custom_call.1} parent=1 // pred_fallthru
      _
    // Predicated region
    $region6: #{tpu_custom_call.1} parent=1 // pred_check
      _
    $region7: #{tpu_custom_call.1} parent=1 // pred_check_branch
      %25 = sbr.rel (0) target = $region9
    $region8: #{tpu_custom_call.1} parent=1 // pred_region
      %s27 = ssub.s32 2048, 2048
      %28 = vsyncadd [#allocation6], %s27
      %s29 = sshll.u32 [#allocation5], 4
      %s30 = int_to_ptr.vmem [resolvable:$true] %s29
      %35 = dma.hbm_to_vmem [thread:$0]  %s1, 2048, %s30, [#allocation6], 128, 128, 8
    $region9: #{tpu_custom_call.1} parent=1 // pred_fallthru
      _
    // Predicated region
    $region10: #{tpu_custom_call.1} parent=1 // pred_check
      _
    $region11: #{tpu_custom_call.1} parent=1 // pred_check_branch
      %37 = sbr.rel (0) target = $region13
    $region12: #{tpu_custom_call.1} parent=1 // pred_region
      _
    $region13: #{tpu_custom_call.1} parent=1 // pred_fallthru
      _
    // Predicated region
    $region14: #{tpu_custom_call.1} parent=1 // pred_check
      _
    $region15: #{tpu_custom_call.1} parent=1 // pred_check_branch
      %39 = sbr.rel (0) target = $region17
    $region16: #{tpu_custom_call.1} parent=1 // pred_region
      _
    $region17: #{tpu_custom_call.1} parent=1 // pred_fallthru
      _
    // Predicated region
    $region18: #{tpu_custom_call.1} parent=1 // pred_check
      _
    $region19: #{tpu_custom_call.1} parent=1 // pred_check_branch
      %41 = sbr.rel (0) target = $region21
    $region20: #{tpu_custom_call.1} parent=1 // pred_region
      %42 = dma.done [#allocation3], 2048
    $region21: #{tpu_custom_call.1} parent=1 // pred_fallthru
      _
    // Predicated region
    $region22: #{tpu_custom_call.1} parent=1 // pred_check
      _
    $region23: #{tpu_custom_call.1} parent=1 // pred_check_branch
      %44 = sbr.rel (0) target = $region25
    $region24: #{tpu_custom_call.1} parent=1 // pred_region
      %45 = dma.done [#allocation6], 2048
    $region25: #{tpu_custom_call.1} parent=1 // pred_fallthru
      _
    %v46 = vld [vmem:[#allocation2] sm:$0xff]
    %v47 = vld [vmem:[#allocation2 + $0x8] sm:$0xff]
    %v48 = vld [vmem:[#allocation2 + $0x10] sm:$0xff]
    %v49 = vld [vmem:[#allocation2 + $0x18] sm:$0xff]
    %v50 = vld [vmem:[#allocation2 + $0x20] sm:$0xff]
    %v51 = vld [vmem:[#allocation2 + $0x28] sm:$0xff]
    %v52 = vld [vmem:[#allocation2 + $0x30] sm:$0xff]
    %v53 = vld [vmem:[#allocation2 + $0x38] sm:$0xff]
    %v54 = vld [vmem:[#allocation2 + $0x40] sm:$0xff]
    %v55 = vld [vmem:[#allocation2 + $0x48] sm:$0xff]
    %v56 = vld [vmem:[#allocation2 + $0x50] sm:$0xff]
    %v57 = vld [vmem:[#allocation2 + $0x58] sm:$0xff]
    %v58 = vld [vmem:[#allocation2 + $0x60] sm:$0xff]
    %v59 = vld [vmem:[#allocation2 + $0x68] sm:$0xff]
    %v60 = vld [vmem:[#allocation2 + $0x70] sm:$0xff]
    %v61 = vld [vmem:[#allocation2 + $0x78] sm:$0xff]
    %v62 = vld [vmem:[#allocation5] sm:$0xff]
    %v63 = vld [vmem:[#allocation5 + $0x8] sm:$0xff]
    %v64 = vld [vmem:[#allocation5 + $0x10] sm:$0xff]
    %v65 = vld [vmem:[#allocation5 + $0x18] sm:$0xff]
    %v66 = vld [vmem:[#allocation5 + $0x20] sm:$0xff]
    %v67 = vld [vmem:[#allocation5 + $0x28] sm:$0xff]
    %v68 = vld [vmem:[#allocation5 + $0x30] sm:$0xff]
    %v69 = vld [vmem:[#allocation5 + $0x38] sm:$0xff]
    %v70 = vld [vmem:[#allocation5 + $0x40] sm:$0xff]
    %v71 = vld [vmem:[#allocation5 + $0x48] sm:$0xff]
    %v72 = vld [vmem:[#allocation5 + $0x50] sm:$0xff]
    %v73 = vld [vmem:[#allocation5 + $0x58] sm:$0xff]
    %v74 = vld [vmem:[#allocation5 + $0x60] sm:$0xff]
    %v75 = vld [vmem:[#allocation5 + $0x68] sm:$0xff]
    %v76 = vld [vmem:[#allocation5 + $0x70] sm:$0xff]
    %v77 = vld [vmem:[#allocation5 + $0x78] sm:$0xff]
    %v78 = vsub.f32 %v46, %v62
    %v79 = vsub.f32 %v47, %v63
    %v80 = vsub.f32 %v48, %v64
    %v81 = vsub.f32 %v49, %v65
    %v82 = vsub.f32 %v50, %v66
    %v83 = vsub.f32 %v51, %v67
    %v84 = vsub.f32 %v52, %v68
    %v85 = vsub.f32 %v53, %v69
    %v86 = vsub.f32 %v54, %v70
    %v87 = vsub.f32 %v55, %v71
    %v88 = vsub.f32 %v56, %v72
    %v89 = vsub.f32 %v57, %v73
    %v90 = vsub.f32 %v58, %v74
    %v91 = vsub.f32 %v59, %v75
    %v92 = vsub.f32 %v60, %v76
    %v93 = vsub.f32 %v61, %v77
    %v94 = vmul.f32 %v78, %v78
    %v95 = vmul.f32 %v79, %v79
    %v96 = vmul.f32 %v80, %v80
    %v97 = vmul.f32 %v81, %v81
    %v98 = vmul.f32 %v82, %v82
    %v99 = vmul.f32 %v83, %v83
    %v100 = vmul.f32 %v84, %v84
    %v101 = vmul.f32 %v85, %v85
    %v102 = vmul.f32 %v86, %v86
    %v103 = vmul.f32 %v87, %v87
    %v104 = vmul.f32 %v88, %v88
    %v105 = vmul.f32 %v89, %v89
    %v106 = vmul.f32 %v90, %v90
    %v107 = vmul.f32 %v91, %v91
    %v108 = vmul.f32 %v92, %v92
    %v109 = vmul.f32 %v93, %v93
    %vm110 = vcmask 130048
    %v111 = vsel %vm110, %v94, 0.0
    %v112 = vsel %vm110, %v95, 0.0
    %v113 = vadd.f32 %v111, %v112
    %v114 = vsel %vm110, %v96, 0.0
    %v115 = vadd.f32 %v113, %v114
    %v116 = vsel %vm110, %v97, 0.0
    %v117 = vadd.f32 %v115, %v116
    %v118 = vsel %vm110, %v98, 0.0
    %v119 = vadd.f32 %v117, %v118
    %v120 = vsel %vm110, %v99, 0.0
    %v121 = vadd.f32 %v119, %v120
    %v122 = vsel %vm110, %v100, 0.0
    %v123 = vadd.f32 %v121, %v122
    %v124 = vsel %vm110, %v101, 0.0
    %v125 = vadd.f32 %v123, %v124
    %v126 = vsel %vm110, %v102, 0.0
    %v127 = vadd.f32 %v125, %v126
    %v128 = vsel %vm110, %v103, 0.0
    %v129 = vadd.f32 %v127, %v128
    %v130 = vsel %vm110, %v104, 0.0
    %v131 = vadd.f32 %v129, %v130
    %v132 = vsel %vm110, %v105, 0.0
    %v133 = vadd.f32 %v131, %v132
    %v134 = vsel %vm110, %v106, 0.0
    %v135 = vadd.f32 %v133, %v134
    %v136 = vsel %vm110, %v107, 0.0
    %v137 = vadd.f32 %v135, %v136
    %v138 = vsel %vm110, %v108, 0.0
    %v139 = vadd.f32 %v137, %v138
    %v140 = vsel %vm110, %v109, 0.0
    %v141 = vadd.f32 %v139, %v140
    %142 = vadd.xlane.f32.xlu0 %v141
    %v143 = vpop.xlane.xlu0 %142
    %v144 = vrot.slane %v143, 4
    %v145 = vadd.f32 %v143, %v144
    %v146 = vrot.slane %v145, 2
    %v147 = vadd.f32 %v145, %v146
    %v148 = vrot.slane %v147, 1
    %v149 = vadd.f32 %v147, %v148
    %s150 = vtos %v149
    %v151 = vmul.f32 %v46, %v46
    %v152 = vmul.f32 %v47, %v47
    %v153 = vmul.f32 %v48, %v48
    %v154 = vmul.f32 %v49, %v49
    %v155 = vmul.f32 %v50, %v50
    %v156 = vmul.f32 %v51, %v51
    %v157 = vmul.f32 %v52, %v52
    %v158 = vmul.f32 %v53, %v53
    %v159 = vmul.f32 %v54, %v54
    %v160 = vmul.f32 %v55, %v55
    %v161 = vmul.f32 %v56, %v56
    %v162 = vmul.f32 %v57, %v57
    %v163 = vmul.f32 %v58, %v58
    %v164 = vmul.f32 %v59, %v59
    %v165 = vmul.f32 %v60, %v60
    %v166 = vmul.f32 %v61, %v61
    %v167 = vmul.f32 %v62, %v62
    %v168 = vmul.f32 %v63, %v63
    %v169 = vmul.f32 %v64, %v64
    %v170 = vmul.f32 %v65, %v65
    %v171 = vmul.f32 %v66, %v66
    %v172 = vmul.f32 %v67, %v67
    %v173 = vmul.f32 %v68, %v68
    %v174 = vmul.f32 %v69, %v69
    %v175 = vmul.f32 %v70, %v70
    %v176 = vmul.f32 %v71, %v71
    %v177 = vmul.f32 %v72, %v72
    %v178 = vmul.f32 %v73, %v73
    %v179 = vmul.f32 %v74, %v74
    %v180 = vmul.f32 %v75, %v75
    %v181 = vmul.f32 %v76, %v76
    %v182 = vmul.f32 %v77, %v77
    %v183 = vmul.f32 %v46, %v62
    %v184 = vmul.f32 %v47, %v63
    %v185 = vmul.f32 %v48, %v64
    %v186 = vmul.f32 %v49, %v65
    %v187 = vmul.f32 %v50, %v66
    %v188 = vmul.f32 %v51, %v67
    %v189 = vmul.f32 %v52, %v68
    %v190 = vmul.f32 %v53, %v69
    %v191 = vmul.f32 %v54, %v70
    %v192 = vmul.f32 %v55, %v71
    %v193 = vmul.f32 %v56, %v72
    %v194 = vmul.f32 %v57, %v73
    %v195 = vmul.f32 %v58, %v74
    %v196 = vmul.f32 %v59, %v75
    %v197 = vmul.f32 %v60, %v76
    %v198 = vmul.f32 %v61, %v77
    %v199 = vld [vmem:[%s2] sm:$0x3f]
    %v201 = vsel %vm110, %v199, 0
    %203 = vmatprep.subr.mxu0 0.0
    %204 = vmatpush1.msra.mxu0 %v46
    %205 = vmatprep.subr.mxu0 0.0
    %206 = vmatpush1.msra.mxu0 %v47
    %207 = vmatprep.subr.mxu0 0.0
    %208 = vmatpush1.msra.mxu0 0.0
    %209 = vmatprep.subr.mxu0 0.0
    %210 = vmatpush1.msra.mxu0 0.0
    %211 = vmatprep.subr.mxu0 0.0
    %212 = vmatpush1.msra.mxu0 0.0
    %213 = vmatprep.subr.mxu0 0.0
    %214 = vmatpush1.msra.mxu0 0.0
    %215 = vmatprep.subr.mxu0 0.0
    %216 = vmatpush1.msra.mxu0 0.0
    %217 = vmatprep.subr.mxu0 0.0
    %218 = vmatpush1.msra.mxu0 0.0
    %219 = vmatprep.subr.mxu0 0.0
    %220 = vmatpush1.msra.mxu0 0.0
    %221 = vmatprep.subr.mxu0 0.0
    %222 = vmatpush1.msra.mxu0 0.0
    %223 = vmatprep.subr.mxu0 0.0
    %224 = vmatpush1.msra.mxu0 0.0
    %225 = vmatprep.subr.mxu0 0.0
    %226 = vmatpush1.msra.mxu0 0.0
    %227 = vmatprep.subr.mxu0 0.0
    %228 = vmatpush1.msra.mxu0 0.0
    %229 = vmatprep.subr.mxu0 0.0
    %230 = vmatpush1.msra.mxu0 0.0
    %231 = vmatprep.subr.mxu0 0.0
    %232 = vmatpush1.msra.mxu0 0.0
    %233 = vmatprep.subr.mxu0 0.0
    %234 = vmatpush1.msra.mxu0 0.0
    %235 = vmatprep.subr.mxu0 0.0
    %236 = vmatpush1.msra.mxu0 0.0
    %237 = vmatprep.subr.mxu0 0.0
    %238 = vmatpush1.msra.mxu0 0.0
    %239 = vmatprep.subr.mxu0 0.0
    %240 = vmatpush1.msra.mxu0 0.0
    %241 = vmatprep.subr.mxu0 0.0
    %242 = vmatpush1.msra.mxu0 0.0
    %243 = vmatprep.subr.mxu0 0.0
    %244 = vmatpush1.msra.mxu0 0.0
    %245 = vmatprep.subr.mxu0 0.0
    %246 = vmatpush1.msra.mxu0 0.0
    %247 = vmatprep.subr.mxu0 0.0
    %248 = vmatpush1.msra.mxu0 0.0
    %249 = vmatprep.subr.mxu0 0.0
    %250 = vmatpush1.msra.mxu0 0.0
    %251 = vmatprep.subr.mxu0 0.0
    %252 = vmatpush1.msra.mxu0 0.0
    %253 = vmatprep.subr.mxu0 0.0
    %254 = vmatpush1.msra.mxu0 0.0
    %255 = vmatprep.subr.mxu0 0.0
    %256 = vmatpush1.msra.mxu0 0.0
    %257 = vmatprep.subr.mxu0 0.0
    %258 = vmatpush1.msra.mxu0 0.0
    %259 = vmatprep.subr.mxu0 0.0
    %260 = vmatpush1.msra.mxu0 0.0
    %261 = vmatprep.subr.mxu0 0.0
    %262 = vmatpush1.msra.mxu0 0.0
    %263 = vmatprep.subr.mxu0 0.0
    %264 = vmatpush1.msra.mxu0 0.0
    %265 = vmatprep.subr.mxu0 0.0
    %266 = vmatpush1.msra.mxu0 0.0
    %267 = vmatprep.mubr.f32.mxu0 0.0
    %268 = vmatmul.mubr.f32.gmra.mrb[0].mxu0 %v201
    %v269 = vpop.f32.mrb[0].mxu0
    %v270 = vadd.f32 0.0, %v269
    %v271 = vpop.f32.mrb[0].mxu0
    %272 = vdwg.mxu0
    %273 = vmatprep.subr.mxu0 0.0
    %274 = vmatpush1.msra.mxu0 %v48
    %275 = vmatprep.subr.mxu0 0.0
    %276 = vmatpush1.msra.mxu0 %v49
    %277 = vmatprep.subr.mxu0 0.0
    %278 = vmatpush1.msra.mxu0 0.0
    %279 = vmatprep.subr.mxu0 0.0
    %280 = vmatpush1.msra.mxu0 0.0
    %281 = vmatprep.subr.mxu0 0.0
    %282 = vmatpush1.msra.mxu0 0.0
    %283 = vmatprep.subr.mxu0 0.0
    %284 = vmatpush1.msra.mxu0 0.0
    %285 = vmatprep.subr.mxu0 0.0
    %286 = vmatpush1.msra.mxu0 0.0
    %287 = vmatprep.subr.mxu0 0.0
    %288 = vmatpush1.msra.mxu0 0.0
    %289 = vmatprep.subr.mxu0 0.0
    %290 = vmatpush1.msra.mxu0 0.0
    %291 = vmatprep.subr.mxu0 0.0
    %292 = vmatpush1.msra.mxu0 0.0
    %293 = vmatprep.subr.mxu0 0.0
    %294 = vmatpush1.msra.mxu0 0.0
    %295 = vmatprep.subr.mxu0 0.0
    %296 = vmatpush1.msra.mxu0 0.0
    %297 = vmatprep.subr.mxu0 0.0
    %298 = vmatpush1.msra.mxu0 0.0
    %299 = vmatprep.subr.mxu0 0.0
    %300 = vmatpush1.msra.mxu0 0.0
    %301 = vmatprep.subr.mxu0 0.0
    %302 = vmatpush1.msra.mxu0 0.0
    %303 = vmatprep.subr.mxu0 0.0
    %304 = vmatpush1.msra.mxu0 0.0
    %305 = vmatprep.subr.mxu0 0.0
    %306 = vmatpush1.msra.mxu0 0.0
    %307 = vmatprep.subr.mxu0 0.0
    %308 = vmatpush1.msra.mxu0 0.0
    %309 = vmatprep.subr.mxu0 0.0
    %310 = vmatpush1.msra.mxu0 0.0
    %311 = vmatprep.subr.mxu0 0.0
    %312 = vmatpush1.msra.mxu0 0.0
    %313 = vmatprep.subr.mxu0 0.0
    %314 = vmatpush1.msra.mxu0 0.0
    %315 = vmatprep.subr.mxu0 0.0
    %316 = vmatpush1.msra.mxu0 0.0
    %317 = vmatprep.subr.mxu0 0.0
    %318 = vmatpush1.msra.mxu0 0.0
    %319 = vmatprep.subr.mxu0 0.0
    %320 = vmatpush1.msra.mxu0 0.0
    %321 = vmatprep.subr.mxu0 0.0
    %322 = vmatpush1.msra.mxu0 0.0
    %323 = vmatprep.subr.mxu0 0.0
    %324 = vmatpush1.msra.mxu0 0.0
    %325 = vmatprep.subr.mxu0 0.0
    %326 = vmatpush1.msra.mxu0 0.0
    %327 = vmatprep.subr.mxu0 0.0
    %328 = vmatpush1.msra.mxu0 0.0
    %329 = vmatprep.subr.mxu0 0.0
    %330 = vmatpush1.msra.mxu0 0.0
    %331 = vmatprep.subr.mxu0 0.0
    %332 = vmatpush1.msra.mxu0 0.0
    %333 = vmatprep.subr.mxu0 0.0
    %334 = vmatpush1.msra.mxu0 0.0
    %335 = vmatprep.subr.mxu0 0.0
    %336 = vmatpush1.msra.mxu0 0.0
    %337 = vmatprep.mubr.f32.mxu0 0.0
    %338 = vmatmul.mubr.f32.gmra.mrb[0].mxu0 %v201
    %v339 = vpop.f32.mrb[0].mxu0
    %v340 = vadd.f32 0.0, %v339
    %v341 = vpop.f32.mrb[0].mxu0
    %342 = vdwg.mxu0
    %343 = vmatprep.subr.mxu0 0.0
    %344 = vmatpush1.msra.mxu0 %v50
    %345 = vmatprep.subr.mxu0 0.0
    %346 = vmatpush1.msra.mxu0 %v51
    %347 = vmatprep.subr.mxu0 0.0
    %348 = vmatpush1.msra.mxu0 0.0
    %349 = vmatprep.subr.mxu0 0.0
    %350 = vmatpush1.msra.mxu0 0.0
    %351 = vmatprep.subr.mxu0 0.0
    %352 = vmatpush1.msra.mxu0 0.0
    %353 = vmatprep.subr.mxu0 0.0
    %354 = vmatpush1.msra.mxu0 0.0
    %355 = vmatprep.subr.mxu0 0.0
    %356 = vmatpush1.msra.mxu0 0.0
    %357 = vmatprep.subr.mxu0 0.0
    %358 = vmatpush1.msra.mxu0 0.0
    %359 = vmatprep.subr.mxu0 0.0
    %360 = vmatpush1.msra.mxu0 0.0
    %361 = vmatprep.subr.mxu0 0.0
    %362 = vmatpush1.msra.mxu0 0.0
    %363 = vmatprep.subr.mxu0 0.0
    %364 = vmatpush1.msra.mxu0 0.0
    %365 = vmatprep.subr.mxu0 0.0
    %366 = vmatpush1.msra.mxu0 0.0
    %367 = vmatprep.subr.mxu0 0.0
    %368 = vmatpush1.msra.mxu0 0.0
    %369 = vmatprep.subr.mxu0 0.0
    %370 = vmatpush1.msra.mxu0 0.0
    %371 = vmatprep.subr.mxu0 0.0
    %372 = vmatpush1.msra.mxu0 0.0
    %373 = vmatprep.subr.mxu0 0.0
    %374 = vmatpush1.msra.mxu0 0.0
    %375 = vmatprep.subr.mxu0 0.0
    %376 = vmatpush1.msra.mxu0 0.0
    %377 = vmatprep.subr.mxu0 0.0
    %378 = vmatpush1.msra.mxu0 0.0
    %379 = vmatprep.subr.mxu0 0.0
    %380 = vmatpush1.msra.mxu0 0.0
    %381 = vmatprep.subr.mxu0 0.0
    %382 = vmatpush1.msra.mxu0 0.0
    %383 = vmatprep.subr.mxu0 0.0
    %384 = vmatpush1.msra.mxu0 0.0
    %385 = vmatprep.subr.mxu0 0.0
    %386 = vmatpush1.msra.mxu0 0.0
    %387 = vmatprep.subr.mxu0 0.0
    %388 = vmatpush1.msra.mxu0 0.0
    %389 = vmatprep.subr.mxu0 0.0
    %390 = vmatpush1.msra.mxu0 0.0
    %391 = vmatprep.subr.mxu0 0.0
    %392 = vmatpush1.msra.mxu0 0.0
    %393 = vmatprep.subr.mxu0 0.0
    %394 = vmatpush1.msra.mxu0 0.0
    %395 = vmatprep.subr.mxu0 0.0
    %396 = vmatpush1.msra.mxu0 0.0
    %397 = vmatprep.subr.mxu0 0.0
    %398 = vmatpush1.msra.mxu0 0.0
    %399 = vmatprep.subr.mxu0 0.0
    %400 = vmatpush1.msra.mxu0 0.0
    %401 = vmatprep.subr.mxu0 0.0
    %402 = vmatpush1.msra.mxu0 0.0
    %403 = vmatprep.subr.mxu0 0.0
    %404 = vmatpush1.msra.mxu0 0.0
    %405 = vmatprep.subr.mxu0 0.0
    %406 = vmatpush1.msra.mxu0 0.0
    %407 = vmatprep.mubr.f32.mxu0 0.0
    %408 = vmatmul.mubr.f32.gmra.mrb[0].mxu0 %v201
    %v409 = vpop.f32.mrb[0].mxu0
    %v410 = vadd.f32 0.0, %v409
    %v411 = vpop.f32.mrb[0].mxu0
    %412 = vdwg.mxu0
    %413 = vmatprep.subr.mxu0 0.0
    %414 = vmatpush1.msra.mxu0 %v52
    %415 = vmatprep.subr.mxu0 0.0
    %416 = vmatpush1.msra.mxu0 %v53
    %417 = vmatprep.subr.mxu0 0.0
    %418 = vmatpush1.msra.mxu0 0.0
    %419 = vmatprep.subr.mxu0 0.0
    %420 = vmatpush1.msra.mxu0 0.0
    %421 = vmatprep.subr.mxu0 0.0
    %422 = vmatpush1.msra.mxu0 0.0
    %423 = vmatprep.subr.mxu0 0.0
    %424 = vmatpush1.msra.mxu0 0.0
    %425 = vmatprep.subr.mxu0 0.0
    %426 = vmatpush1.msra.mxu0 0.0
    %427 = vmatprep.subr.mxu0 0.0
    %428 = vmatpush1.msra.mxu0 0.0
    %429 = vmatprep.subr.mxu0 0.0
    %430 = vmatpush1.msra.mxu0 0.0
    %431 = vmatprep.subr.mxu0 0.0
    %432 = vmatpush1.msra.mxu0 0.0
    %433 = vmatprep.subr.mxu0 0.0
    %434 = vmatpush1.msra.mxu0 0.0
    %435 = vmatprep.subr.mxu0 0.0
    %436 = vmatpush1.msra.mxu0 0.0
    %437 = vmatprep.subr.mxu0 0.0
    %438 = vmatpush1.msra.mxu0 0.0
    %439 = vmatprep.subr.mxu0 0.0
    %440 = vmatpush1.msra.mxu0 0.0
    %441 = vmatprep.subr.mxu0 0.0
    %442 = vmatpush1.msra.mxu0 0.0
    %443 = vmatprep.subr.mxu0 0.0
    %444 = vmatpush1.msra.mxu0 0.0
    %445 = vmatprep.subr.mxu0 0.0
    %446 = vmatpush1.msra.mxu0 0.0
    %447 = vmatprep.subr.mxu0 0.0
    %448 = vmatpush1.msra.mxu0 0.0
    %449 = vmatprep.subr.mxu0 0.0
    %450 = vmatpush1.msra.mxu0 0.0
    %451 = vmatprep.subr.mxu0 0.0
    %452 = vmatpush1.msra.mxu0 0.0
    %453 = vmatprep.subr.mxu0 0.0
    %454 = vmatpush1.msra.mxu0 0.0
    %455 = vmatprep.subr.mxu0 0.0
    %456 = vmatpush1.msra.mxu0 0.0
    %457 = vmatprep.subr.mxu0 0.0
    %458 = vmatpush1.msra.mxu0 0.0
    %459 = vmatprep.subr.mxu0 0.0
    %460 = vmatpush1.msra.mxu0 0.0
    %461 = vmatprep.subr.mxu0 0.0
    %462 = vmatpush1.msra.mxu0 0.0
    %463 = vmatprep.subr.mxu0 0.0
    %464 = vmatpush1.msra.mxu0 0.0
    %465 = vmatprep.subr.mxu0 0.0
    %466 = vmatpush1.msra.mxu0 0.0
    %467 = vmatprep.subr.mxu0 0.0
    %468 = vmatpush1.msra.mxu0 0.0
    %469 = vmatprep.subr.mxu0 0.0
    %470 = vmatpush1.msra.mxu0 0.0
    %471 = vmatprep.subr.mxu0 0.0
    %472 = vmatpush1.msra.mxu0 0.0
    %473 = vmatprep.subr.mxu0 0.0
    %474 = vmatpush1.msra.mxu0 0.0
    %475 = vmatprep.subr.mxu0 0.0
    %476 = vmatpush1.msra.mxu0 0.0
    %477 = vmatprep.mubr.f32.mxu0 0.0
    %478 = vmatmul.mubr.f32.gmra.mrb[0].mxu0 %v201
    %v479 = vpop.f32.mrb[0].mxu0
    %v480 = vadd.f32 0.0, %v479
    %v481 = vpop.f32.mrb[0].mxu0
    %482 = vdwg.mxu0
    %483 = vmatprep.subr.mxu0 0.0
    %484 = vmatpush1.msra.mxu0 %v54
    %485 = vmatprep.subr.mxu0 0.0
    %486 = vmatpush1.msra.mxu0 %v55
    %487 = vmatprep.subr.mxu0 0.0
    %488 = vmatpush1.msra.mxu0 0.0
    %489 = vmatprep.subr.mxu0 0.0
    %490 = vmatpush1.msra.mxu0 0.0
    %491 = vmatprep.subr.mxu0 0.0
    %492 = vmatpush1.msra.mxu0 0.0
    %493 = vmatprep.subr.mxu0 0.0
    %494 = vmatpush1.msra.mxu0 0.0
    %495 = vmatprep.subr.mxu0 0.0
    %496 = vmatpush1.msra.mxu0 0.0
    %497 = vmatprep.subr.mxu0 0.0
    %498 = vmatpush1.msra.mxu0 0.0
    %499 = vmatprep.subr.mxu0 0.0
    %500 = vmatpush1.msra.mxu0 0.0
    %501 = vmatprep.subr.mxu0 0.0
    %502 = vmatpush1.msra.mxu0 0.0
    %503 = vmatprep.subr.mxu0 0.0
    %504 = vmatpush1.msra.mxu0 0.0
    %505 = vmatprep.subr.mxu0 0.0
    %506 = vmatpush1.msra.mxu0 0.0
    %507 = vmatprep.subr.mxu0 0.0
    %508 = vmatpush1.msra.mxu0 0.0
    %509 = vmatprep.subr.mxu0 0.0
    %510 = vmatpush1.msra.mxu0 0.0
    %511 = vmatprep.subr.mxu0 0.0
    %512 = vmatpush1.msra.mxu0 0.0
    %513 = vmatprep.subr.mxu0 0.0
    %514 = vmatpush1.msra.mxu0 0.0
    %515 = vmatprep.subr.mxu0 0.0
    %516 = vmatpush1.msra.mxu0 0.0
    %517 = vmatprep.subr.mxu0 0.0
    %518 = vmatpush1.msra.mxu0 0.0
    %519 = vmatprep.subr.mxu0 0.0
    %520 = vmatpush1.msra.mxu0 0.0
    %521 = vmatprep.subr.mxu0 0.0
    %522 = vmatpush1.msra.mxu0 0.0
    %523 = vmatprep.subr.mxu0 0.0
    %524 = vmatpush1.msra.mxu0 0.0
    %525 = vmatprep.subr.mxu0 0.0
    %526 = vmatpush1.msra.mxu0 0.0
    %527 = vmatprep.subr.mxu0 0.0
    %528 = vmatpush1.msra.mxu0 0.0
    %529 = vmatprep.subr.mxu0 0.0
    %530 = vmatpush1.msra.mxu0 0.0
    %531 = vmatprep.subr.mxu0 0.0
    %532 = vmatpush1.msra.mxu0 0.0
    %533 = vmatprep.subr.mxu0 0.0
    %534 = vmatpush1.msra.mxu0 0.0
    %535 = vmatprep.subr.mxu0 0.0
    %536 = vmatpush1.msra.mxu0 0.0
    %537 = vmatprep.subr.mxu0 0.0
    %538 = vmatpush1.msra.mxu0 0.0
    %539 = vmatprep.subr.mxu0 0.0
    %540 = vmatpush1.msra.mxu0 0.0
    %541 = vmatprep.subr.mxu0 0.0
    %542 = vmatpush1.msra.mxu0 0.0
    %543 = vmatprep.subr.mxu0 0.0
    %544 = vmatpush1.msra.mxu0 0.0
    %545 = vmatprep.subr.mxu0 0.0
    %546 = vmatpush1.msra.mxu0 0.0
    %547 = vmatprep.mubr.f32.mxu0 0.0
    %548 = vmatmul.mubr.f32.gmra.mrb[0].mxu0 %v201
    %v549 = vpop.f32.mrb[0].mxu0
    %v550 = vadd.f32 0.0, %v549
    %v551 = vpop.f32.mrb[0].mxu0
    %552 = vdwg.mxu0
    %553 = vmatprep.subr.mxu0 0.0
    %554 = vmatpush1.msra.mxu0 %v56
    %555 = vmatprep.subr.mxu0 0.0
    %556 = vmatpush1.msra.mxu0 %v57
    %557 = vmatprep.subr.mxu0 0.0
    %558 = vmatpush1.msra.mxu0 0.0
    %559 = vmatprep.subr.mxu0 0.0
    %560 = vmatpush1.msra.mxu0 0.0
    %561 = vmatprep.subr.mxu0 0.0
    %562 = vmatpush1.msra.mxu0 0.0
    %563 = vmatprep.subr.mxu0 0.0
    %564 = vmatpush1.msra.mxu0 0.0
    %565 = vmatprep.subr.mxu0 0.0
    %566 = vmatpush1.msra.mxu0 0.0
    %567 = vmatprep.subr.mxu0 0.0
    %568 = vmatpush1.msra.mxu0 0.0
    %569 = vmatprep.subr.mxu0 0.0
    %570 = vmatpush1.msra.mxu0 0.0
    %571 = vmatprep.subr.mxu0 0.0
    %572 = vmatpush1.msra.mxu0 0.0
    %573 = vmatprep.subr.mxu0 0.0
    %574 = vmatpush1.msra.mxu0 0.0
    %575 = vmatprep.subr.mxu0 0.0
    %576 = vmatpush1.msra.mxu0 0.0
    %577 = vmatprep.subr.mxu0 0.0
    %578 = vmatpush1.msra.mxu0 0.0
    %579 = vmatprep.subr.mxu0 0.0
    %580 = vmatpush1.msra.mxu0 0.0
    %581 = vmatprep.subr.mxu0 0.0
    %582 = vmatpush1.msra.mxu0 0.0
    %583 = vmatprep.subr.mxu0 0.0
    %584 = vmatpush1.msra.mxu0 0.0
    %585 = vmatprep.subr.mxu0 0.0
    %586 = vmatpush1.msra.mxu0 0.0
    %587 = vmatprep.subr.mxu0 0.0
    %588 = vmatpush1.msra.mxu0 0.0
    %589 = vmatprep.subr.mxu0 0.0
    %590 = vmatpush1.msra.mxu0 0.0
    %591 = vmatprep.subr.mxu0 0.0
    %592 = vmatpush1.msra.mxu0 0.0
    %593 = vmatprep.subr.mxu0 0.0
    %594 = vmatpush1.msra.mxu0 0.0
    %595 = vmatprep.subr.mxu0 0.0
    %596 = vmatpush1.msra.mxu0 0.0
    %597 = vmatprep.subr.mxu0 0.0
    %598 = vmatpush1.msra.mxu0 0.0
    %599 = vmatprep.subr.mxu0 0.0
    %600 = vmatpush1.msra.mxu0 0.0
    %601 = vmatprep.subr.mxu0 0.0
    %602 = vmatpush1.msra.mxu0 0.0
    %603 = vmatprep.subr.mxu0 0.0
    %604 = vmatpush1.msra.mxu0 0.0
    %605 = vmatprep.subr.mxu0 0.0
    %606 = vmatpush1.msra.mxu0 0.0
    %607 = vmatprep.subr.mxu0 0.0
    %608 = vmatpush1.msra.mxu0 0.0
    %609 = vmatprep.subr.mxu0 0.0
    %610 = vmatpush1.msra.mxu0 0.0
    %611 = vmatprep.subr.mxu0 0.0
    %612 = vmatpush1.msra.mxu0 0.0
    %613 = vmatprep.subr.mxu0 0.0
    %614 = vmatpush1.msra.mxu0 0.0
    %615 = vmatprep.subr.mxu0 0.0
    %616 = vmatpush1.msra.mxu0 0.0
    %617 = vmatprep.mubr.f32.mxu0 0.0
    %618 = vmatmul.mubr.f32.gmra.mrb[0].mxu0 %v201
    %v619 = vpop.f32.mrb[0].mxu0
    %v620 = vadd.f32 0.0, %v619
    %v621 = vpop.f32.mrb[0].mxu0
    %622 = vdwg.mxu0
    %623 = vmatprep.subr.mxu0 0.0
    %624 = vmatpush1.msra.mxu0 %v58
    %625 = vmatprep.subr.mxu0 0.0
    %626 = vmatpush1.msra.mxu0 %v59
    %627 = vmatprep.subr.mxu0 0.0
    %628 = vmatpush1.msra.mxu0 0.0
    %629 = vmatprep.subr.mxu0 0.0
    %630 = vmatpush1.msra.mxu0 0.0
    %631 = vmatprep.subr.mxu0 0.0
    %632 = vmatpush1.msra.mxu0 0.0
    %633 = vmatprep.subr.mxu0 0.0
    %634 = vmatpush1.msra.mxu0 0.0
    %635 = vmatprep.subr.mxu0 0.0
    %636 = vmatpush1.msra.mxu0 0.0
    %637 = vmatprep.subr.mxu0 0.0
    %638 = vmatpush1.msra.mxu0 0.0
    %639 = vmatprep.subr.mxu0 0.0
    %640 = vmatpush1.msra.mxu0 0.0
    %641 = vmatprep.subr.mxu0 0.0
    %642 = vmatpush1.msra.mxu0 0.0
    %643 = vmatprep.subr.mxu0 0.0
    %644 = vmatpush1.msra.mxu0 0.0
    %645 = vmatprep.subr.mxu0 0.0
    %646 = vmatpush1.msra.mxu0 0.0
    %647 = vmatprep.subr.mxu0 0.0
    %648 = vmatpush1.msra.mxu0 0.0
    %649 = vmatprep.subr.mxu0 0.0
    %650 = vmatpush1.msra.mxu0 0.0
    %651 = vmatprep.subr.mxu0 0.0
    %652 = vmatpush1.msra.mxu0 0.0
    %653 = vmatprep.subr.mxu0 0.0
    %654 = vmatpush1.msra.mxu0 0.0
    %655 = vmatprep.subr.mxu0 0.0
    %656 = vmatpush1.msra.mxu0 0.0
    %657 = vmatprep.subr.mxu0 0.0
    %658 = vmatpush1.msra.mxu0 0.0
    %659 = vmatprep.subr.mxu0 0.0
    %660 = vmatpush1.msra.mxu0 0.0
    %661 = vmatprep.subr.mxu0 0.0
    %662 = vmatpush1.msra.mxu0 0.0
    %663 = vmatprep.subr.mxu0 0.0
    %664 = vmatpush1.msra.mxu0 0.0
    %665 = vmatprep.subr.mxu0 0.0
    %666 = vmatpush1.msra.mxu0 0.0
    %667 = vmatprep.subr.mxu0 0.0
    %668 = vmatpush1.msra.mxu0 0.0
    %669 = vmatprep.subr.mxu0 0.0
    %670 = vmatpush1.msra.mxu0 0.0
    %671 = vmatprep.subr.mxu0 0.0
    %672 = vmatpush1.msra.mxu0 0.0
    %673 = vmatprep.subr.mxu0 0.0
    %674 = vmatpush1.msra.mxu0 0.0
    %675 = vmatprep.subr.mxu0 0.0
    %676 = vmatpush1.msra.mxu0 0.0
    %677 = vmatprep.subr.mxu0 0.0
    %678 = vmatpush1.msra.mxu0 0.0
    %679 = vmatprep.subr.mxu0 0.0
    %680 = vmatpush1.msra.mxu0 0.0
    %681 = vmatprep.subr.mxu0 0.0
    %682 = vmatpush1.msra.mxu0 0.0
    %683 = vmatprep.subr.mxu0 0.0
    %684 = vmatpush1.msra.mxu0 0.0
    %685 = vmatprep.subr.mxu0 0.0
    %686 = vmatpush1.msra.mxu0 0.0
    %687 = vmatprep.mubr.f32.mxu0 0.0
    %688 = vmatmul.mubr.f32.gmra.mrb[0].mxu0 %v201
    %v689 = vpop.f32.mrb[0].mxu0
    %v690 = vadd.f32 0.0, %v689
    %v691 = vpop.f32.mrb[0].mxu0
    %692 = vdwg.mxu0
    %693 = vmatprep.subr.mxu0 0.0
    %694 = vmatpush1.msra.mxu0 %v60
    %695 = vmatprep.subr.mxu0 0.0
    %696 = vmatpush1.msra.mxu0 %v61
    %697 = vmatprep.subr.mxu0 0.0
    %698 = vmatpush1.msra.mxu0 0.0
    %699 = vmatprep.subr.mxu0 0.0
    %700 = vmatpush1.msra.mxu0 0.0
    %701 = vmatprep.subr.mxu0 0.0
    %702 = vmatpush1.msra.mxu0 0.0
    %703 = vmatprep.subr.mxu0 0.0
    %704 = vmatpush1.msra.mxu0 0.0
    %705 = vmatprep.subr.mxu0 0.0
    %706 = vmatpush1.msra.mxu0 0.0
    %707 = vmatprep.subr.mxu0 0.0
    %708 = vmatpush1.msra.mxu0 0.0
    %709 = vmatprep.subr.mxu0 0.0
    %710 = vmatpush1.msra.mxu0 0.0
    %711 = vmatprep.subr.mxu0 0.0
    %712 = vmatpush1.msra.mxu0 0.0
    %713 = vmatprep.subr.mxu0 0.0
    %714 = vmatpush1.msra.mxu0 0.0
    %715 = vmatprep.subr.mxu0 0.0
    %716 = vmatpush1.msra.mxu0 0.0
    %717 = vmatprep.subr.mxu0 0.0
    %718 = vmatpush1.msra.mxu0 0.0
    %719 = vmatprep.subr.mxu0 0.0
    %720 = vmatpush1.msra.mxu0 0.0
    %721 = vmatprep.subr.mxu0 0.0
    %722 = vmatpush1.msra.mxu0 0.0
    %723 = vmatprep.subr.mxu0 0.0
    %724 = vmatpush1.msra.mxu0 0.0
    %725 = vmatprep.subr.mxu0 0.0
    %726 = vmatpush1.msra.mxu0 0.0
    %727 = vmatprep.subr.mxu0 0.0
    %728 = vmatpush1.msra.mxu0 0.0
    %729 = vmatprep.subr.mxu0 0.0
    %730 = vmatpush1.msra.mxu0 0.0
    %731 = vmatprep.subr.mxu0 0.0
    %732 = vmatpush1.msra.mxu0 0.0
    %733 = vmatprep.subr.mxu0 0.0
    %734 = vmatpush1.msra.mxu0 0.0
    %735 = vmatprep.subr.mxu0 0.0
    %736 = vmatpush1.msra.mxu0 0.0
    %737 = vmatprep.subr.mxu0 0.0
    %738 = vmatpush1.msra.mxu0 0.0
    %739 = vmatprep.subr.mxu0 0.0
    %740 = vmatpush1.msra.mxu0 0.0
    %741 = vmatprep.subr.mxu0 0.0
    %742 = vmatpush1.msra.mxu0 0.0
    %743 = vmatprep.subr.mxu0 0.0
    %744 = vmatpush1.msra.mxu0 0.0
    %745 = vmatprep.subr.mxu0 0.0
    %746 = vmatpush1.msra.mxu0 0.0
    %747 = vmatprep.subr.mxu0 0.0
    %748 = vmatpush1.msra.mxu0 0.0
    %749 = vmatprep.subr.mxu0 0.0
    %750 = vmatpush1.msra.mxu0 0.0
    %751 = vmatprep.subr.mxu0 0.0
    %752 = vmatpush1.msra.mxu0 0.0
    %753 = vmatprep.subr.mxu0 0.0
    %754 = vmatpush1.msra.mxu0 0.0
    %755 = vmatprep.subr.mxu0 0.0
    %756 = vmatpush1.msra.mxu0 0.0
    %757 = vmatprep.mubr.f32.mxu0 0.0
    %758 = vmatmul.mubr.f32.gmra.mrb[0].mxu0 %v201
    %v759 = vpop.f32.mrb[0].mxu0
    %v760 = vadd.f32 0.0, %v759
    %v761 = vpop.f32.mrb[0].mxu0
    %762 = vdwg.mxu0
    %763 = vmatprep.subr.mxu0 0.0
    %764 = vmatpush1.msra.mxu0 %v62
    %765 = vmatprep.subr.mxu0 0.0
    %766 = vmatpush1.msra.mxu0 %v63
    %767 = vmatprep.subr.mxu0 0.0
    %768 = vmatpush1.msra.mxu0 0.0
    %769 = vmatprep.subr.mxu0 0.0
    %770 = vmatpush1.msra.mxu0 0.0
    %771 = vmatprep.subr.mxu0 0.0
    %772 = vmatpush1.msra.mxu0 0.0
    %773 = vmatprep.subr.mxu0 0.0
    %774 = vmatpush1.msra.mxu0 0.0
    %775 = vmatprep.subr.mxu0 0.0
    %776 = vmatpush1.msra.mxu0 0.0
    %777 = vmatprep.subr.mxu0 0.0
    %778 = vmatpush1.msra.mxu0 0.0
    %779 = vmatprep.subr.mxu0 0.0
    %780 = vmatpush1.msra.mxu0 0.0
    %781 = vmatprep.subr.mxu0 0.0
    %782 = vmatpush1.msra.mxu0 0.0
    %783 = vmatprep.subr.mxu0 0.0
    %784 = vmatpush1.msra.mxu0 0.0
    %785 = vmatprep.subr.mxu0 0.0
    %786 = vmatpush1.msra.mxu0 0.0
    %787 = vmatprep.subr.mxu0 0.0
    %788 = vmatpush1.msra.mxu0 0.0
    %789 = vmatprep.subr.mxu0 0.0
    %790 = vmatpush1.msra.mxu0 0.0
    %791 = vmatprep.subr.mxu0 0.0
    %792 = vmatpush1.msra.mxu0 0.0
    %793 = vmatprep.subr.mxu0 0.0
    %794 = vmatpush1.msra.mxu0 0.0
    %795 = vmatprep.subr.mxu0 0.0
    %796 = vmatpush1.msra.mxu0 0.0
    %797 = vmatprep.subr.mxu0 0.0
    %798 = vmatpush1.msra.mxu0 0.0
    %799 = vmatprep.subr.mxu0 0.0
    %800 = vmatpush1.msra.mxu0 0.0
    %801 = vmatprep.subr.mxu0 0.0
    %802 = vmatpush1.msra.mxu0 0.0
    %803 = vmatprep.subr.mxu0 0.0
    %804 = vmatpush1.msra.mxu0 0.0
    %805 = vmatprep.subr.mxu0 0.0
    %806 = vmatpush1.msra.mxu0 0.0
    %807 = vmatprep.subr.mxu0 0.0
    %808 = vmatpush1.msra.mxu0 0.0
    %809 = vmatprep.subr.mxu0 0.0
    %810 = vmatpush1.msra.mxu0 0.0
    %811 = vmatprep.subr.mxu0 0.0
    %812 = vmatpush1.msra.mxu0 0.0
    %813 = vmatprep.subr.mxu0 0.0
    %814 = vmatpush1.msra.mxu0 0.0
    %815 = vmatprep.subr.mxu0 0.0
    %816 = vmatpush1.msra.mxu0 0.0
    %817 = vmatprep.subr.mxu0 0.0
    %818 = vmatpush1.msra.mxu0 0.0
    %819 = vmatprep.subr.mxu0 0.0
    %820 = vmatpush1.msra.mxu0 0.0
    %821 = vmatprep.subr.mxu0 0.0
    %822 = vmatpush1.msra.mxu0 0.0
    %823 = vmatprep.subr.mxu0 0.0
    %824 = vmatpush1.msra.mxu0 0.0
    %825 = vmatprep.subr.mxu0 0.0
    %826 = vmatpush1.msra.mxu0 0.0
    %827 = vmatprep.mubr.f32.mxu0 0.0
    %828 = vmatmul.mubr.f32.gmra.mrb[0].mxu0 %v201
    %v829 = vpop.f32.mrb[0].mxu0
    %v830 = vadd.f32 0.0, %v829
    %v831 = vpop.f32.mrb[0].mxu0
    %832 = vdwg.mxu0
    %833 = vmatprep.subr.mxu0 0.0
    %834 = vmatpush1.msra.mxu0 %v64
    %835 = vmatprep.subr.mxu0 0.0
    %836 = vmatpush1.msra.mxu0 %v65
    %837 = vmatprep.subr.mxu0 0.0
    %838 = vmatpush1.msra.mxu0 0.0
    %839 = vmatprep.subr.mxu0 0.0
    %840 = vmatpush1.msra.mxu0 0.0
    %841 = vmatprep.subr.mxu0 0.0
    %842 = vmatpush1.msra.mxu0 0.0
    %843 = vmatprep.subr.mxu0 0.0
    %844 = vmatpush1.msra.mxu0 0.0
    %845 = vmatprep.subr.mxu0 0.0
    %846 = vmatpush1.msra.mxu0 0.0
    %847 = vmatprep.subr.mxu0 0.0
    %848 = vmatpush1.msra.mxu0 0.0
    %849 = vmatprep.subr.mxu0 0.0
    %850 = vmatpush1.msra.mxu0 0.0
    %851 = vmatprep.subr.mxu0 0.0
    %852 = vmatpush1.msra.mxu0 0.0
    %853 = vmatprep.subr.mxu0 0.0
    %854 = vmatpush1.msra.mxu0 0.0
    %855 = vmatprep.subr.mxu0 0.0
    %856 = vmatpush1.msra.mxu0 0.0
    %857 = vmatprep.subr.mxu0 0.0
    %858 = vmatpush1.msra.mxu0 0.0
    %859 = vmatprep.subr.mxu0 0.0
    %860 = vmatpush1.msra.mxu0 0.0
    %861 = vmatprep.subr.mxu0 0.0
    %862 = vmatpush1.msra.mxu0 0.0
    %863 = vmatprep.subr.mxu0 0.0
    %864 = vmatpush1.msra.mxu0 0.0
    %865 = vmatprep.subr.mxu0 0.0
    %866 = vmatpush1.msra.mxu0 0.0
    %867 = vmatprep.subr.mxu0 0.0
    %868 = vmatpush1.msra.mxu0 0.0
    %869 = vmatprep.subr.mxu0 0.0
    %870 = vmatpush1.msra.mxu0 0.0
    %871 = vmatprep.subr.mxu0 0.0
    %872 = vmatpush1.msra.mxu0 0.0
    %873 = vmatprep.subr.mxu0 0.0
    %874 = vmatpush1.msra.mxu0 0.0
    %875 = vmatprep.subr.mxu0 0.0
    %876 = vmatpush1.msra.mxu0 0.0
    %877 = vmatprep.subr.mxu0 0.0
    %878 = vmatpush1.msra.mxu0 0.0
    %879 = vmatprep.subr.mxu0 0.0
    %880 = vmatpush1.msra.mxu0 0.0
    %881 = vmatprep.subr.mxu0 0.0
    %882 = vmatpush1.msra.mxu0 0.0
    %883 = vmatprep.subr.mxu0 0.0
    %884 = vmatpush1.msra.mxu0 0.0
    %885 = vmatprep.subr.mxu0 0.0
    %886 = vmatpush1.msra.mxu0 0.0
    %887 = vmatprep.subr.mxu0 0.0
    %888 = vmatpush1.msra.mxu0 0.0
    %889 = vmatprep.subr.mxu0 0.0
    %890 = vmatpush1.msra.mxu0 0.0
    %891 = vmatprep.subr.mxu0 0.0
    %892 = vmatpush1.msra.mxu0 0.0
    %893 = vmatprep.subr.mxu0 0.0
    %894 = vmatpush1.msra.mxu0 0.0
    %895 = vmatprep.subr.mxu0 0.0
    %896 = vmatpush1.msra.mxu0 0.0
    %897 = vmatprep.mubr.f32.mxu0 0.0
    %898 = vmatmul.mubr.f32.gmra.mrb[0].mxu0 %v201
    %v899 = vpop.f32.mrb[0].mxu0
    %v900 = vadd.f32 0.0, %v899
    %v901 = vpop.f32.mrb[0].mxu0
    %902 = vdwg.mxu0
    %903 = vmatprep.subr.mxu0 0.0
    %904 = vmatpush1.msra.mxu0 %v66
    %905 = vmatprep.subr.mxu0 0.0
    %906 = vmatpush1.msra.mxu0 %v67
    %907 = vmatprep.subr.mxu0 0.0
    %908 = vmatpush1.msra.mxu0 0.0
    %909 = vmatprep.subr.mxu0 0.0
    %910 = vmatpush1.msra.mxu0 0.0
    %911 = vmatprep.subr.mxu0 0.0
    %912 = vmatpush1.msra.mxu0 0.0
    %913 = vmatprep.subr.mxu0 0.0
    %914 = vmatpush1.msra.mxu0 0.0
    %915 = vmatprep.subr.mxu0 0.0
    %916 = vmatpush1.msra.mxu0 0.0
    %917 = vmatprep.subr.mxu0 0.0
    %918 = vmatpush1.msra.mxu0 0.0
    %919 = vmatprep.subr.mxu0 0.0
    %920 = vmatpush1.msra.mxu0 0.0
    %921 = vmatprep.subr.mxu0 0.0
    %922 = vmatpush1.msra.mxu0 0.0
    %923 = vmatprep.subr.mxu0 0.0
    %924 = vmatpush1.msra.mxu0 0.0
    %925 = vmatprep.subr.mxu0 0.0
    %926 = vmatpush1.msra.mxu0 0.0
    %927 = vmatprep.subr.mxu0 0.0
    %928 = vmatpush1.msra.mxu0 0.0
    %929 = vmatprep.subr.mxu0 0.0
    %930 = vmatpush1.msra.mxu0 0.0
    %931 = vmatprep.subr.mxu0 0.0
    %932 = vmatpush1.msra.mxu0 0.0
    %933 = vmatprep.subr.mxu0 0.0
    %934 = vmatpush1.msra.mxu0 0.0
    %935 = vmatprep.subr.mxu0 0.0
    %936 = vmatpush1.msra.mxu0 0.0
    %937 = vmatprep.subr.mxu0 0.0
    %938 = vmatpush1.msra.mxu0 0.0
    %939 = vmatprep.subr.mxu0 0.0
    %940 = vmatpush1.msra.mxu0 0.0
    %941 = vmatprep.subr.mxu0 0.0
    %942 = vmatpush1.msra.mxu0 0.0
    %943 = vmatprep.subr.mxu0 0.0
    %944 = vmatpush1.msra.mxu0 0.0
    %945 = vmatprep.subr.mxu0 0.0
    %946 = vmatpush1.msra.mxu0 0.0
    %947 = vmatprep.subr.mxu0 0.0
    %948 = vmatpush1.msra.mxu0 0.0
    %949 = vmatprep.subr.mxu0 0.0
    %950 = vmatpush1.msra.mxu0 0.0
    %951 = vmatprep.subr.mxu0 0.0
    %952 = vmatpush1.msra.mxu0 0.0
    %953 = vmatprep.subr.mxu0 0.0
    %954 = vmatpush1.msra.mxu0 0.0
    %955 = vmatprep.subr.mxu0 0.0
    %956 = vmatpush1.msra.mxu0 0.0
    %957 = vmatprep.subr.mxu0 0.0
    %958 = vmatpush1.msra.mxu0 0.0
    %959 = vmatprep.subr.mxu0 0.0
    %960 = vmatpush1.msra.mxu0 0.0
    %961 = vmatprep.subr.mxu0 0.0
    %962 = vmatpush1.msra.mxu0 0.0
    %963 = vmatprep.subr.mxu0 0.0
    %964 = vmatpush1.msra.mxu0 0.0
    %965 = vmatprep.subr.mxu0 0.0
    %966 = vmatpush1.msra.mxu0 0.0
    %967 = vmatprep.mubr.f32.mxu0 0.0
    %968 = vmatmul.mubr.f32.gmra.mrb[0].mxu0 %v201
    %v969 = vpop.f32.mrb[0].mxu0
    %v970 = vadd.f32 0.0, %v969
    %v971 = vpop.f32.mrb[0].mxu0
    %972 = vdwg.mxu0
    %973 = vmatprep.subr.mxu0 0.0
    %974 = vmatpush1.msra.mxu0 %v68
    %975 = vmatprep.subr.mxu0 0.0
    %976 = vmatpush1.msra.mxu0 %v69
    %977 = vmatprep.subr.mxu0 0.0
    %978 = vmatpush1.msra.mxu0 0.0
    %979 = vmatprep.subr.mxu0 0.0
    %980 = vmatpush1.msra.mxu0 0.0
    %981 = vmatprep.subr.mxu0 0.0
    %982 = vmatpush1.msra.mxu0 0.0
    %983 = vmatprep.subr.mxu0 0.0
    %984 = vmatpush1.msra.mxu0 0.0
    %985 = vmatprep.subr.mxu0 0.0
    %986 = vmatpush1.msra.mxu0 0.0
    %987 = vmatprep.subr.mxu0 0.0
    %988 = vmatpush1.msra.mxu0 0.0
    %989 = vmatprep.subr.mxu0 0.0
    %990 = vmatpush1.msra.mxu0 0.0
    %991 = vmatprep.subr.mxu0 0.0
    %992 = vmatpush1.msra.mxu0 0.0
    %993 = vmatprep.subr.mxu0 0.0
    %994 = vmatpush1.msra.mxu0 0.0
    %995 = vmatprep.subr.mxu0 0.0
    %996 = vmatpush1.msra.mxu0 0.0
    %997 = vmatprep.subr.mxu0 0.0
    %998 = vmatpush1.msra.mxu0 0.0
    %999 = vmatprep.subr.mxu0 0.0
    %1000 = vmatpush1.msra.mxu0 0.0
    %1001 = vmatprep.subr.mxu0 0.0
    %1002 = vmatpush1.msra.mxu0 0.0
    %1003 = vmatprep.subr.mxu0 0.0
    %1004 = vmatpush1.msra.mxu0 0.0
    %1005 = vmatprep.subr.mxu0 0.0
    %1006 = vmatpush1.msra.mxu0 0.0
    %1007 = vmatprep.subr.mxu0 0.0
    %1008 = vmatpush1.msra.mxu0 0.0
    %1009 = vmatprep.subr.mxu0 0.0
    %1010 = vmatpush1.msra.mxu0 0.0
    %1011 = vmatprep.subr.mxu0 0.0
    %1012 = vmatpush1.msra.mxu0 0.0
    %1013 = vmatprep.subr.mxu0 0.0
    %1014 = vmatpush1.msra.mxu0 0.0
    %1015 = vmatprep.subr.mxu0 0.0
    %1016 = vmatpush1.msra.mxu0 0.0
    %1017 = vmatprep.subr.mxu0 0.0
    %1018 = vmatpush1.msra.mxu0 0.0
    %1019 = vmatprep.subr.mxu0 0.0
    %1020 = vmatpush1.msra.mxu0 0.0
    %1021 = vmatprep.subr.mxu0 0.0
    %1022 = vmatpush1.msra.mxu0 0.0
    %1023 = vmatprep.subr.mxu0 0.0
    %1024 = vmatpush1.msra.mxu0 0.0
    %1025 = vmatprep.subr.mxu0 0.0
    %1026 = vmatpush1.msra.mxu0 0.0
    %1027 = vmatprep.subr.mxu0 0.0
    %1028 = vmatpush1.msra.mxu0 0.0
    %1029 = vmatprep.subr.mxu0 0.0
    %1030 = vmatpush1.msra.mxu0 0.0
    %1031 = vmatprep.subr.mxu0 0.0
    %1032 = vmatpush1.msra.mxu0 0.0
    %1033 = vmatprep.subr.mxu0 0.0
    %1034 = vmatpush1.msra.mxu0 0.0
    %1035 = vmatprep.subr.mxu0 0.0
    %1036 = vmatpush1.msra.mxu0 0.0
    %1037 = vmatprep.mubr.f32.mxu0 0.0
    %1038 = vmatmul.mubr.f32.gmra.mrb[0].mxu0 %v201
    %v1039 = vpop.f32.mrb[0].mxu0
    %v1040 = vadd.f32 0.0, %v1039
    %v1041 = vpop.f32.mrb[0].mxu0
    %1042 = vdwg.mxu0
    %1043 = vmatprep.subr.mxu0 0.0
    %1044 = vmatpush1.msra.mxu0 %v70
    %1045 = vmatprep.subr.mxu0 0.0
    %1046 = vmatpush1.msra.mxu0 %v71
    %1047 = vmatprep.subr.mxu0 0.0
    %1048 = vmatpush1.msra.mxu0 0.0
    %1049 = vmatprep.subr.mxu0 0.0
    %1050 = vmatpush1.msra.mxu0 0.0
    %1051 = vmatprep.subr.mxu0 0.0
    %1052 = vmatpush1.msra.mxu0 0.0
    %1053 = vmatprep.subr.mxu0 0.0
    %1054 = vmatpush1.msra.mxu0 0.0
    %1055 = vmatprep.subr.mxu0 0.0
    %1056 = vmatpush1.msra.mxu0 0.0
    %1057 = vmatprep.subr.mxu0 0.0
    %1058 = vmatpush1.msra.mxu0 0.0
    %1059 = vmatprep.subr.mxu0 0.0
    %1060 = vmatpush1.msra.mxu0 0.0
    %1061 = vmatprep.subr.mxu0 0.0
    %1062 = vmatpush1.msra.mxu0 0.0
    %1063 = vmatprep.subr.mxu0 0.0
    %1064 = vmatpush1.msra.mxu0 0.0
    %1065 = vmatprep.subr.mxu0 0.0
    %1066 = vmatpush1.msra.mxu0 0.0
    %1067 = vmatprep.subr.mxu0 0.0
    %1068 = vmatpush1.msra.mxu0 0.0
    %1069 = vmatprep.subr.mxu0 0.0
    %1070 = vmatpush1.msra.mxu0 0.0
    %1071 = vmatprep.subr.mxu0 0.0
    %1072 = vmatpush1.msra.mxu0 0.0
    %1073 = vmatprep.subr.mxu0 0.0
    %1074 = vmatpush1.msra.mxu0 0.0
    %1075 = vmatprep.subr.mxu0 0.0
    %1076 = vmatpush1.msra.mxu0 0.0
    %1077 = vmatprep.subr.mxu0 0.0
    %1078 = vmatpush1.msra.mxu0 0.0
    %1079 = vmatprep.subr.mxu0 0.0
    %1080 = vmatpush1.msra.mxu0 0.0
    %1081 = vmatprep.subr.mxu0 0.0
    %1082 = vmatpush1.msra.mxu0 0.0
    %1083 = vmatprep.subr.mxu0 0.0
    %1084 = vmatpush1.msra.mxu0 0.0
    %1085 = vmatprep.subr.mxu0 0.0
    %1086 = vmatpush1.msra.mxu0 0.0
    %1087 = vmatprep.subr.mxu0 0.0
    %1088 = vmatpush1.msra.mxu0 0.0
    %1089 = vmatprep.subr.mxu0 0.0
    %1090 = vmatpush1.msra.mxu0 0.0
    %1091 = vmatprep.subr.mxu0 0.0
    %1092 = vmatpush1.msra.mxu0 0.0
    %1093 = vmatprep.subr.mxu0 0.0
    %1094 = vmatpush1.msra.mxu0 0.0
    %1095 = vmatprep.subr.mxu0 0.0
    %1096 = vmatpush1.msra.mxu0 0.0
    %1097 = vmatprep.subr.mxu0 0.0
    %1098 = vmatpush1.msra.mxu0 0.0
    %1099 = vmatprep.subr.mxu0 0.0
    %1100 = vmatpush1.msra.mxu0 0.0
    %1101 = vmatprep.subr.mxu0 0.0
    %1102 = vmatpush1.msra.mxu0 0.0
    %1103 = vmatprep.subr.mxu0 0.0
    %1104 = vmatpush1.msra.mxu0 0.0
    %1105 = vmatprep.subr.mxu0 0.0
    %1106 = vmatpush1.msra.mxu0 0.0
    %1107 = vmatprep.mubr.f32.mxu0 0.0
    %1108 = vmatmul.mubr.f32.gmra.mrb[0].mxu0 %v201
    %v1109 = vpop.f32.mrb[0].mxu0
    %v1110 = vadd.f32 0.0, %v1109
    %v1111 = vpop.f32.mrb[0].mxu0
    %1112 = vdwg.mxu0
    %1113 = vmatprep.subr.mxu0 0.0
    %1114 = vmatpush1.msra.mxu0 %v72
    %1115 = vmatprep.subr.mxu0 0.0
    %1116 = vmatpush1.msra.mxu0 %v73
    %1117 = vmatprep.subr.mxu0 0.0
    %1118 = vmatpush1.msra.mxu0 0.0
    %1119 = vmatprep.subr.mxu0 0.0
    %1120 = vmatpush1.msra.mxu0 0.0
    %1121 = vmatprep.subr.mxu0 0.0
    %1122 = vmatpush1.msra.mxu0 0.0
    %1123 = vmatprep.subr.mxu0 0.0
    %1124 = vmatpush1.msra.mxu0 0.0
    %1125 = vmatprep.subr.mxu0 0.0
    %1126 = vmatpush1.msra.mxu0 0.0
    %1127 = vmatprep.subr.mxu0 0.0
    %1128 = vmatpush1.msra.mxu0 0.0
    %1129 = vmatprep.subr.mxu0 0.0
    %1130 = vmatpush1.msra.mxu0 0.0
    %1131 = vmatprep.subr.mxu0 0.0
    %1132 = vmatpush1.msra.mxu0 0.0
    %1133 = vmatprep.subr.mxu0 0.0
    %1134 = vmatpush1.msra.mxu0 0.0
    %1135 = vmatprep.subr.mxu0 0.0
    %1136 = vmatpush1.msra.mxu0 0.0
    %1137 = vmatprep.subr.mxu0 0.0
    %1138 = vmatpush1.msra.mxu0 0.0
    %1139 = vmatprep.subr.mxu0 0.0
    %1140 = vmatpush1.msra.mxu0 0.0
    %1141 = vmatprep.subr.mxu0 0.0
    %1142 = vmatpush1.msra.mxu0 0.0
    %1143 = vmatprep.subr.mxu0 0.0
    %1144 = vmatpush1.msra.mxu0 0.0
    %1145 = vmatprep.subr.mxu0 0.0
    %1146 = vmatpush1.msra.mxu0 0.0
    %1147 = vmatprep.subr.mxu0 0.0
    %1148 = vmatpush1.msra.mxu0 0.0
    %1149 = vmatprep.subr.mxu0 0.0
    %1150 = vmatpush1.msra.mxu0 0.0
    %1151 = vmatprep.subr.mxu0 0.0
    %1152 = vmatpush1.msra.mxu0 0.0
    %1153 = vmatprep.subr.mxu0 0.0
    %1154 = vmatpush1.msra.mxu0 0.0
    %1155 = vmatprep.subr.mxu0 0.0
    %1156 = vmatpush1.msra.mxu0 0.0
    %1157 = vmatprep.subr.mxu0 0.0
    %1158 = vmatpush1.msra.mxu0 0.0
    %1159 = vmatprep.subr.mxu0 0.0
    %1160 = vmatpush1.msra.mxu0 0.0
    %1161 = vmatprep.subr.mxu0 0.0
    %1162 = vmatpush1.msra.mxu0 0.0
    %1163 = vmatprep.subr.mxu0 0.0
    %1164 = vmatpush1.msra.mxu0 0.0
    %1165 = vmatprep.subr.mxu0 0.0
    %1166 = vmatpush1.msra.mxu0 0.0
    %1167 = vmatprep.subr.mxu0 0.0
    %1168 = vmatpush1.msra.mxu0 0.0
    %1169 = vmatprep.subr.mxu0 0.0
    %1170 = vmatpush1.msra.mxu0 0.0
    %1171 = vmatprep.subr.mxu0 0.0
    %1172 = vmatpush1.msra.mxu0 0.0
    %1173 = vmatprep.subr.mxu0 0.0
    %1174 = vmatpush1.msra.mxu0 0.0
    %1175 = vmatprep.subr.mxu0 0.0
    %1176 = vmatpush1.msra.mxu0 0.0
    %1177 = vmatprep.mubr.f32.mxu0 0.0
    %1178 = vmatmul.mubr.f32.gmra.mrb[0].mxu0 %v201
    %v1179 = vpop.f32.mrb[0].mxu0
    %v1180 = vadd.f32 0.0, %v1179
    %v1181 = vpop.f32.mrb[0].mxu0
    %1182 = vdwg.mxu0
    %1183 = vmatprep.subr.mxu0 0.0
    %1184 = vmatpush1.msra.mxu0 %v74
    %1185 = vmatprep.subr.mxu0 0.0
    %1186 = vmatpush1.msra.mxu0 %v75
    %1187 = vmatprep.subr.mxu0 0.0
    %1188 = vmatpush1.msra.mxu0 0.0
    %1189 = vmatprep.subr.mxu0 0.0
    %1190 = vmatpush1.msra.mxu0 0.0
    %1191 = vmatprep.subr.mxu0 0.0
    %1192 = vmatpush1.msra.mxu0 0.0
    %1193 = vmatprep.subr.mxu0 0.0
    %1194 = vmatpush1.msra.mxu0 0.0
    %1195 = vmatprep.subr.mxu0 0.0
    %1196 = vmatpush1.msra.mxu0 0.0
    %1197 = vmatprep.subr.mxu0 0.0
    %1198 = vmatpush1.msra.mxu0 0.0
    %1199 = vmatprep.subr.mxu0 0.0
    %1200 = vmatpush1.msra.mxu0 0.0
    %1201 = vmatprep.subr.mxu0 0.0
    %1202 = vmatpush1.msra.mxu0 0.0
    %1203 = vmatprep.subr.mxu0 0.0
    %1204 = vmatpush1.msra.mxu0 0.0
    %1205 = vmatprep.subr.mxu0 0.0
    %1206 = vmatpush1.msra.mxu0 0.0
    %1207 = vmatprep.subr.mxu0 0.0
    %1208 = vmatpush1.msra.mxu0 0.0
    %1209 = vmatprep.subr.mxu0 0.0
    %1210 = vmatpush1.msra.mxu0 0.0
    %1211 = vmatprep.subr.mxu0 0.0
    %1212 = vmatpush1.msra.mxu0 0.0
    %1213 = vmatprep.subr.mxu0 0.0
    %1214 = vmatpush1.msra.mxu0 0.0
    %1215 = vmatprep.subr.mxu0 0.0
    %1216 = vmatpush1.msra.mxu0 0.0
    %1217 = vmatprep.subr.mxu0 0.0
    %1218 = vmatpush1.msra.mxu0 0.0
    %1219 = vmatprep.subr.mxu0 0.0
    %1220 = vmatpush1.msra.mxu0 0.0
    %1221 = vmatprep.subr.mxu0 0.0
    %1222 = vmatpush1.msra.mxu0 0.0
    %1223 = vmatprep.subr.mxu0 0.0
    %1224 = vmatpush1.msra.mxu0 0.0
    %1225 = vmatprep.subr.mxu0 0.0
    %1226 = vmatpush1.msra.mxu0 0.0
    %1227 = vmatprep.subr.mxu0 0.0
    %1228 = vmatpush1.msra.mxu0 0.0
    %1229 = vmatprep.subr.mxu0 0.0
    %1230 = vmatpush1.msra.mxu0 0.0
    %1231 = vmatprep.subr.mxu0 0.0
    %1232 = vmatpush1.msra.mxu0 0.0
    %1233 = vmatprep.subr.mxu0 0.0
    %1234 = vmatpush1.msra.mxu0 0.0
    %1235 = vmatprep.subr.mxu0 0.0
    %1236 = vmatpush1.msra.mxu0 0.0
    %1237 = vmatprep.subr.mxu0 0.0
    %1238 = vmatpush1.msra.mxu0 0.0
    %1239 = vmatprep.subr.mxu0 0.0
    %1240 = vmatpush1.msra.mxu0 0.0
    %1241 = vmatprep.subr.mxu0 0.0
    %1242 = vmatpush1.msra.mxu0 0.0
    %1243 = vmatprep.subr.mxu0 0.0
    %1244 = vmatpush1.msra.mxu0 0.0
    %1245 = vmatprep.subr.mxu0 0.0
    %1246 = vmatpush1.msra.mxu0 0.0
    %1247 = vmatprep.mubr.f32.mxu0 0.0
    %1248 = vmatmul.mubr.f32.gmra.mrb[0].mxu0 %v201
    %v1249 = vpop.f32.mrb[0].mxu0
    %v1250 = vadd.f32 0.0, %v1249
    %v1251 = vpop.f32.mrb[0].mxu0
    %1252 = vdwg.mxu0
    %1253 = vmatprep.subr.mxu0 0.0
    %1254 = vmatpush1.msra.mxu0 %v76
    %1255 = vmatprep.subr.mxu0 0.0
    %1256 = vmatpush1.msra.mxu0 %v77
    %1257 = vmatprep.subr.mxu0 0.0
    %1258 = vmatpush1.msra.mxu0 0.0
    %1259 = vmatprep.subr.mxu0 0.0
    %1260 = vmatpush1.msra.mxu0 0.0
    %1261 = vmatprep.subr.mxu0 0.0
    %1262 = vmatpush1.msra.mxu0 0.0
    %1263 = vmatprep.subr.mxu0 0.0
    %1264 = vmatpush1.msra.mxu0 0.0
    %1265 = vmatprep.subr.mxu0 0.0
    %1266 = vmatpush1.msra.mxu0 0.0
    %1267 = vmatprep.subr.mxu0 0.0
    %1268 = vmatpush1.msra.mxu0 0.0
    %1269 = vmatprep.subr.mxu0 0.0
    %1270 = vmatpush1.msra.mxu0 0.0
    %1271 = vmatprep.subr.mxu0 0.0
    %1272 = vmatpush1.msra.mxu0 0.0
    %1273 = vmatprep.subr.mxu0 0.0
    %1274 = vmatpush1.msra.mxu0 0.0
    %1275 = vmatprep.subr.mxu0 0.0
    %1276 = vmatpush1.msra.mxu0 0.0
    %1277 = vmatprep.subr.mxu0 0.0
    %1278 = vmatpush1.msra.mxu0 0.0
    %1279 = vmatprep.subr.mxu0 0.0
    %1280 = vmatpush1.msra.mxu0 0.0
    %1281 = vmatprep.subr.mxu0 0.0
    %1282 = vmatpush1.msra.mxu0 0.0
    %1283 = vmatprep.subr.mxu0 0.0
    %1284 = vmatpush1.msra.mxu0 0.0
    %1285 = vmatprep.subr.mxu0 0.0
    %1286 = vmatpush1.msra.mxu0 0.0
    %1287 = vmatprep.subr.mxu0 0.0
    %1288 = vmatpush1.msra.mxu0 0.0
    %1289 = vmatprep.subr.mxu0 0.0
    %1290 = vmatpush1.msra.mxu0 0.0
    %1291 = vmatprep.subr.mxu0 0.0
    %1292 = vmatpush1.msra.mxu0 0.0
    %1293 = vmatprep.subr.mxu0 0.0
    %1294 = vmatpush1.msra.mxu0 0.0
    %1295 = vmatprep.subr.mxu0 0.0
    %1296 = vmatpush1.msra.mxu0 0.0
    %1297 = vmatprep.subr.mxu0 0.0
    %1298 = vmatpush1.msra.mxu0 0.0
    %1299 = vmatprep.subr.mxu0 0.0
    %1300 = vmatpush1.msra.mxu0 0.0
    %1301 = vmatprep.subr.mxu0 0.0
    %1302 = vmatpush1.msra.mxu0 0.0
    %1303 = vmatprep.subr.mxu0 0.0
    %1304 = vmatpush1.msra.mxu0 0.0
    %1305 = vmatprep.subr.mxu0 0.0
    %1306 = vmatpush1.msra.mxu0 0.0
    %1307 = vmatprep.subr.mxu0 0.0
    %1308 = vmatpush1.msra.mxu0 0.0
    %1309 = vmatprep.subr.mxu0 0.0
    %1310 = vmatpush1.msra.mxu0 0.0
    %1311 = vmatprep.subr.mxu0 0.0
    %1312 = vmatpush1.msra.mxu0 0.0
    %1313 = vmatprep.subr.mxu0 0.0
    %1314 = vmatpush1.msra.mxu0 0.0
    %1315 = vmatprep.subr.mxu0 0.0
    %1316 = vmatpush1.msra.mxu0 0.0
    %1317 = vmatprep.mubr.f32.mxu0 0.0
    %1318 = vmatmul.mubr.f32.gmra.mrb[0].mxu0 %v201
    %v1319 = vpop.f32.mrb[0].mxu0
    %v1320 = vadd.f32 0.0, %v1319
    %v1321 = vpop.f32.mrb[0].mxu0
    %1322 = vdwg.mxu0
    %1323 = vmatprep.subr.mxu0 0.0
    %1324 = vmatpush1.msra.mxu0 %v151
    %1325 = vmatprep.subr.mxu0 0.0
    %1326 = vmatpush1.msra.mxu0 %v152
    %1327 = vmatprep.subr.mxu0 0.0
    %1328 = vmatpush1.msra.mxu0 0.0
    %1329 = vmatprep.subr.mxu0 0.0
    %1330 = vmatpush1.msra.mxu0 0.0
    %1331 = vmatprep.subr.mxu0 0.0
    %1332 = vmatpush1.msra.mxu0 0.0
    %1333 = vmatprep.subr.mxu0 0.0
    %1334 = vmatpush1.msra.mxu0 0.0
    %1335 = vmatprep.subr.mxu0 0.0
    %1336 = vmatpush1.msra.mxu0 0.0
    %1337 = vmatprep.subr.mxu0 0.0
    %1338 = vmatpush1.msra.mxu0 0.0
    %1339 = vmatprep.subr.mxu0 0.0
    %1340 = vmatpush1.msra.mxu0 0.0
    %1341 = vmatprep.subr.mxu0 0.0
    %1342 = vmatpush1.msra.mxu0 0.0
    %1343 = vmatprep.subr.mxu0 0.0
    %1344 = vmatpush1.msra.mxu0 0.0
    %1345 = vmatprep.subr.mxu0 0.0
    %1346 = vmatpush1.msra.mxu0 0.0
    %1347 = vmatprep.subr.mxu0 0.0
    %1348 = vmatpush1.msra.mxu0 0.0
    %1349 = vmatprep.subr.mxu0 0.0
    %1350 = vmatpush1.msra.mxu0 0.0
    %1351 = vmatprep.subr.mxu0 0.0
    %1352 = vmatpush1.msra.mxu0 0.0
    %1353 = vmatprep.subr.mxu0 0.0
    %1354 = vmatpush1.msra.mxu0 0.0
    %1355 = vmatprep.subr.mxu0 0.0
    %1356 = vmatpush1.msra.mxu0 0.0
    %1357 = vmatprep.subr.mxu0 0.0
    %1358 = vmatpush1.msra.mxu0 0.0
    %1359 = vmatprep.subr.mxu0 0.0
    %1360 = vmatpush1.msra.mxu0 0.0
    %1361 = vmatprep.subr.mxu0 0.0
    %1362 = vmatpush1.msra.mxu0 0.0
    %1363 = vmatprep.subr.mxu0 0.0
    %1364 = vmatpush1.msra.mxu0 0.0
    %1365 = vmatprep.subr.mxu0 0.0
    %1366 = vmatpush1.msra.mxu0 0.0
    %1367 = vmatprep.subr.mxu0 0.0
    %1368 = vmatpush1.msra.mxu0 0.0
    %1369 = vmatprep.subr.mxu0 0.0
    %1370 = vmatpush1.msra.mxu0 0.0
    %1371 = vmatprep.subr.mxu0 0.0
    %1372 = vmatpush1.msra.mxu0 0.0
    %1373 = vmatprep.subr.mxu0 0.0
    %1374 = vmatpush1.msra.mxu0 0.0
    %1375 = vmatprep.subr.mxu0 0.0
    %1376 = vmatpush1.msra.mxu0 0.0
    %1377 = vmatprep.subr.mxu0 0.0
    %1378 = vmatpush1.msra.mxu0 0.0
    %1379 = vmatprep.subr.mxu0 0.0
    %1380 = vmatpush1.msra.mxu0 0.0
    %1381 = vmatprep.subr.mxu0 0.0
    %1382 = vmatpush1.msra.mxu0 0.0
    %1383 = vmatprep.subr.mxu0 0.0
    %1384 = vmatpush1.msra.mxu0 0.0
    %1385 = vmatprep.subr.mxu0 0.0
    %1386 = vmatpush1.msra.mxu0 0.0
    %1387 = vmatprep.mubr.f32.mxu0 0.0
    %1388 = vmatmul.mubr.f32.gmra.mrb[0].mxu0 %v201
    %v1389 = vpop.f32.mrb[0].mxu0
    %v1390 = vadd.f32 0.0, %v1389
    %v1391 = vpop.f32.mrb[0].mxu0
    %1392 = vdwg.mxu0
    %1393 = vmatprep.subr.mxu0 0.0
    %1394 = vmatpush1.msra.mxu0 %v153
    %1395 = vmatprep.subr.mxu0 0.0
    %1396 = vmatpush1.msra.mxu0 %v154
    %1397 = vmatprep.subr.mxu0 0.0
    %1398 = vmatpush1.msra.mxu0 0.0
    %1399 = vmatprep.subr.mxu0 0.0
    %1400 = vmatpush1.msra.mxu0 0.0
    %1401 = vmatprep.subr.mxu0 0.0
    %1402 = vmatpush1.msra.mxu0 0.0
    %1403 = vmatprep.subr.mxu0 0.0
    %1404 = vmatpush1.msra.mxu0 0.0
    %1405 = vmatprep.subr.mxu0 0.0
    %1406 = vmatpush1.msra.mxu0 0.0
    %1407 = vmatprep.subr.mxu0 0.0
    %1408 = vmatpush1.msra.mxu0 0.0
    %1409 = vmatprep.subr.mxu0 0.0
    %1410 = vmatpush1.msra.mxu0 0.0
    %1411 = vmatprep.subr.mxu0 0.0
    %1412 = vmatpush1.msra.mxu0 0.0
    %1413 = vmatprep.subr.mxu0 0.0
    %1414 = vmatpush1.msra.mxu0 0.0
    %1415 = vmatprep.subr.mxu0 0.0
    %1416 = vmatpush1.msra.mxu0 0.0
    %1417 = vmatprep.subr.mxu0 0.0
    %1418 = vmatpush1.msra.mxu0 0.0
    %1419 = vmatprep.subr.mxu0 0.0
    %1420 = vmatpush1.msra.mxu0 0.0
    %1421 = vmatprep.subr.mxu0 0.0
    %1422 = vmatpush1.msra.mxu0 0.0
    %1423 = vmatprep.subr.mxu0 0.0
    %1424 = vmatpush1.msra.mxu0 0.0
    %1425 = vmatprep.subr.mxu0 0.0
    %1426 = vmatpush1.msra.mxu0 0.0
    %1427 = vmatprep.subr.mxu0 0.0
    %1428 = vmatpush1.msra.mxu0 0.0
    %1429 = vmatprep.subr.mxu0 0.0
    %1430 = vmatpush1.msra.mxu0 0.0
    %1431 = vmatprep.subr.mxu0 0.0
    %1432 = vmatpush1.msra.mxu0 0.0
    %1433 = vmatprep.subr.mxu0 0.0
    %1434 = vmatpush1.msra.mxu0 0.0
    %1435 = vmatprep.subr.mxu0 0.0
    %1436 = vmatpush1.msra.mxu0 0.0
    %1437 = vmatprep.subr.mxu0 0.0
    %1438 = vmatpush1.msra.mxu0 0.0
    %1439 = vmatprep.subr.mxu0 0.0
    %1440 = vmatpush1.msra.mxu0 0.0
    %1441 = vmatprep.subr.mxu0 0.0
    %1442 = vmatpush1.msra.mxu0 0.0
    %1443 = vmatprep.subr.mxu0 0.0
    %1444 = vmatpush1.msra.mxu0 0.0
    %1445 = vmatprep.subr.mxu0 0.0
    %1446 = vmatpush1.msra.mxu0 0.0
    %1447 = vmatprep.subr.mxu0 0.0
    %1448 = vmatpush1.msra.mxu0 0.0
    %1449 = vmatprep.subr.mxu0 0.0
    %1450 = vmatpush1.msra.mxu0 0.0
    %1451 = vmatprep.subr.mxu0 0.0
    %1452 = vmatpush1.msra.mxu0 0.0
    %1453 = vmatprep.subr.mxu0 0.0
    %1454 = vmatpush1.msra.mxu0 0.0
    %1455 = vmatprep.subr.mxu0 0.0
    %1456 = vmatpush1.msra.mxu0 0.0
    %1457 = vmatprep.mubr.f32.mxu0 0.0
    %1458 = vmatmul.mubr.f32.gmra.mrb[0].mxu0 %v201
    %v1459 = vpop.f32.mrb[0].mxu0
    %v1460 = vadd.f32 0.0, %v1459
    %v1461 = vpop.f32.mrb[0].mxu0
    %1462 = vdwg.mxu0
    %1463 = vmatprep.subr.mxu0 0.0
    %1464 = vmatpush1.msra.mxu0 %v155
    %1465 = vmatprep.subr.mxu0 0.0
    %1466 = vmatpush1.msra.mxu0 %v156
    %1467 = vmatprep.subr.mxu0 0.0
    %1468 = vmatpush1.msra.mxu0 0.0
    %1469 = vmatprep.subr.mxu0 0.0
    %1470 = vmatpush1.msra.mxu0 0.0
    %1471 = vmatprep.subr.mxu0 0.0
    %1472 = vmatpush1.msra.mxu0 0.0
    %1473 = vmatprep.subr.mxu0 0.0
    %1474 = vmatpush1.msra.mxu0 0.0
    %1475 = vmatprep.subr.mxu0 0.0
    %1476 = vmatpush1.msra.mxu0 0.0
    %1477 = vmatprep.subr.mxu0 0.0
    %1478 = vmatpush1.msra.mxu0 0.0
    %1479 = vmatprep.subr.mxu0 0.0
    %1480 = vmatpush1.msra.mxu0 0.0
    %1481 = vmatprep.subr.mxu0 0.0
    %1482 = vmatpush1.msra.mxu0 0.0
    %1483 = vmatprep.subr.mxu0 0.0
    %1484 = vmatpush1.msra.mxu0 0.0
    %1485 = vmatprep.subr.mxu0 0.0
    %1486 = vmatpush1.msra.mxu0 0.0
    %1487 = vmatprep.subr.mxu0 0.0
    %1488 = vmatpush1.msra.mxu0 0.0
    %1489 = vmatprep.subr.mxu0 0.0
    %1490 = vmatpush1.msra.mxu0 0.0
    %1491 = vmatprep.subr.mxu0 0.0
    %1492 = vmatpush1.msra.mxu0 0.0
    %1493 = vmatprep.subr.mxu0 0.0
    %1494 = vmatpush1.msra.mxu0 0.0
    %1495 = vmatprep.subr.mxu0 0.0
    %1496 = vmatpush1.msra.mxu0 0.0
    %1497 = vmatprep.subr.mxu0 0.0
    %1498 = vmatpush1.msra.mxu0 0.0
    %1499 = vmatprep.subr.mxu0 0.0
    %1500 = vmatpush1.msra.mxu0 0.0
    %1501 = vmatprep.subr.mxu0 0.0
    %1502 = vmatpush1.msra.mxu0 0.0
    %1503 = vmatprep.subr.mxu0 0.0
    %1504 = vmatpush1.msra.mxu0 0.0
    %1505 = vmatprep.subr.mxu0 0.0
    %1506 = vmatpush1.msra.mxu0 0.0
    %1507 = vmatprep.subr.mxu0 0.0
    %1508 = vmatpush1.msra.mxu0 0.0
    %1509 = vmatprep.subr.mxu0 0.0
    %1510 = vmatpush1.msra.mxu0 0.0
    %1511 = vmatprep.subr.mxu0 0.0
    %1512 = vmatpush1.msra.mxu0 0.0
    %1513 = vmatprep.subr.mxu0 0.0
    %1514 = vmatpush1.msra.mxu0 0.0
    %1515 = vmatprep.subr.mxu0 0.0
    %1516 = vmatpush1.msra.mxu0 0.0
    %1517 = vmatprep.subr.mxu0 0.0
    %1518 = vmatpush1.msra.mxu0 0.0
    %1519 = vmatprep.subr.mxu0 0.0
    %1520 = vmatpush1.msra.mxu0 0.0
    %1521 = vmatprep.subr.mxu0 0.0
    %1522 = vmatpush1.msra.mxu0 0.0
    %1523 = vmatprep.subr.mxu0 0.0
    %1524 = vmatpush1.msra.mxu0 0.0
    %1525 = vmatprep.subr.mxu0 0.0
    %1526 = vmatpush1.msra.mxu0 0.0
    %1527 = vmatprep.mubr.f32.mxu0 0.0
    %1528 = vmatmul.mubr.f32.gmra.mrb[0].mxu0 %v201
    %v1529 = vpop.f32.mrb[0].mxu0
    %v1530 = vadd.f32 0.0, %v1529
    %v1531 = vpop.f32.mrb[0].mxu0
    %1532 = vdwg.mxu0
    %1533 = vmatprep.subr.mxu0 0.0
    %1534 = vmatpush1.msra.mxu0 %v157
    %1535 = vmatprep.subr.mxu0 0.0
    %1536 = vmatpush1.msra.mxu0 %v158
    %1537 = vmatprep.subr.mxu0 0.0
    %1538 = vmatpush1.msra.mxu0 0.0
    %1539 = vmatprep.subr.mxu0 0.0
    %1540 = vmatpush1.msra.mxu0 0.0
    %1541 = vmatprep.subr.mxu0 0.0
    %1542 = vmatpush1.msra.mxu0 0.0
    %1543 = vmatprep.subr.mxu0 0.0
    %1544 = vmatpush1.msra.mxu0 0.0
    %1545 = vmatprep.subr.mxu0 0.0
    %1546 = vmatpush1.msra.mxu0 0.0
    %1547 = vmatprep.subr.mxu0 0.0
    %1548 = vmatpush1.msra.mxu0 0.0
    %1549 = vmatprep.subr.mxu0 0.0
    %1550 = vmatpush1.msra.mxu0 0.0
    %1551 = vmatprep.subr.mxu0 0.0
    %1552 = vmatpush1.msra.mxu0 0.0
    %1553 = vmatprep.subr.mxu0 0.0
    %1554 = vmatpush1.msra.mxu0 0.0
    %1555 = vmatprep.subr.mxu0 0.0
    %1556 = vmatpush1.msra.mxu0 0.0
    %1557 = vmatprep.subr.mxu0 0.0
    %1558 = vmatpush1.msra.mxu0 0.0
    %1559 = vmatprep.subr.mxu0 0.0
    %1560 = vmatpush1.msra.mxu0 0.0
    %1561 = vmatprep.subr.mxu0 0.0
    %1562 = vmatpush1.msra.mxu0 0.0
    %1563 = vmatprep.subr.mxu0 0.0
    %1564 = vmatpush1.msra.mxu0 0.0
    %1565 = vmatprep.subr.mxu0 0.0
    %1566 = vmatpush1.msra.mxu0 0.0
    %1567 = vmatprep.subr.mxu0 0.0
    %1568 = vmatpush1.msra.mxu0 0.0
    %1569 = vmatprep.subr.mxu0 0.0
    %1570 = vmatpush1.msra.mxu0 0.0
    %1571 = vmatprep.subr.mxu0 0.0
    %1572 = vmatpush1.msra.mxu0 0.0
    %1573 = vmatprep.subr.mxu0 0.0
    %1574 = vmatpush1.msra.mxu0 0.0
    %1575 = vmatprep.subr.mxu0 0.0
    %1576 = vmatpush1.msra.mxu0 0.0
    %1577 = vmatprep.subr.mxu0 0.0
    %1578 = vmatpush1.msra.mxu0 0.0
    %1579 = vmatprep.subr.mxu0 0.0
    %1580 = vmatpush1.msra.mxu0 0.0
    %1581 = vmatprep.subr.mxu0 0.0
    %1582 = vmatpush1.msra.mxu0 0.0
    %1583 = vmatprep.subr.mxu0 0.0
    %1584 = vmatpush1.msra.mxu0 0.0
    %1585 = vmatprep.subr.mxu0 0.0
    %1586 = vmatpush1.msra.mxu0 0.0
    %1587 = vmatprep.subr.mxu0 0.0
    %1588 = vmatpush1.msra.mxu0 0.0
    %1589 = vmatprep.subr.mxu0 0.0
    %1590 = vmatpush1.msra.mxu0 0.0
    %1591 = vmatprep.subr.mxu0 0.0
    %1592 = vmatpush1.msra.mxu0 0.0
    %1593 = vmatprep.subr.mxu0 0.0
    %1594 = vmatpush1.msra.mxu0 0.0
    %1595 = vmatprep.subr.mxu0 0.0
    %1596 = vmatpush1.msra.mxu0 0.0
    %1597 = vmatprep.mubr.f32.mxu0 0.0
    %1598 = vmatmul.mubr.f32.gmra.mrb[0].mxu0 %v201
    %v1599 = vpop.f32.mrb[0].mxu0
    %v1600 = vadd.f32 0.0, %v1599
    %v1601 = vpop.f32.mrb[0].mxu0
    %1602 = vdwg.mxu0
    %1603 = vmatprep.subr.mxu0 0.0
    %1604 = vmatpush1.msra.mxu0 %v159
    %1605 = vmatprep.subr.mxu0 0.0
    %1606 = vmatpush1.msra.mxu0 %v160
    %1607 = vmatprep.subr.mxu0 0.0
    %1608 = vmatpush1.msra.mxu0 0.0
    %1609 = vmatprep.subr.mxu0 0.0
    %1610 = vmatpush1.msra.mxu0 0.0
    %1611 = vmatprep.subr.mxu0 0.0
    %1612 = vmatpush1.msra.mxu0 0.0
    %1613 = vmatprep.subr.mxu0 0.0
    %1614 = vmatpush1.msra.mxu0 0.0
    %1615 = vmatprep.subr.mxu0 0.0
    %1616 = vmatpush1.msra.mxu0 0.0
    %1617 = vmatprep.subr.mxu0 0.0
    %1618 = vmatpush1.msra.mxu0 0.0
    %1619 = vmatprep.subr.mxu0 0.0
    %1620 = vmatpush1.msra.mxu0 0.0
    %1621 = vmatprep.subr.mxu0 0.0
    %1622 = vmatpush1.msra.mxu0 0.0
    %1623 = vmatprep.subr.mxu0 0.0
    %1624 = vmatpush1.msra.mxu0 0.0
    %1625 = vmatprep.subr.mxu0 0.0
    %1626 = vmatpush1.msra.mxu0 0.0
    %1627 = vmatprep.subr.mxu0 0.0
    %1628 = vmatpush1.msra.mxu0 0.0
    %1629 = vmatprep.subr.mxu0 0.0
    %1630 = vmatpush1.msra.mxu0 0.0
    %1631 = vmatprep.subr.mxu0 0.0
    %1632 = vmatpush1.msra.mxu0 0.0
    %1633 = vmatprep.subr.mxu0 0.0
    %1634 = vmatpush1.msra.mxu0 0.0
    %1635 = vmatprep.subr.mxu0 0.0
    %1636 = vmatpush1.msra.mxu0 0.0
    %1637 = vmatprep.subr.mxu0 0.0
    %1638 = vmatpush1.msra.mxu0 0.0
    %1639 = vmatprep.subr.mxu0 0.0
    %1640 = vmatpush1.msra.mxu0 0.0
    %1641 = vmatprep.subr.mxu0 0.0
    %1642 = vmatpush1.msra.mxu0 0.0
    %1643 = vmatprep.subr.mxu0 0.0
    %1644 = vmatpush1.msra.mxu0 0.0
    %1645 = vmatprep.subr.mxu0 0.0
    %1646 = vmatpush1.msra.mxu0 0.0
    %1647 = vmatprep.subr.mxu0 0.0
    %1648 = vmatpush1.msra.mxu0 0.0
    %1649 = vmatprep.subr.mxu0 0.0
    %1650 = vmatpush1.msra.mxu0 0.0
    %1651 = vmatprep.subr.mxu0 0.0
    %1652 = vmatpush1.msra.mxu0 0.0
    %1653 = vmatprep.subr.mxu0 0.0
    %1654 = vmatpush1.msra.mxu0 0.0
    %1655 = vmatprep.subr.mxu0 0.0
    %1656 = vmatpush1.msra.mxu0 0.0
    %1657 = vmatprep.subr.mxu0 0.0
    %1658 = vmatpush1.msra.mxu0 0.0
    %1659 = vmatprep.subr.mxu0 0.0
    %1660 = vmatpush1.msra.mxu0 0.0
    %1661 = vmatprep.subr.mxu0 0.0
    %1662 = vmatpush1.msra.mxu0 0.0
    %1663 = vmatprep.subr.mxu0 0.0
    %1664 = vmatpush1.msra.mxu0 0.0
    %1665 = vmatprep.subr.mxu0 0.0
    %1666 = vmatpush1.msra.mxu0 0.0
    %1667 = vmatprep.mubr.f32.mxu0 0.0
    %1668 = vmatmul.mubr.f32.gmra.mrb[0].mxu0 %v201
    %v1669 = vpop.f32.mrb[0].mxu0
    %v1670 = vadd.f32 0.0, %v1669
    %v1671 = vpop.f32.mrb[0].mxu0
    %1672 = vdwg.mxu0
    %1673 = vmatprep.subr.mxu0 0.0
    %1674 = vmatpush1.msra.mxu0 %v161
    %1675 = vmatprep.subr.mxu0 0.0
    %1676 = vmatpush1.msra.mxu0 %v162
    %1677 = vmatprep.subr.mxu0 0.0
    %1678 = vmatpush1.msra.mxu0 0.0
    %1679 = vmatprep.subr.mxu0 0.0
    %1680 = vmatpush1.msra.mxu0 0.0
    %1681 = vmatprep.subr.mxu0 0.0
    %1682 = vmatpush1.msra.mxu0 0.0
    %1683 = vmatprep.subr.mxu0 0.0
    %1684 = vmatpush1.msra.mxu0 0.0
    %1685 = vmatprep.subr.mxu0 0.0
    %1686 = vmatpush1.msra.mxu0 0.0
    %1687 = vmatprep.subr.mxu0 0.0
    %1688 = vmatpush1.msra.mxu0 0.0
    %1689 = vmatprep.subr.mxu0 0.0
    %1690 = vmatpush1.msra.mxu0 0.0
    %1691 = vmatprep.subr.mxu0 0.0
    %1692 = vmatpush1.msra.mxu0 0.0
    %1693 = vmatprep.subr.mxu0 0.0
    %1694 = vmatpush1.msra.mxu0 0.0
    %1695 = vmatprep.subr.mxu0 0.0
    %1696 = vmatpush1.msra.mxu0 0.0
    %1697 = vmatprep.subr.mxu0 0.0
    %1698 = vmatpush1.msra.mxu0 0.0
    %1699 = vmatprep.subr.mxu0 0.0
    %1700 = vmatpush1.msra.mxu0 0.0
    %1701 = vmatprep.subr.mxu0 0.0
    %1702 = vmatpush1.msra.mxu0 0.0
    %1703 = vmatprep.subr.mxu0 0.0
    %1704 = vmatpush1.msra.mxu0 0.0
    %1705 = vmatprep.subr.mxu0 0.0
    %1706 = vmatpush1.msra.mxu0 0.0
    %1707 = vmatprep.subr.mxu0 0.0
    %1708 = vmatpush1.msra.mxu0 0.0
    %1709 = vmatprep.subr.mxu0 0.0
    %1710 = vmatpush1.msra.mxu0 0.0
    %1711 = vmatprep.subr.mxu0 0.0
    %1712 = vmatpush1.msra.mxu0 0.0
    %1713 = vmatprep.subr.mxu0 0.0
    %1714 = vmatpush1.msra.mxu0 0.0
    %1715 = vmatprep.subr.mxu0 0.0
    %1716 = vmatpush1.msra.mxu0 0.0
    %1717 = vmatprep.subr.mxu0 0.0
    %1718 = vmatpush1.msra.mxu0 0.0
    %1719 = vmatprep.subr.mxu0 0.0
    %1720 = vmatpush1.msra.mxu0 0.0
    %1721 = vmatprep.subr.mxu0 0.0
    %1722 = vmatpush1.msra.mxu0 0.0
    %1723 = vmatprep.subr.mxu0 0.0
    %1724 = vmatpush1.msra.mxu0 0.0
    %1725 = vmatprep.subr.mxu0 0.0
    %1726 = vmatpush1.msra.mxu0 0.0
    %1727 = vmatprep.subr.mxu0 0.0
    %1728 = vmatpush1.msra.mxu0 0.0
    %1729 = vmatprep.subr.mxu0 0.0
    %1730 = vmatpush1.msra.mxu0 0.0
    %1731 = vmatprep.subr.mxu0 0.0
    %1732 = vmatpush1.msra.mxu0 0.0
    %1733 = vmatprep.subr.mxu0 0.0
    %1734 = vmatpush1.msra.mxu0 0.0
    %1735 = vmatprep.subr.mxu0 0.0
    %1736 = vmatpush1.msra.mxu0 0.0
    %1737 = vmatprep.mubr.f32.mxu0 0.0
    %1738 = vmatmul.mubr.f32.gmra.mrb[0].mxu0 %v201
    %v1739 = vpop.f32.mrb[0].mxu0
    %v1740 = vadd.f32 0.0, %v1739
    %v1741 = vpop.f32.mrb[0].mxu0
    %1742 = vdwg.mxu0
    %1743 = vmatprep.subr.mxu0 0.0
    %1744 = vmatpush1.msra.mxu0 %v163
    %1745 = vmatprep.subr.mxu0 0.0
    %1746 = vmatpush1.msra.mxu0 %v164
    %1747 = vmatprep.subr.mxu0 0.0
    %1748 = vmatpush1.msra.mxu0 0.0
    %1749 = vmatprep.subr.mxu0 0.0
    %1750 = vmatpush1.msra.mxu0 0.0
    %1751 = vmatprep.subr.mxu0 0.0
    %1752 = vmatpush1.msra.mxu0 0.0
    %1753 = vmatprep.subr.mxu0 0.0
    %1754 = vmatpush1.msra.mxu0 0.0
    %1755 = vmatprep.subr.mxu0 0.0
    %1756 = vmatpush1.msra.mxu0 0.0
    %1757 = vmatprep.subr.mxu0 0.0
    %1758 = vmatpush1.msra.mxu0 0.0
    %1759 = vmatprep.subr.mxu0 0.0
    %1760 = vmatpush1.msra.mxu0 0.0
    %1761 = vmatprep.subr.mxu0 0.0
    %1762 = vmatpush1.msra.mxu0 0.0
    %1763 = vmatprep.subr.mxu0 0.0
    %1764 = vmatpush1.msra.mxu0 0.0
    %1765 = vmatprep.subr.mxu0 0.0
    %1766 = vmatpush1.msra.mxu0 0.0
    %1767 = vmatprep.subr.mxu0 0.0
    %1768 = vmatpush1.msra.mxu0 0.0
    %1769 = vmatprep.subr.mxu0 0.0
    %1770 = vmatpush1.msra.mxu0 0.0
    %1771 = vmatprep.subr.mxu0 0.0
    %1772 = vmatpush1.msra.mxu0 0.0
    %1773 = vmatprep.subr.mxu0 0.0
    %1774 = vmatpush1.msra.mxu0 0.0
    %1775 = vmatprep.subr.mxu0 0.0
    %1776 = vmatpush1.msra.mxu0 0.0
    %1777 = vmatprep.subr.mxu0 0.0
    %1778 = vmatpush1.msra.mxu0 0.0
    %1779 = vmatprep.subr.mxu0 0.0
    %1780 = vmatpush1.msra.mxu0 0.0
    %1781 = vmatprep.subr.mxu0 0.0
    %1782 = vmatpush1.msra.mxu0 0.0
    %1783 = vmatprep.subr.mxu0 0.0
    %1784 = vmatpush1.msra.mxu0 0.0
    %1785 = vmatprep.subr.mxu0 0.0
    %1786 = vmatpush1.msra.mxu0 0.0
    %1787 = vmatprep.subr.mxu0 0.0
    %1788 = vmatpush1.msra.mxu0 0.0
    %1789 = vmatprep.subr.mxu0 0.0
    %1790 = vmatpush1.msra.mxu0 0.0
    %1791 = vmatprep.subr.mxu0 0.0
    %1792 = vmatpush1.msra.mxu0 0.0
    %1793 = vmatprep.subr.mxu0 0.0
    %1794 = vmatpush1.msra.mxu0 0.0
    %1795 = vmatprep.subr.mxu0 0.0
    %1796 = vmatpush1.msra.mxu0 0.0
    %1797 = vmatprep.subr.mxu0 0.0
    %1798 = vmatpush1.msra.mxu0 0.0
    %1799 = vmatprep.subr.mxu0 0.0
    %1800 = vmatpush1.msra.mxu0 0.0
    %1801 = vmatprep.subr.mxu0 0.0
    %1802 = vmatpush1.msra.mxu0 0.0
    %1803 = vmatprep.subr.mxu0 0.0
    %1804 = vmatpush1.msra.mxu0 0.0
    %1805 = vmatprep.subr.mxu0 0.0
    %1806 = vmatpush1.msra.mxu0 0.0
    %1807 = vmatprep.mubr.f32.mxu0 0.0
    %1808 = vmatmul.mubr.f32.gmra.mrb[0].mxu0 %v201
    %v1809 = vpop.f32.mrb[0].mxu0
    %v1810 = vadd.f32 0.0, %v1809
    %v1811 = vpop.f32.mrb[0].mxu0
    %1812 = vdwg.mxu0
    %1813 = vmatprep.subr.mxu0 0.0
    %1814 = vmatpush1.msra.mxu0 %v165
    %1815 = vmatprep.subr.mxu0 0.0
    %1816 = vmatpush1.msra.mxu0 %v166
    %1817 = vmatprep.subr.mxu0 0.0
    %1818 = vmatpush1.msra.mxu0 0.0
    %1819 = vmatprep.subr.mxu0 0.0
    %1820 = vmatpush1.msra.mxu0 0.0
    %1821 = vmatprep.subr.mxu0 0.0
    %1822 = vmatpush1.msra.mxu0 0.0
    %1823 = vmatprep.subr.mxu0 0.0
    %1824 = vmatpush1.msra.mxu0 0.0
    %1825 = vmatprep.subr.mxu0 0.0
    %1826 = vmatpush1.msra.mxu0 0.0
    %1827 = vmatprep.subr.mxu0 0.0
    %1828 = vmatpush1.msra.mxu0 0.0
    %1829 = vmatprep.subr.mxu0 0.0
    %1830 = vmatpush1.msra.mxu0 0.0
    %1831 = vmatprep.subr.mxu0 0.0
    %1832 = vmatpush1.msra.mxu0 0.0
    %1833 = vmatprep.subr.mxu0 0.0
    %1834 = vmatpush1.msra.mxu0 0.0
    %1835 = vmatprep.subr.mxu0 0.0
    %1836 = vmatpush1.msra.mxu0 0.0
    %1837 = vmatprep.subr.mxu0 0.0
    %1838 = vmatpush1.msra.mxu0 0.0
    %1839 = vmatprep.subr.mxu0 0.0
    %1840 = vmatpush1.msra.mxu0 0.0
    %1841 = vmatprep.subr.mxu0 0.0
    %1842 = vmatpush1.msra.mxu0 0.0
    %1843 = vmatprep.subr.mxu0 0.0
    %1844 = vmatpush1.msra.mxu0 0.0
    %1845 = vmatprep.subr.mxu0 0.0
    %1846 = vmatpush1.msra.mxu0 0.0
    %1847 = vmatprep.subr.mxu0 0.0
    %1848 = vmatpush1.msra.mxu0 0.0
    %1849 = vmatprep.subr.mxu0 0.0
    %1850 = vmatpush1.msra.mxu0 0.0
    %1851 = vmatprep.subr.mxu0 0.0
    %1852 = vmatpush1.msra.mxu0 0.0
    %1853 = vmatprep.subr.mxu0 0.0
    %1854 = vmatpush1.msra.mxu0 0.0
    %1855 = vmatprep.subr.mxu0 0.0
    %1856 = vmatpush1.msra.mxu0 0.0
    %1857 = vmatprep.subr.mxu0 0.0
    %1858 = vmatpush1.msra.mxu0 0.0
    %1859 = vmatprep.subr.mxu0 0.0
    %1860 = vmatpush1.msra.mxu0 0.0
    %1861 = vmatprep.subr.mxu0 0.0
    %1862 = vmatpush1.msra.mxu0 0.0
    %1863 = vmatprep.subr.mxu0 0.0
    %1864 = vmatpush1.msra.mxu0 0.0
    %1865 = vmatprep.subr.mxu0 0.0
    %1866 = vmatpush1.msra.mxu0 0.0
    %1867 = vmatprep.subr.mxu0 0.0
    %1868 = vmatpush1.msra.mxu0 0.0
    %1869 = vmatprep.subr.mxu0 0.0
    %1870 = vmatpush1.msra.mxu0 0.0
    %1871 = vmatprep.subr.mxu0 0.0
    %1872 = vmatpush1.msra.mxu0 0.0
    %1873 = vmatprep.subr.mxu0 0.0
    %1874 = vmatpush1.msra.mxu0 0.0
    %1875 = vmatprep.subr.mxu0 0.0
    %1876 = vmatpush1.msra.mxu0 0.0
    %1877 = vmatprep.mubr.f32.mxu0 0.0
    %1878 = vmatmul.mubr.f32.gmra.mrb[0].mxu0 %v201
    %v1879 = vpop.f32.mrb[0].mxu0
    %v1880 = vadd.f32 0.0, %v1879
    %v1881 = vpop.f32.mrb[0].mxu0
    %1882 = vdwg.mxu0
    %1883 = vmatprep.subr.mxu0 0.0
    %1884 = vmatpush1.msra.mxu0 %v167
    %1885 = vmatprep.subr.mxu0 0.0
    %1886 = vmatpush1.msra.mxu0 %v168
    %1887 = vmatprep.subr.mxu0 0.0
    %1888 = vmatpush1.msra.mxu0 0.0
    %1889 = vmatprep.subr.mxu0 0.0
    %1890 = vmatpush1.msra.mxu0 0.0
    %1891 = vmatprep.subr.mxu0 0.0
    %1892 = vmatpush1.msra.mxu0 0.0
    %1893 = vmatprep.subr.mxu0 0.0
    %1894 = vmatpush1.msra.mxu0 0.0
    %1895 = vmatprep.subr.mxu0 0.0
    %1896 = vmatpush1.msra.mxu0 0.0
    %1897 = vmatprep.subr.mxu0 0.0
    %1898 = vmatpush1.msra.mxu0 0.0
    %1899 = vmatprep.subr.mxu0 0.0
    %1900 = vmatpush1.msra.mxu0 0.0
    %1901 = vmatprep.subr.mxu0 0.0
    %1902 = vmatpush1.msra.mxu0 0.0
    %1903 = vmatprep.subr.mxu0 0.0
    %1904 = vmatpush1.msra.mxu0 0.0
    %1905 = vmatprep.subr.mxu0 0.0
    %1906 = vmatpush1.msra.mxu0 0.0
    %1907 = vmatprep.subr.mxu0 0.0
    %1908 = vmatpush1.msra.mxu0 0.0
    %1909 = vmatprep.subr.mxu0 0.0
    %1910 = vmatpush1.msra.mxu0 0.0
    %1911 = vmatprep.subr.mxu0 0.0
    %1912 = vmatpush1.msra.mxu0 0.0
    %1913 = vmatprep.subr.mxu0 0.0
    %1914 = vmatpush1.msra.mxu0 0.0
    %1915 = vmatprep.subr.mxu0 0.0
    %1916 = vmatpush1.msra.mxu0 0.0
    %1917 = vmatprep.subr.mxu0 0.0
    %1918 = vmatpush1.msra.mxu0 0.0
    %1919 = vmatprep.subr.mxu0 0.0
    %1920 = vmatpush1.msra.mxu0 0.0
    %1921 = vmatprep.subr.mxu0 0.0
    %1922 = vmatpush1.msra.mxu0 0.0
    %1923 = vmatprep.subr.mxu0 0.0
    %1924 = vmatpush1.msra.mxu0 0.0
    %1925 = vmatprep.subr.mxu0 0.0
    %1926 = vmatpush1.msra.mxu0 0.0
    %1927 = vmatprep.subr.mxu0 0.0
    %1928 = vmatpush1.msra.mxu0 0.0
    %1929 = vmatprep.subr.mxu0 0.0
    %1930 = vmatpush1.msra.mxu0 0.0
    %1931 = vmatprep.subr.mxu0 0.0
    %1932 = vmatpush1.msra.mxu0 0.0
    %1933 = vmatprep.subr.mxu0 0.0
    %1934 = vmatpush1.msra.mxu0 0.0
    %1935 = vmatprep.subr.mxu0 0.0
    %1936 = vmatpush1.msra.mxu0 0.0
    %1937 = vmatprep.subr.mxu0 0.0
    %1938 = vmatpush1.msra.mxu0 0.0
    %1939 = vmatprep.subr.mxu0 0.0
    %1940 = vmatpush1.msra.mxu0 0.0
    %1941 = vmatprep.subr.mxu0 0.0
    %1942 = vmatpush1.msra.mxu0 0.0
    %1943 = vmatprep.subr.mxu0 0.0
    %1944 = vmatpush1.msra.mxu0 0.0
    %1945 = vmatprep.subr.mxu0 0.0
    %1946 = vmatpush1.msra.mxu0 0.0
    %1947 = vmatprep.mubr.f32.mxu0 0.0
    %1948 = vmatmul.mubr.f32.gmra.mrb[0].mxu0 %v201
    %v1949 = vpop.f32.mrb[0].mxu0
    %v1950 = vadd.f32 0.0, %v1949
    %v1951 = vpop.f32.mrb[0].mxu0
    %1952 = vdwg.mxu0
    %1953 = vmatprep.subr.mxu0 0.0
    %1954 = vmatpush1.msra.mxu0 %v169
    %1955 = vmatprep.subr.mxu0 0.0
    %1956 = vmatpush1.msra.mxu0 %v170
    %1957 = vmatprep.subr.mxu0 0.0
    %1958 = vmatpush1.msra.mxu0 0.0
    %1959 = vmatprep.subr.mxu0 0.0
    %1960 = vmatpush1.msra.mxu0 0.0
    %1961 = vmatprep.subr.mxu0 0.0
    %1962 = vmatpush1.msra.mxu0 0.0
    %1963 = vmatprep.subr.mxu0 0.0
    %1964 = vmatpush1.msra.mxu0 0.0
    %1965 = vmatprep.subr.mxu0 0.0
    %1966 = vmatpush1.msra.mxu0 0.0
    %1967 = vmatprep.subr.mxu0 0.0
    %1968 = vmatpush1.msra.mxu0 0.0
    %1969 = vmatprep.subr.mxu0 0.0
    %1970 = vmatpush1.msra.mxu0 0.0
    %1971 = vmatprep.subr.mxu0 0.0
    %1972 = vmatpush1.msra.mxu0 0.0
    %1973 = vmatprep.subr.mxu0 0.0
    %1974 = vmatpush1.msra.mxu0 0.0
    %1975 = vmatprep.subr.mxu0 0.0
    %1976 = vmatpush1.msra.mxu0 0.0
    %1977 = vmatprep.subr.mxu0 0.0
    %1978 = vmatpush1.msra.mxu0 0.0
    %1979 = vmatprep.subr.mxu0 0.0
    %1980 = vmatpush1.msra.mxu0 0.0
    %1981 = vmatprep.subr.mxu0 0.0
    %1982 = vmatpush1.msra.mxu0 0.0
    %1983 = vmatprep.subr.mxu0 0.0
    %1984 = vmatpush1.msra.mxu0 0.0
    %1985 = vmatprep.subr.mxu0 0.0
    %1986 = vmatpush1.msra.mxu0 0.0
    %1987 = vmatprep.subr.mxu0 0.0
    %1988 = vmatpush1.msra.mxu0 0.0
    %1989 = vmatprep.subr.mxu0 0.0
    %1990 = vmatpush1.msra.mxu0 0.0
    %1991 = vmatprep.subr.mxu0 0.0
    %1992 = vmatpush1.msra.mxu0 0.0
    %1993 = vmatprep.subr.mxu0 0.0
    %1994 = vmatpush1.msra.mxu0 0.0
    %1995 = vmatprep.subr.mxu0 0.0
    %1996 = vmatpush1.msra.mxu0 0.0
    %1997 = vmatprep.subr.mxu0 0.0
    %1998 = vmatpush1.msra.mxu0 0.0
    %1999 = vmatprep.subr.mxu0 0.0
    %2000 = vmatpush1.msra.mxu0 0.0
    %2001 = vmatprep.subr.mxu0 0.0
    %2002 = vmatpush1.msra.mxu0 0.0
    %2003 = vmatprep.subr.mxu0 0.0
    %2004 = vmatpush1.msra.mxu0 0.0
    %2005 = vmatprep.subr.mxu0 0.0
    %2006 = vmatpush1.msra.mxu0 0.0
    %2007 = vmatprep.subr.mxu0 0.0
    %2008 = vmatpush1.msra.mxu0 0.0
    %2009 = vmatprep.subr.mxu0 0.0
    %2010 = vmatpush1.msra.mxu0 0.0
    %2011 = vmatprep.subr.mxu0 0.0
    %2012 = vmatpush1.msra.mxu0 0.0
    %2013 = vmatprep.subr.mxu0 0.0
    %2014 = vmatpush1.msra.mxu0 0.0
    %2015 = vmatprep.subr.mxu0 0.0
    %2016 = vmatpush1.msra.mxu0 0.0
    %2017 = vmatprep.mubr.f32.mxu0 0.0
    %2018 = vmatmul.mubr.f32.gmra.mrb[0].mxu0 %v201
    %v2019 = vpop.f32.mrb[0].mxu0
    %v2020 = vadd.f32 0.0, %v2019
    %v2021 = vpop.f32.mrb[0].mxu0
    %2022 = vdwg.mxu0
    %2023 = vmatprep.subr.mxu0 0.0
    %2024 = vmatpush1.msra.mxu0 %v171
    %2025 = vmatprep.subr.mxu0 0.0
    %2026 = vmatpush1.msra.mxu0 %v172
    %2027 = vmatprep.subr.mxu0 0.0
    %2028 = vmatpush1.msra.mxu0 0.0
    %2029 = vmatprep.subr.mxu0 0.0
    %2030 = vmatpush1.msra.mxu0 0.0
    %2031 = vmatprep.subr.mxu0 0.0
    %2032 = vmatpush1.msra.mxu0 0.0
    %2033 = vmatprep.subr.mxu0 0.0
    %2034 = vmatpush1.msra.mxu0 0.0
    %2035 = vmatprep.subr.mxu0 0.0
    %2036 = vmatpush1.msra.mxu0 0.0
    %2037 = vmatprep.subr.mxu0 0.0
    %2038 = vmatpush1.msra.mxu0 0.0
    %2039 = vmatprep.subr.mxu0 0.0
    %2040 = vmatpush1.msra.mxu0 0.0
    %2041 = vmatprep.subr.mxu0 0.0
    %2042 = vmatpush1.msra.mxu0 0.0
    %2043 = vmatprep.subr.mxu0 0.0
    %2044 = vmatpush1.msra.mxu0 0.0
    %2045 = vmatprep.subr.mxu0 0.0
    %2046 = vmatpush1.msra.mxu0 0.0
    %2047 = vmatprep.subr.mxu0 0.0
    %2048 = vmatpush1.msra.mxu0 0.0
    %2049 = vmatprep.subr.mxu0 0.0
    %2050 = vmatpush1.msra.mxu0 0.0
    %2051 = vmatprep.subr.mxu0 0.0
    %2052 = vmatpush1.msra.mxu0 0.0
    %2053 = vmatprep.subr.mxu0 0.0
    %2054 = vmatpush1.msra.mxu0 0.0
    %2055 = vmatprep.subr.mxu0 0.0
    %2056 = vmatpush1.msra.mxu0 0.0
    %2057 = vmatprep.subr.mxu0 0.0
    %2058 = vmatpush1.msra.mxu0 0.0
    %2059 = vmatprep.subr.mxu0 0.0
    %2060 = vmatpush1.msra.mxu0 0.0
    %2061 = vmatprep.subr.mxu0 0.0
    %2062 = vmatpush1.msra.mxu0 0.0
    %2063 = vmatprep.subr.mxu0 0.0
    %2064 = vmatpush1.msra.mxu0 0.0
    %2065 = vmatprep.subr.mxu0 0.0
    %2066 = vmatpush1.msra.mxu0 0.0
    %2067 = vmatprep.subr.mxu0 0.0
    %2068 = vmatpush1.msra.mxu0 0.0
    %2069 = vmatprep.subr.mxu0 0.0
    %2070 = vmatpush1.msra.mxu0 0.0
    %2071 = vmatprep.subr.mxu0 0.0
    %2072 = vmatpush1.msra.mxu0 0.0
    %2073 = vmatprep.subr.mxu0 0.0
    %2074 = vmatpush1.msra.mxu0 0.0
    %2075 = vmatprep.subr.mxu0 0.0
    %2076 = vmatpush1.msra.mxu0 0.0
    %2077 = vmatprep.subr.mxu0 0.0
    %2078 = vmatpush1.msra.mxu0 0.0
    %2079 = vmatprep.subr.mxu0 0.0
    %2080 = vmatpush1.msra.mxu0 0.0
    %2081 = vmatprep.subr.mxu0 0.0
    %2082 = vmatpush1.msra.mxu0 0.0
    %2083 = vmatprep.subr.mxu0 0.0
    %2084 = vmatpush1.msra.mxu0 0.0
    %2085 = vmatprep.subr.mxu0 0.0
    %2086 = vmatpush1.msra.mxu0 0.0
    %2087 = vmatprep.mubr.f32.mxu0 0.0
    %2088 = vmatmul.mubr.f32.gmra.mrb[0].mxu0 %v201
    %v2089 = vpop.f32.mrb[0].mxu0
    %v2090 = vadd.f32 0.0, %v2089
    %v2091 = vpop.f32.mrb[0].mxu0
    %2092 = vdwg.mxu0
    %2093 = vmatprep.subr.mxu0 0.0
    %2094 = vmatpush1.msra.mxu0 %v173
    %2095 = vmatprep.subr.mxu0 0.0
    %2096 = vmatpush1.msra.mxu0 %v174
    %2097 = vmatprep.subr.mxu0 0.0
    %2098 = vmatpush1.msra.mxu0 0.0
    %2099 = vmatprep.subr.mxu0 0.0
    %2100 = vmatpush1.msra.mxu0 0.0
    %2101 = vmatprep.subr.mxu0 0.0
    %2102 = vmatpush1.msra.mxu0 0.0
    %2103 = vmatprep.subr.mxu0 0.0
    %2104 = vmatpush1.msra.mxu0 0.0
    %2105 = vmatprep.subr.mxu0 0.0
    %2106 = vmatpush1.msra.mxu0 0.0
    %2107 = vmatprep.subr.mxu0 0.0
    %2108 = vmatpush1.msra.mxu0 0.0
    %2109 = vmatprep.subr.mxu0 0.0
    %2110 = vmatpush1.msra.mxu0 0.0
    %2111 = vmatprep.subr.mxu0 0.0
    %2112 = vmatpush1.msra.mxu0 0.0
    %2113 = vmatprep.subr.mxu0 0.0
    %2114 = vmatpush1.msra.mxu0 0.0
    %2115 = vmatprep.subr.mxu0 0.0
    %2116 = vmatpush1.msra.mxu0 0.0
    %2117 = vmatprep.subr.mxu0 0.0
    %2118 = vmatpush1.msra.mxu0 0.0
    %2119 = vmatprep.subr.mxu0 0.0
    %2120 = vmatpush1.msra.mxu0 0.0
    %2121 = vmatprep.subr.mxu0 0.0
    %2122 = vmatpush1.msra.mxu0 0.0
    %2123 = vmatprep.subr.mxu0 0.0
    %2124 = vmatpush1.msra.mxu0 0.0
    %2125 = vmatprep.subr.mxu0 0.0
    %2126 = vmatpush1.msra.mxu0 0.0
    %2127 = vmatprep.subr.mxu0 0.0
    %2128 = vmatpush1.msra.mxu0 0.0
    %2129 = vmatprep.subr.mxu0 0.0
    %2130 = vmatpush1.msra.mxu0 0.0
    %2131 = vmatprep.subr.mxu0 0.0
    %2132 = vmatpush1.msra.mxu0 0.0
    %2133 = vmatprep.subr.mxu0 0.0
    %2134 = vmatpush1.msra.mxu0 0.0
    %2135 = vmatprep.subr.mxu0 0.0
    %2136 = vmatpush1.msra.mxu0 0.0
    %2137 = vmatprep.subr.mxu0 0.0
    %2138 = vmatpush1.msra.mxu0 0.0
    %2139 = vmatprep.subr.mxu0 0.0
    %2140 = vmatpush1.msra.mxu0 0.0
    %2141 = vmatprep.subr.mxu0 0.0
    %2142 = vmatpush1.msra.mxu0 0.0
    %2143 = vmatprep.subr.mxu0 0.0
    %2144 = vmatpush1.msra.mxu0 0.0
    %2145 = vmatprep.subr.mxu0 0.0
    %2146 = vmatpush1.msra.mxu0 0.0
    %2147 = vmatprep.subr.mxu0 0.0
    %2148 = vmatpush1.msra.mxu0 0.0
    %2149 = vmatprep.subr.mxu0 0.0
    %2150 = vmatpush1.msra.mxu0 0.0
    %2151 = vmatprep.subr.mxu0 0.0
    %2152 = vmatpush1.msra.mxu0 0.0
    %2153 = vmatprep.subr.mxu0 0.0
    %2154 = vmatpush1.msra.mxu0 0.0
    %2155 = vmatprep.subr.mxu0 0.0
    %2156 = vmatpush1.msra.mxu0 0.0
    %2157 = vmatprep.mubr.f32.mxu0 0.0
    %2158 = vmatmul.mubr.f32.gmra.mrb[0].mxu0 %v201
    %v2159 = vpop.f32.mrb[0].mxu0
    %v2160 = vadd.f32 0.0, %v2159
    %v2161 = vpop.f32.mrb[0].mxu0
    %2162 = vdwg.mxu0
    %2163 = vmatprep.subr.mxu0 0.0
    %2164 = vmatpush1.msra.mxu0 %v175
    %2165 = vmatprep.subr.mxu0 0.0
    %2166 = vmatpush1.msra.mxu0 %v176
    %2167 = vmatprep.subr.mxu0 0.0
    %2168 = vmatpush1.msra.mxu0 0.0
    %2169 = vmatprep.subr.mxu0 0.0
    %2170 = vmatpush1.msra.mxu0 0.0
    %2171 = vmatprep.subr.mxu0 0.0
    %2172 = vmatpush1.msra.mxu0 0.0
    %2173 = vmatprep.subr.mxu0 0.0
    %2174 = vmatpush1.msra.mxu0 0.0
    %2175 = vmatprep.subr.mxu0 0.0
    %2176 = vmatpush1.msra.mxu0 0.0
    %2177 = vmatprep.subr.mxu0 0.0
    %2178 = vmatpush1.msra.mxu0 0.0
    %2179 = vmatprep.subr.mxu0 0.0
    %2180 = vmatpush1.msra.mxu0 0.0
    %2181 = vmatprep.subr.mxu0 0.0
    %2182 = vmatpush1.msra.mxu0 0.0
    %2183 = vmatprep.subr.mxu0 0.0
    %2184 = vmatpush1.msra.mxu0 0.0
    %2185 = vmatprep.subr.mxu0 0.0
    %2186 = vmatpush1.msra.mxu0 0.0
    %2187 = vmatprep.subr.mxu0 0.0
    %2188 = vmatpush1.msra.mxu0 0.0
    %2189 = vmatprep.subr.mxu0 0.0
    %2190 = vmatpush1.msra.mxu0 0.0
    %2191 = vmatprep.subr.mxu0 0.0
    %2192 = vmatpush1.msra.mxu0 0.0
    %2193 = vmatprep.subr.mxu0 0.0
    %2194 = vmatpush1.msra.mxu0 0.0
    %2195 = vmatprep.subr.mxu0 0.0
    %2196 = vmatpush1.msra.mxu0 0.0
    %2197 = vmatprep.subr.mxu0 0.0
    %2198 = vmatpush1.msra.mxu0 0.0
    %2199 = vmatprep.subr.mxu0 0.0
    %2200 = vmatpush1.msra.mxu0 0.0
    %2201 = vmatprep.subr.mxu0 0.0
    %2202 = vmatpush1.msra.mxu0 0.0
    %2203 = vmatprep.subr.mxu0 0.0
    %2204 = vmatpush1.msra.mxu0 0.0
    %2205 = vmatprep.subr.mxu0 0.0
    %2206 = vmatpush1.msra.mxu0 0.0
    %2207 = vmatprep.subr.mxu0 0.0
    %2208 = vmatpush1.msra.mxu0 0.0
    %2209 = vmatprep.subr.mxu0 0.0
    %2210 = vmatpush1.msra.mxu0 0.0
    %2211 = vmatprep.subr.mxu0 0.0
    %2212 = vmatpush1.msra.mxu0 0.0
    %2213 = vmatprep.subr.mxu0 0.0
    %2214 = vmatpush1.msra.mxu0 0.0
    %2215 = vmatprep.subr.mxu0 0.0
    %2216 = vmatpush1.msra.mxu0 0.0
    %2217 = vmatprep.subr.mxu0 0.0
    %2218 = vmatpush1.msra.mxu0 0.0
    %2219 = vmatprep.subr.mxu0 0.0
    %2220 = vmatpush1.msra.mxu0 0.0
    %2221 = vmatprep.subr.mxu0 0.0
    %2222 = vmatpush1.msra.mxu0 0.0
    %2223 = vmatprep.subr.mxu0 0.0
    %2224 = vmatpush1.msra.mxu0 0.0
    %2225 = vmatprep.subr.mxu0 0.0
    %2226 = vmatpush1.msra.mxu0 0.0
    %2227 = vmatprep.mubr.f32.mxu0 0.0
    %2228 = vmatmul.mubr.f32.gmra.mrb[0].mxu0 %v201
    %v2229 = vpop.f32.mrb[0].mxu0
    %v2230 = vadd.f32 0.0, %v2229
    %v2231 = vpop.f32.mrb[0].mxu0
    %2232 = vdwg.mxu0
    %2233 = vmatprep.subr.mxu0 0.0
    %2234 = vmatpush1.msra.mxu0 %v177
    %2235 = vmatprep.subr.mxu0 0.0
    %2236 = vmatpush1.msra.mxu0 %v178
    %2237 = vmatprep.subr.mxu0 0.0
    %2238 = vmatpush1.msra.mxu0 0.0
    %2239 = vmatprep.subr.mxu0 0.0
    %2240 = vmatpush1.msra.mxu0 0.0
    %2241 = vmatprep.subr.mxu0 0.0
    %2242 = vmatpush1.msra.mxu0 0.0
    %2243 = vmatprep.subr.mxu0 0.0
    %2244 = vmatpush1.msra.mxu0 0.0
    %2245 = vmatprep.subr.mxu0 0.0
    %2246 = vmatpush1.msra.mxu0 0.0
    %2247 = vmatprep.subr.mxu0 0.0
    %2248 = vmatpush1.msra.mxu0 0.0
    %2249 = vmatprep.subr.mxu0 0.0
    %2250 = vmatpush1.msra.mxu0 0.0
    %2251 = vmatprep.subr.mxu0 0.0
    %2252 = vmatpush1.msra.mxu0 0.0
    %2253 = vmatprep.subr.mxu0 0.0
    %2254 = vmatpush1.msra.mxu0 0.0
    %2255 = vmatprep.subr.mxu0 0.0
    %2256 = vmatpush1.msra.mxu0 0.0
    %2257 = vmatprep.subr.mxu0 0.0
    %2258 = vmatpush1.msra.mxu0 0.0
    %2259 = vmatprep.subr.mxu0 0.0
    %2260 = vmatpush1.msra.mxu0 0.0
    %2261 = vmatprep.subr.mxu0 0.0
    %2262 = vmatpush1.msra.mxu0 0.0
    %2263 = vmatprep.subr.mxu0 0.0
    %2264 = vmatpush1.msra.mxu0 0.0
    %2265 = vmatprep.subr.mxu0 0.0
    %2266 = vmatpush1.msra.mxu0 0.0
    %2267 = vmatprep.subr.mxu0 0.0
    %2268 = vmatpush1.msra.mxu0 0.0
    %2269 = vmatprep.subr.mxu0 0.0
    %2270 = vmatpush1.msra.mxu0 0.0
    %2271 = vmatprep.subr.mxu0 0.0
    %2272 = vmatpush1.msra.mxu0 0.0
    %2273 = vmatprep.subr.mxu0 0.0
    %2274 = vmatpush1.msra.mxu0 0.0
    %2275 = vmatprep.subr.mxu0 0.0
    %2276 = vmatpush1.msra.mxu0 0.0
    %2277 = vmatprep.subr.mxu0 0.0
    %2278 = vmatpush1.msra.mxu0 0.0
    %2279 = vmatprep.subr.mxu0 0.0
    %2280 = vmatpush1.msra.mxu0 0.0
    %2281 = vmatprep.subr.mxu0 0.0
    %2282 = vmatpush1.msra.mxu0 0.0
    %2283 = vmatprep.subr.mxu0 0.0
    %2284 = vmatpush1.msra.mxu0 0.0
    %2285 = vmatprep.subr.mxu0 0.0
    %2286 = vmatpush1.msra.mxu0 0.0
    %2287 = vmatprep.subr.mxu0 0.0
    %2288 = vmatpush1.msra.mxu0 0.0
    %2289 = vmatprep.subr.mxu0 0.0
    %2290 = vmatpush1.msra.mxu0 0.0
    %2291 = vmatprep.subr.mxu0 0.0
    %2292 = vmatpush1.msra.mxu0 0.0
    %2293 = vmatprep.subr.mxu0 0.0
    %2294 = vmatpush1.msra.mxu0 0.0
    %2295 = vmatprep.subr.mxu0 0.0
    %2296 = vmatpush1.msra.mxu0 0.0
    %2297 = vmatprep.mubr.f32.mxu0 0.0
    %2298 = vmatmul.mubr.f32.gmra.mrb[0].mxu0 %v201
    %v2299 = vpop.f32.mrb[0].mxu0
    %v2300 = vadd.f32 0.0, %v2299
    %v2301 = vpop.f32.mrb[0].mxu0
    %2302 = vdwg.mxu0
    %2303 = vmatprep.subr.mxu0 0.0
    %2304 = vmatpush1.msra.mxu0 %v179
    %2305 = vmatprep.subr.mxu0 0.0
    %2306 = vmatpush1.msra.mxu0 %v180
    %2307 = vmatprep.subr.mxu0 0.0
    %2308 = vmatpush1.msra.mxu0 0.0
    %2309 = vmatprep.subr.mxu0 0.0
    %2310 = vmatpush1.msra.mxu0 0.0
    %2311 = vmatprep.subr.mxu0 0.0
    %2312 = vmatpush1.msra.mxu0 0.0
    %2313 = vmatprep.subr.mxu0 0.0
    %2314 = vmatpush1.msra.mxu0 0.0
    %2315 = vmatprep.subr.mxu0 0.0
    %2316 = vmatpush1.msra.mxu0 0.0
    %2317 = vmatprep.subr.mxu0 0.0
    %2318 = vmatpush1.msra.mxu0 0.0
    %2319 = vmatprep.subr.mxu0 0.0
    %2320 = vmatpush1.msra.mxu0 0.0
    %2321 = vmatprep.subr.mxu0 0.0
    %2322 = vmatpush1.msra.mxu0 0.0
    %2323 = vmatprep.subr.mxu0 0.0
    %2324 = vmatpush1.msra.mxu0 0.0
    %2325 = vmatprep.subr.mxu0 0.0
    %2326 = vmatpush1.msra.mxu0 0.0
    %2327 = vmatprep.subr.mxu0 0.0
    %2328 = vmatpush1.msra.mxu0 0.0
    %2329 = vmatprep.subr.mxu0 0.0
    %2330 = vmatpush1.msra.mxu0 0.0
    %2331 = vmatprep.subr.mxu0 0.0
    %2332 = vmatpush1.msra.mxu0 0.0
    %2333 = vmatprep.subr.mxu0 0.0
    %2334 = vmatpush1.msra.mxu0 0.0
    %2335 = vmatprep.subr.mxu0 0.0
    %2336 = vmatpush1.msra.mxu0 0.0
    %2337 = vmatprep.subr.mxu0 0.0
    %2338 = vmatpush1.msra.mxu0 0.0
    %2339 = vmatprep.subr.mxu0 0.0
    %2340 = vmatpush1.msra.mxu0 0.0
    %2341 = vmatprep.subr.mxu0 0.0
    %2342 = vmatpush1.msra.mxu0 0.0
    %2343 = vmatprep.subr.mxu0 0.0
    %2344 = vmatpush1.msra.mxu0 0.0
    %2345 = vmatprep.subr.mxu0 0.0
    %2346 = vmatpush1.msra.mxu0 0.0
    %2347 = vmatprep.subr.mxu0 0.0
    %2348 = vmatpush1.msra.mxu0 0.0
    %2349 = vmatprep.subr.mxu0 0.0
    %2350 = vmatpush1.msra.mxu0 0.0
    %2351 = vmatprep.subr.mxu0 0.0
    %2352 = vmatpush1.msra.mxu0 0.0
    %2353 = vmatprep.subr.mxu0 0.0
    %2354 = vmatpush1.msra.mxu0 0.0
    %2355 = vmatprep.subr.mxu0 0.0
    %2356 = vmatpush1.msra.mxu0 0.0
    %2357 = vmatprep.subr.mxu0 0.0
    %2358 = vmatpush1.msra.mxu0 0.0
    %2359 = vmatprep.subr.mxu0 0.0
    %2360 = vmatpush1.msra.mxu0 0.0
    %2361 = vmatprep.subr.mxu0 0.0
    %2362 = vmatpush1.msra.mxu0 0.0
    %2363 = vmatprep.subr.mxu0 0.0
    %2364 = vmatpush1.msra.mxu0 0.0
    %2365 = vmatprep.subr.mxu0 0.0
    %2366 = vmatpush1.msra.mxu0 0.0
    %2367 = vmatprep.mubr.f32.mxu0 0.0
    %2368 = vmatmul.mubr.f32.gmra.mrb[0].mxu0 %v201
    %v2369 = vpop.f32.mrb[0].mxu0
    %v2370 = vadd.f32 0.0, %v2369
    %v2371 = vpop.f32.mrb[0].mxu0
    %2372 = vdwg.mxu0
    %2373 = vmatprep.subr.mxu0 0.0
    %2374 = vmatpush1.msra.mxu0 %v181
    %2375 = vmatprep.subr.mxu0 0.0
    %2376 = vmatpush1.msra.mxu0 %v182
    %2377 = vmatprep.subr.mxu0 0.0
    %2378 = vmatpush1.msra.mxu0 0.0
    %2379 = vmatprep.subr.mxu0 0.0
    %2380 = vmatpush1.msra.mxu0 0.0
    %2381 = vmatprep.subr.mxu0 0.0
    %2382 = vmatpush1.msra.mxu0 0.0
    %2383 = vmatprep.subr.mxu0 0.0
    %2384 = vmatpush1.msra.mxu0 0.0
    %2385 = vmatprep.subr.mxu0 0.0
    %2386 = vmatpush1.msra.mxu0 0.0
    %2387 = vmatprep.subr.mxu0 0.0
    %2388 = vmatpush1.msra.mxu0 0.0
    %2389 = vmatprep.subr.mxu0 0.0
    %2390 = vmatpush1.msra.mxu0 0.0
    %2391 = vmatprep.subr.mxu0 0.0
    %2392 = vmatpush1.msra.mxu0 0.0
    %2393 = vmatprep.subr.mxu0 0.0
    %2394 = vmatpush1.msra.mxu0 0.0
    %2395 = vmatprep.subr.mxu0 0.0
    %2396 = vmatpush1.msra.mxu0 0.0
    %2397 = vmatprep.subr.mxu0 0.0
    %2398 = vmatpush1.msra.mxu0 0.0
    %2399 = vmatprep.subr.mxu0 0.0
    %2400 = vmatpush1.msra.mxu0 0.0
    %2401 = vmatprep.subr.mxu0 0.0
    %2402 = vmatpush1.msra.mxu0 0.0
    %2403 = vmatprep.subr.mxu0 0.0
    %2404 = vmatpush1.msra.mxu0 0.0
    %2405 = vmatprep.subr.mxu0 0.0
    %2406 = vmatpush1.msra.mxu0 0.0
    %2407 = vmatprep.subr.mxu0 0.0
    %2408 = vmatpush1.msra.mxu0 0.0
    %2409 = vmatprep.subr.mxu0 0.0
    %2410 = vmatpush1.msra.mxu0 0.0
    %2411 = vmatprep.subr.mxu0 0.0
    %2412 = vmatpush1.msra.mxu0 0.0
    %2413 = vmatprep.subr.mxu0 0.0
    %2414 = vmatpush1.msra.mxu0 0.0
    %2415 = vmatprep.subr.mxu0 0.0
    %2416 = vmatpush1.msra.mxu0 0.0
    %2417 = vmatprep.subr.mxu0 0.0
    %2418 = vmatpush1.msra.mxu0 0.0
    %2419 = vmatprep.subr.mxu0 0.0
    %2420 = vmatpush1.msra.mxu0 0.0
    %2421 = vmatprep.subr.mxu0 0.0
    %2422 = vmatpush1.msra.mxu0 0.0
    %2423 = vmatprep.subr.mxu0 0.0
    %2424 = vmatpush1.msra.mxu0 0.0
    %2425 = vmatprep.subr.mxu0 0.0
    %2426 = vmatpush1.msra.mxu0 0.0
    %2427 = vmatprep.subr.mxu0 0.0
    %2428 = vmatpush1.msra.mxu0 0.0
    %2429 = vmatprep.subr.mxu0 0.0
    %2430 = vmatpush1.msra.mxu0 0.0
    %2431 = vmatprep.subr.mxu0 0.0
    %2432 = vmatpush1.msra.mxu0 0.0
    %2433 = vmatprep.subr.mxu0 0.0
    %2434 = vmatpush1.msra.mxu0 0.0
    %2435 = vmatprep.subr.mxu0 0.0
    %2436 = vmatpush1.msra.mxu0 0.0
    %2437 = vmatprep.mubr.f32.mxu0 0.0
    %2438 = vmatmul.mubr.f32.gmra.mrb[0].mxu0 %v201
    %v2439 = vpop.f32.mrb[0].mxu0
    %v2440 = vadd.f32 0.0, %v2439
    %v2441 = vpop.f32.mrb[0].mxu0
    %2442 = vdwg.mxu0
    %2443 = vmatprep.subr.mxu0 0.0
    %2444 = vmatpush1.msra.mxu0 %v183
    %2445 = vmatprep.subr.mxu0 0.0
    %2446 = vmatpush1.msra.mxu0 %v184
    %2447 = vmatprep.subr.mxu0 0.0
    %2448 = vmatpush1.msra.mxu0 0.0
    %2449 = vmatprep.subr.mxu0 0.0
    %2450 = vmatpush1.msra.mxu0 0.0
    %2451 = vmatprep.subr.mxu0 0.0
    %2452 = vmatpush1.msra.mxu0 0.0
    %2453 = vmatprep.subr.mxu0 0.0
    %2454 = vmatpush1.msra.mxu0 0.0
    %2455 = vmatprep.subr.mxu0 0.0
    %2456 = vmatpush1.msra.mxu0 0.0
    %2457 = vmatprep.subr.mxu0 0.0
    %2458 = vmatpush1.msra.mxu0 0.0
    %2459 = vmatprep.subr.mxu0 0.0
    %2460 = vmatpush1.msra.mxu0 0.0
    %2461 = vmatprep.subr.mxu0 0.0
    %2462 = vmatpush1.msra.mxu0 0.0
    %2463 = vmatprep.subr.mxu0 0.0
    %2464 = vmatpush1.msra.mxu0 0.0
    %2465 = vmatprep.subr.mxu0 0.0
    %2466 = vmatpush1.msra.mxu0 0.0
    %2467 = vmatprep.subr.mxu0 0.0
    %2468 = vmatpush1.msra.mxu0 0.0
    %2469 = vmatprep.subr.mxu0 0.0
    %2470 = vmatpush1.msra.mxu0 0.0
    %2471 = vmatprep.subr.mxu0 0.0
    %2472 = vmatpush1.msra.mxu0 0.0
    %2473 = vmatprep.subr.mxu0 0.0
    %2474 = vmatpush1.msra.mxu0 0.0
    %2475 = vmatprep.subr.mxu0 0.0
    %2476 = vmatpush1.msra.mxu0 0.0
    %2477 = vmatprep.subr.mxu0 0.0
    %2478 = vmatpush1.msra.mxu0 0.0
    %2479 = vmatprep.subr.mxu0 0.0
    %2480 = vmatpush1.msra.mxu0 0.0
    %2481 = vmatprep.subr.mxu0 0.0
    %2482 = vmatpush1.msra.mxu0 0.0
    %2483 = vmatprep.subr.mxu0 0.0
    %2484 = vmatpush1.msra.mxu0 0.0
    %2485 = vmatprep.subr.mxu0 0.0
    %2486 = vmatpush1.msra.mxu0 0.0
    %2487 = vmatprep.subr.mxu0 0.0
    %2488 = vmatpush1.msra.mxu0 0.0
    %2489 = vmatprep.subr.mxu0 0.0
    %2490 = vmatpush1.msra.mxu0 0.0
    %2491 = vmatprep.subr.mxu0 0.0
    %2492 = vmatpush1.msra.mxu0 0.0
    %2493 = vmatprep.subr.mxu0 0.0
    %2494 = vmatpush1.msra.mxu0 0.0
    %2495 = vmatprep.subr.mxu0 0.0
    %2496 = vmatpush1.msra.mxu0 0.0
    %2497 = vmatprep.subr.mxu0 0.0
    %2498 = vmatpush1.msra.mxu0 0.0
    %2499 = vmatprep.subr.mxu0 0.0
    %2500 = vmatpush1.msra.mxu0 0.0
    %2501 = vmatprep.subr.mxu0 0.0
    %2502 = vmatpush1.msra.mxu0 0.0
    %2503 = vmatprep.subr.mxu0 0.0
    %2504 = vmatpush1.msra.mxu0 0.0
    %2505 = vmatprep.subr.mxu0 0.0
    %2506 = vmatpush1.msra.mxu0 0.0
    %2507 = vmatprep.mubr.f32.mxu0 0.0
    %2508 = vmatmul.mubr.f32.gmra.mrb[0].mxu0 %v201
    %v2509 = vpop.f32.mrb[0].mxu0
    %v2510 = vadd.f32 0.0, %v2509
    %v2511 = vpop.f32.mrb[0].mxu0
    %2512 = vdwg.mxu0
    %2513 = vmatprep.subr.mxu0 0.0
    %2514 = vmatpush1.msra.mxu0 %v185
    %2515 = vmatprep.subr.mxu0 0.0
    %2516 = vmatpush1.msra.mxu0 %v186
    %2517 = vmatprep.subr.mxu0 0.0
    %2518 = vmatpush1.msra.mxu0 0.0
    %2519 = vmatprep.subr.mxu0 0.0
    %2520 = vmatpush1.msra.mxu0 0.0
    %2521 = vmatprep.subr.mxu0 0.0
    %2522 = vmatpush1.msra.mxu0 0.0
    %2523 = vmatprep.subr.mxu0 0.0
    %2524 = vmatpush1.msra.mxu0 0.0
    %2525 = vmatprep.subr.mxu0 0.0
    %2526 = vmatpush1.msra.mxu0 0.0
    %2527 = vmatprep.subr.mxu0 0.0
    %2528 = vmatpush1.msra.mxu0 0.0
    %2529 = vmatprep.subr.mxu0 0.0
    %2530 = vmatpush1.msra.mxu0 0.0
    %2531 = vmatprep.subr.mxu0 0.0
    %2532 = vmatpush1.msra.mxu0 0.0
    %2533 = vmatprep.subr.mxu0 0.0
    %2534 = vmatpush1.msra.mxu0 0.0
    %2535 = vmatprep.subr.mxu0 0.0
    %2536 = vmatpush1.msra.mxu0 0.0
    %2537 = vmatprep.subr.mxu0 0.0
    %2538 = vmatpush1.msra.mxu0 0.0
    %2539 = vmatprep.subr.mxu0 0.0
    %2540 = vmatpush1.msra.mxu0 0.0
    %2541 = vmatprep.subr.mxu0 0.0
    %2542 = vmatpush1.msra.mxu0 0.0
    %2543 = vmatprep.subr.mxu0 0.0
    %2544 = vmatpush1.msra.mxu0 0.0
    %2545 = vmatprep.subr.mxu0 0.0
    %2546 = vmatpush1.msra.mxu0 0.0
    %2547 = vmatprep.subr.mxu0 0.0
    %2548 = vmatpush1.msra.mxu0 0.0
    %2549 = vmatprep.subr.mxu0 0.0
    %2550 = vmatpush1.msra.mxu0 0.0
    %2551 = vmatprep.subr.mxu0 0.0
    %2552 = vmatpush1.msra.mxu0 0.0
    %2553 = vmatprep.subr.mxu0 0.0
    %2554 = vmatpush1.msra.mxu0 0.0
    %2555 = vmatprep.subr.mxu0 0.0
    %2556 = vmatpush1.msra.mxu0 0.0
    %2557 = vmatprep.subr.mxu0 0.0
    %2558 = vmatpush1.msra.mxu0 0.0
    %2559 = vmatprep.subr.mxu0 0.0
    %2560 = vmatpush1.msra.mxu0 0.0
    %2561 = vmatprep.subr.mxu0 0.0
    %2562 = vmatpush1.msra.mxu0 0.0
    %2563 = vmatprep.subr.mxu0 0.0
    %2564 = vmatpush1.msra.mxu0 0.0
    %2565 = vmatprep.subr.mxu0 0.0
    %2566 = vmatpush1.msra.mxu0 0.0
    %2567 = vmatprep.subr.mxu0 0.0
    %2568 = vmatpush1.msra.mxu0 0.0
    %2569 = vmatprep.subr.mxu0 0.0
    %2570 = vmatpush1.msra.mxu0 0.0
    %2571 = vmatprep.subr.mxu0 0.0
    %2572 = vmatpush1.msra.mxu0 0.0
    %2573 = vmatprep.subr.mxu0 0.0
    %2574 = vmatpush1.msra.mxu0 0.0
    %2575 = vmatprep.subr.mxu0 0.0
    %2576 = vmatpush1.msra.mxu0 0.0
    %2577 = vmatprep.mubr.f32.mxu0 0.0
    %2578 = vmatmul.mubr.f32.gmra.mrb[0].mxu0 %v201
    %v2579 = vpop.f32.mrb[0].mxu0
    %v2580 = vadd.f32 0.0, %v2579
    %v2581 = vpop.f32.mrb[0].mxu0
    %2582 = vdwg.mxu0
    %2583 = vmatprep.subr.mxu0 0.0
    %2584 = vmatpush1.msra.mxu0 %v187
    %2585 = vmatprep.subr.mxu0 0.0
    %2586 = vmatpush1.msra.mxu0 %v188
    %2587 = vmatprep.subr.mxu0 0.0
    %2588 = vmatpush1.msra.mxu0 0.0
    %2589 = vmatprep.subr.mxu0 0.0
    %2590 = vmatpush1.msra.mxu0 0.0
    %2591 = vmatprep.subr.mxu0 0.0
    %2592 = vmatpush1.msra.mxu0 0.0
    %2593 = vmatprep.subr.mxu0 0.0
    %2594 = vmatpush1.msra.mxu0 0.0
    %2595 = vmatprep.subr.mxu0 0.0
    %2596 = vmatpush1.msra.mxu0 0.0
    %2597 = vmatprep.subr.mxu0 0.0
    %2598 = vmatpush1.msra.mxu0 0.0
    %2599 = vmatprep.subr.mxu0 0.0
    %2600 = vmatpush1.msra.mxu0 0.0
    %2601 = vmatprep.subr.mxu0 0.0
    %2602 = vmatpush1.msra.mxu0 0.0
    %2603 = vmatprep.subr.mxu0 0.0
    %2604 = vmatpush1.msra.mxu0 0.0
    %2605 = vmatprep.subr.mxu0 0.0
    %2606 = vmatpush1.msra.mxu0 0.0
    %2607 = vmatprep.subr.mxu0 0.0
    %2608 = vmatpush1.msra.mxu0 0.0
    %2609 = vmatprep.subr.mxu0 0.0
    %2610 = vmatpush1.msra.mxu0 0.0
    %2611 = vmatprep.subr.mxu0 0.0
    %2612 = vmatpush1.msra.mxu0 0.0
    %2613 = vmatprep.subr.mxu0 0.0
    %2614 = vmatpush1.msra.mxu0 0.0
    %2615 = vmatprep.subr.mxu0 0.0
    %2616 = vmatpush1.msra.mxu0 0.0
    %2617 = vmatprep.subr.mxu0 0.0
    %2618 = vmatpush1.msra.mxu0 0.0
    %2619 = vmatprep.subr.mxu0 0.0
    %2620 = vmatpush1.msra.mxu0 0.0
    %2621 = vmatprep.subr.mxu0 0.0
    %2622 = vmatpush1.msra.mxu0 0.0
    %2623 = vmatprep.subr.mxu0 0.0
    %2624 = vmatpush1.msra.mxu0 0.0
    %2625 = vmatprep.subr.mxu0 0.0
    %2626 = vmatpush1.msra.mxu0 0.0
    %2627 = vmatprep.subr.mxu0 0.0
    %2628 = vmatpush1.msra.mxu0 0.0
    %2629 = vmatprep.subr.mxu0 0.0
    %2630 = vmatpush1.msra.mxu0 0.0
    %2631 = vmatprep.subr.mxu0 0.0
    %2632 = vmatpush1.msra.mxu0 0.0
    %2633 = vmatprep.subr.mxu0 0.0
    %2634 = vmatpush1.msra.mxu0 0.0
    %2635 = vmatprep.subr.mxu0 0.0
    %2636 = vmatpush1.msra.mxu0 0.0
    %2637 = vmatprep.subr.mxu0 0.0
    %2638 = vmatpush1.msra.mxu0 0.0
    %2639 = vmatprep.subr.mxu0 0.0
    %2640 = vmatpush1.msra.mxu0 0.0
    %2641 = vmatprep.subr.mxu0 0.0
    %2642 = vmatpush1.msra.mxu0 0.0
    %2643 = vmatprep.subr.mxu0 0.0
    %2644 = vmatpush1.msra.mxu0 0.0
    %2645 = vmatprep.subr.mxu0 0.0
    %2646 = vmatpush1.msra.mxu0 0.0
    %2647 = vmatprep.mubr.f32.mxu0 0.0
    %2648 = vmatmul.mubr.f32.gmra.mrb[0].mxu0 %v201
    %v2649 = vpop.f32.mrb[0].mxu0
    %v2650 = vadd.f32 0.0, %v2649
    %v2651 = vpop.f32.mrb[0].mxu0
    %2652 = vdwg.mxu0
    %2653 = vmatprep.subr.mxu0 0.0
    %2654 = vmatpush1.msra.mxu0 %v189
    %2655 = vmatprep.subr.mxu0 0.0
    %2656 = vmatpush1.msra.mxu0 %v190
    %2657 = vmatprep.subr.mxu0 0.0
    %2658 = vmatpush1.msra.mxu0 0.0
    %2659 = vmatprep.subr.mxu0 0.0
    %2660 = vmatpush1.msra.mxu0 0.0
    %2661 = vmatprep.subr.mxu0 0.0
    %2662 = vmatpush1.msra.mxu0 0.0
    %2663 = vmatprep.subr.mxu0 0.0
    %2664 = vmatpush1.msra.mxu0 0.0
    %2665 = vmatprep.subr.mxu0 0.0
    %2666 = vmatpush1.msra.mxu0 0.0
    %2667 = vmatprep.subr.mxu0 0.0
    %2668 = vmatpush1.msra.mxu0 0.0
    %2669 = vmatprep.subr.mxu0 0.0
    %2670 = vmatpush1.msra.mxu0 0.0
    %2671 = vmatprep.subr.mxu0 0.0
    %2672 = vmatpush1.msra.mxu0 0.0
    %2673 = vmatprep.subr.mxu0 0.0
    %2674 = vmatpush1.msra.mxu0 0.0
    %2675 = vmatprep.subr.mxu0 0.0
    %2676 = vmatpush1.msra.mxu0 0.0
    %2677 = vmatprep.subr.mxu0 0.0
    %2678 = vmatpush1.msra.mxu0 0.0
    %2679 = vmatprep.subr.mxu0 0.0
    %2680 = vmatpush1.msra.mxu0 0.0
    %2681 = vmatprep.subr.mxu0 0.0
    %2682 = vmatpush1.msra.mxu0 0.0
    %2683 = vmatprep.subr.mxu0 0.0
    %2684 = vmatpush1.msra.mxu0 0.0
    %2685 = vmatprep.subr.mxu0 0.0
    %2686 = vmatpush1.msra.mxu0 0.0
    %2687 = vmatprep.subr.mxu0 0.0
    %2688 = vmatpush1.msra.mxu0 0.0
    %2689 = vmatprep.subr.mxu0 0.0
    %2690 = vmatpush1.msra.mxu0 0.0
    %2691 = vmatprep.subr.mxu0 0.0
    %2692 = vmatpush1.msra.mxu0 0.0
    %2693 = vmatprep.subr.mxu0 0.0
    %2694 = vmatpush1.msra.mxu0 0.0
    %2695 = vmatprep.subr.mxu0 0.0
    %2696 = vmatpush1.msra.mxu0 0.0
    %2697 = vmatprep.subr.mxu0 0.0
    %2698 = vmatpush1.msra.mxu0 0.0
    %2699 = vmatprep.subr.mxu0 0.0
    %2700 = vmatpush1.msra.mxu0 0.0
    %2701 = vmatprep.subr.mxu0 0.0
    %2702 = vmatpush1.msra.mxu0 0.0
    %2703 = vmatprep.subr.mxu0 0.0
    %2704 = vmatpush1.msra.mxu0 0.0
    %2705 = vmatprep.subr.mxu0 0.0
    %2706 = vmatpush1.msra.mxu0 0.0
    %2707 = vmatprep.subr.mxu0 0.0
    %2708 = vmatpush1.msra.mxu0 0.0
    %2709 = vmatprep.subr.mxu0 0.0
    %2710 = vmatpush1.msra.mxu0 0.0
    %2711 = vmatprep.subr.mxu0 0.0
    %2712 = vmatpush1.msra.mxu0 0.0
    %2713 = vmatprep.subr.mxu0 0.0
    %2714 = vmatpush1.msra.mxu0 0.0
    %2715 = vmatprep.subr.mxu0 0.0
    %2716 = vmatpush1.msra.mxu0 0.0
    %2717 = vmatprep.mubr.f32.mxu0 0.0
    %2718 = vmatmul.mubr.f32.gmra.mrb[0].mxu0 %v201
    %v2719 = vpop.f32.mrb[0].mxu0
    %v2720 = vadd.f32 0.0, %v2719
    %v2721 = vpop.f32.mrb[0].mxu0
    %2722 = vdwg.mxu0
    %2723 = vmatprep.subr.mxu0 0.0
    %2724 = vmatpush1.msra.mxu0 %v191
    %2725 = vmatprep.subr.mxu0 0.0
    %2726 = vmatpush1.msra.mxu0 %v192
    %2727 = vmatprep.subr.mxu0 0.0
    %2728 = vmatpush1.msra.mxu0 0.0
    %2729 = vmatprep.subr.mxu0 0.0
    %2730 = vmatpush1.msra.mxu0 0.0
    %2731 = vmatprep.subr.mxu0 0.0
    %2732 = vmatpush1.msra.mxu0 0.0
    %2733 = vmatprep.subr.mxu0 0.0
    %2734 = vmatpush1.msra.mxu0 0.0
    %2735 = vmatprep.subr.mxu0 0.0
    %2736 = vmatpush1.msra.mxu0 0.0
    %2737 = vmatprep.subr.mxu0 0.0
    %2738 = vmatpush1.msra.mxu0 0.0
    %2739 = vmatprep.subr.mxu0 0.0
    %2740 = vmatpush1.msra.mxu0 0.0
    %2741 = vmatprep.subr.mxu0 0.0
    %2742 = vmatpush1.msra.mxu0 0.0
    %2743 = vmatprep.subr.mxu0 0.0
    %2744 = vmatpush1.msra.mxu0 0.0
    %2745 = vmatprep.subr.mxu0 0.0
    %2746 = vmatpush1.msra.mxu0 0.0
    %2747 = vmatprep.subr.mxu0 0.0
    %2748 = vmatpush1.msra.mxu0 0.0
    %2749 = vmatprep.subr.mxu0 0.0
    %2750 = vmatpush1.msra.mxu0 0.0
    %2751 = vmatprep.subr.mxu0 0.0
    %2752 = vmatpush1.msra.mxu0 0.0
    %2753 = vmatprep.subr.mxu0 0.0
    %2754 = vmatpush1.msra.mxu0 0.0
    %2755 = vmatprep.subr.mxu0 0.0
    %2756 = vmatpush1.msra.mxu0 0.0
    %2757 = vmatprep.subr.mxu0 0.0
    %2758 = vmatpush1.msra.mxu0 0.0
    %2759 = vmatprep.subr.mxu0 0.0
    %2760 = vmatpush1.msra.mxu0 0.0
    %2761 = vmatprep.subr.mxu0 0.0
    %2762 = vmatpush1.msra.mxu0 0.0
    %2763 = vmatprep.subr.mxu0 0.0
    %2764 = vmatpush1.msra.mxu0 0.0
    %2765 = vmatprep.subr.mxu0 0.0
    %2766 = vmatpush1.msra.mxu0 0.0
    %2767 = vmatprep.subr.mxu0 0.0
    %2768 = vmatpush1.msra.mxu0 0.0
    %2769 = vmatprep.subr.mxu0 0.0
    %2770 = vmatpush1.msra.mxu0 0.0
    %2771 = vmatprep.subr.mxu0 0.0
    %2772 = vmatpush1.msra.mxu0 0.0
    %2773 = vmatprep.subr.mxu0 0.0
    %2774 = vmatpush1.msra.mxu0 0.0
    %2775 = vmatprep.subr.mxu0 0.0
    %2776 = vmatpush1.msra.mxu0 0.0
    %2777 = vmatprep.subr.mxu0 0.0
    %2778 = vmatpush1.msra.mxu0 0.0
    %2779 = vmatprep.subr.mxu0 0.0
    %2780 = vmatpush1.msra.mxu0 0.0
    %2781 = vmatprep.subr.mxu0 0.0
    %2782 = vmatpush1.msra.mxu0 0.0
    %2783 = vmatprep.subr.mxu0 0.0
    %2784 = vmatpush1.msra.mxu0 0.0
    %2785 = vmatprep.subr.mxu0 0.0
    %2786 = vmatpush1.msra.mxu0 0.0
    %2787 = vmatprep.mubr.f32.mxu0 0.0
    %2788 = vmatmul.mubr.f32.gmra.mrb[0].mxu0 %v201
    %v2789 = vpop.f32.mrb[0].mxu0
    %v2790 = vadd.f32 0.0, %v2789
    %v2791 = vpop.f32.mrb[0].mxu0
    %2792 = vdwg.mxu0
    %2793 = vmatprep.subr.mxu0 0.0
    %2794 = vmatpush1.msra.mxu0 %v193
    %2795 = vmatprep.subr.mxu0 0.0
    %2796 = vmatpush1.msra.mxu0 %v194
    %2797 = vmatprep.subr.mxu0 0.0
    %2798 = vmatpush1.msra.mxu0 0.0
    %2799 = vmatprep.subr.mxu0 0.0
    %2800 = vmatpush1.msra.mxu0 0.0
    %2801 = vmatprep.subr.mxu0 0.0
    %2802 = vmatpush1.msra.mxu0 0.0
    %2803 = vmatprep.subr.mxu0 0.0
    %2804 = vmatpush1.msra.mxu0 0.0
    %2805 = vmatprep.subr.mxu0 0.0
    %2806 = vmatpush1.msra.mxu0 0.0
    %2807 = vmatprep.subr.mxu0 0.0
    %2808 = vmatpush1.msra.mxu0 0.0
    %2809 = vmatprep.subr.mxu0 0.0
    %2810 = vmatpush1.msra.mxu0 0.0
    %2811 = vmatprep.subr.mxu0 0.0
    %2812 = vmatpush1.msra.mxu0 0.0
    %2813 = vmatprep.subr.mxu0 0.0
    %2814 = vmatpush1.msra.mxu0 0.0
    %2815 = vmatprep.subr.mxu0 0.0
    %2816 = vmatpush1.msra.mxu0 0.0
    %2817 = vmatprep.subr.mxu0 0.0
    %2818 = vmatpush1.msra.mxu0 0.0
    %2819 = vmatprep.subr.mxu0 0.0
    %2820 = vmatpush1.msra.mxu0 0.0
    %2821 = vmatprep.subr.mxu0 0.0
    %2822 = vmatpush1.msra.mxu0 0.0
    %2823 = vmatprep.subr.mxu0 0.0
    %2824 = vmatpush1.msra.mxu0 0.0
    %2825 = vmatprep.subr.mxu0 0.0
    %2826 = vmatpush1.msra.mxu0 0.0
    %2827 = vmatprep.subr.mxu0 0.0
    %2828 = vmatpush1.msra.mxu0 0.0
    %2829 = vmatprep.subr.mxu0 0.0
    %2830 = vmatpush1.msra.mxu0 0.0
    %2831 = vmatprep.subr.mxu0 0.0
    %2832 = vmatpush1.msra.mxu0 0.0
    %2833 = vmatprep.subr.mxu0 0.0
    %2834 = vmatpush1.msra.mxu0 0.0
    %2835 = vmatprep.subr.mxu0 0.0
    %2836 = vmatpush1.msra.mxu0 0.0
    %2837 = vmatprep.subr.mxu0 0.0
    %2838 = vmatpush1.msra.mxu0 0.0
    %2839 = vmatprep.subr.mxu0 0.0
    %2840 = vmatpush1.msra.mxu0 0.0
    %2841 = vmatprep.subr.mxu0 0.0
    %2842 = vmatpush1.msra.mxu0 0.0
    %2843 = vmatprep.subr.mxu0 0.0
    %2844 = vmatpush1.msra.mxu0 0.0
    %2845 = vmatprep.subr.mxu0 0.0
    %2846 = vmatpush1.msra.mxu0 0.0
    %2847 = vmatprep.subr.mxu0 0.0
    %2848 = vmatpush1.msra.mxu0 0.0
    %2849 = vmatprep.subr.mxu0 0.0
    %2850 = vmatpush1.msra.mxu0 0.0
    %2851 = vmatprep.subr.mxu0 0.0
    %2852 = vmatpush1.msra.mxu0 0.0
    %2853 = vmatprep.subr.mxu0 0.0
    %2854 = vmatpush1.msra.mxu0 0.0
    %2855 = vmatprep.subr.mxu0 0.0
    %2856 = vmatpush1.msra.mxu0 0.0
    %2857 = vmatprep.mubr.f32.mxu0 0.0
    %2858 = vmatmul.mubr.f32.gmra.mrb[0].mxu0 %v201
    %v2859 = vpop.f32.mrb[0].mxu0
    %v2860 = vadd.f32 0.0, %v2859
    %v2861 = vpop.f32.mrb[0].mxu0
    %2862 = vdwg.mxu0
    %2863 = vmatprep.subr.mxu0 0.0
    %2864 = vmatpush1.msra.mxu0 %v195
    %2865 = vmatprep.subr.mxu0 0.0
    %2866 = vmatpush1.msra.mxu0 %v196
    %2867 = vmatprep.subr.mxu0 0.0
    %2868 = vmatpush1.msra.mxu0 0.0
    %2869 = vmatprep.subr.mxu0 0.0
    %2870 = vmatpush1.msra.mxu0 0.0
    %2871 = vmatprep.subr.mxu0 0.0
    %2872 = vmatpush1.msra.mxu0 0.0
    %2873 = vmatprep.subr.mxu0 0.0
    %2874 = vmatpush1.msra.mxu0 0.0
    %2875 = vmatprep.subr.mxu0 0.0
    %2876 = vmatpush1.msra.mxu0 0.0
    %2877 = vmatprep.subr.mxu0 0.0
    %2878 = vmatpush1.msra.mxu0 0.0
    %2879 = vmatprep.subr.mxu0 0.0
    %2880 = vmatpush1.msra.mxu0 0.0
    %2881 = vmatprep.subr.mxu0 0.0
    %2882 = vmatpush1.msra.mxu0 0.0
    %2883 = vmatprep.subr.mxu0 0.0
    %2884 = vmatpush1.msra.mxu0 0.0
    %2885 = vmatprep.subr.mxu0 0.0
    %2886 = vmatpush1.msra.mxu0 0.0
    %2887 = vmatprep.subr.mxu0 0.0
    %2888 = vmatpush1.msra.mxu0 0.0
    %2889 = vmatprep.subr.mxu0 0.0
    %2890 = vmatpush1.msra.mxu0 0.0
    %2891 = vmatprep.subr.mxu0 0.0
    %2892 = vmatpush1.msra.mxu0 0.0
    %2893 = vmatprep.subr.mxu0 0.0
    %2894 = vmatpush1.msra.mxu0 0.0
    %2895 = vmatprep.subr.mxu0 0.0
    %2896 = vmatpush1.msra.mxu0 0.0
    %2897 = vmatprep.subr.mxu0 0.0
    %2898 = vmatpush1.msra.mxu0 0.0
    %2899 = vmatprep.subr.mxu0 0.0
    %2900 = vmatpush1.msra.mxu0 0.0
    %2901 = vmatprep.subr.mxu0 0.0
    %2902 = vmatpush1.msra.mxu0 0.0
    %2903 = vmatprep.subr.mxu0 0.0
    %2904 = vmatpush1.msra.mxu0 0.0
    %2905 = vmatprep.subr.mxu0 0.0
    %2906 = vmatpush1.msra.mxu0 0.0
    %2907 = vmatprep.subr.mxu0 0.0
    %2908 = vmatpush1.msra.mxu0 0.0
    %2909 = vmatprep.subr.mxu0 0.0
    %2910 = vmatpush1.msra.mxu0 0.0
    %2911 = vmatprep.subr.mxu0 0.0
    %2912 = vmatpush1.msra.mxu0 0.0
    %2913 = vmatprep.subr.mxu0 0.0
    %2914 = vmatpush1.msra.mxu0 0.0
    %2915 = vmatprep.subr.mxu0 0.0
    %2916 = vmatpush1.msra.mxu0 0.0
    %2917 = vmatprep.subr.mxu0 0.0
    %2918 = vmatpush1.msra.mxu0 0.0
    %2919 = vmatprep.subr.mxu0 0.0
    %2920 = vmatpush1.msra.mxu0 0.0
    %2921 = vmatprep.subr.mxu0 0.0
    %2922 = vmatpush1.msra.mxu0 0.0
    %2923 = vmatprep.subr.mxu0 0.0
    %2924 = vmatpush1.msra.mxu0 0.0
    %2925 = vmatprep.subr.mxu0 0.0
    %2926 = vmatpush1.msra.mxu0 0.0
    %2927 = vmatprep.mubr.f32.mxu0 0.0
    %2928 = vmatmul.mubr.f32.gmra.mrb[0].mxu0 %v201
    %v2929 = vpop.f32.mrb[0].mxu0
    %v2930 = vadd.f32 0.0, %v2929
    %v2931 = vpop.f32.mrb[0].mxu0
    %2932 = vdwg.mxu0
    %2933 = vmatprep.subr.mxu0 0.0
    %2934 = vmatpush1.msra.mxu0 %v197
    %2935 = vmatprep.subr.mxu0 0.0
    %2936 = vmatpush1.msra.mxu0 %v198
    %2937 = vmatprep.subr.mxu0 0.0
    %2938 = vmatpush1.msra.mxu0 0.0
    %2939 = vmatprep.subr.mxu0 0.0
    %2940 = vmatpush1.msra.mxu0 0.0
    %2941 = vmatprep.subr.mxu0 0.0
    %2942 = vmatpush1.msra.mxu0 0.0
    %2943 = vmatprep.subr.mxu0 0.0
    %2944 = vmatpush1.msra.mxu0 0.0
    %2945 = vmatprep.subr.mxu0 0.0
    %2946 = vmatpush1.msra.mxu0 0.0
    %2947 = vmatprep.subr.mxu0 0.0
    %2948 = vmatpush1.msra.mxu0 0.0
    %2949 = vmatprep.subr.mxu0 0.0
    %2950 = vmatpush1.msra.mxu0 0.0
    %2951 = vmatprep.subr.mxu0 0.0
    %2952 = vmatpush1.msra.mxu0 0.0
    %2953 = vmatprep.subr.mxu0 0.0
    %2954 = vmatpush1.msra.mxu0 0.0
    %2955 = vmatprep.subr.mxu0 0.0
    %2956 = vmatpush1.msra.mxu0 0.0
    %2957 = vmatprep.subr.mxu0 0.0
    %2958 = vmatpush1.msra.mxu0 0.0
    %2959 = vmatprep.subr.mxu0 0.0
    %2960 = vmatpush1.msra.mxu0 0.0
    %2961 = vmatprep.subr.mxu0 0.0
    %2962 = vmatpush1.msra.mxu0 0.0
    %2963 = vmatprep.subr.mxu0 0.0
    %2964 = vmatpush1.msra.mxu0 0.0
    %2965 = vmatprep.subr.mxu0 0.0
    %2966 = vmatpush1.msra.mxu0 0.0
    %2967 = vmatprep.subr.mxu0 0.0
    %2968 = vmatpush1.msra.mxu0 0.0
    %2969 = vmatprep.subr.mxu0 0.0
    %2970 = vmatpush1.msra.mxu0 0.0
    %2971 = vmatprep.subr.mxu0 0.0
    %2972 = vmatpush1.msra.mxu0 0.0
    %2973 = vmatprep.subr.mxu0 0.0
    %2974 = vmatpush1.msra.mxu0 0.0
    %2975 = vmatprep.subr.mxu0 0.0
    %2976 = vmatpush1.msra.mxu0 0.0
    %2977 = vmatprep.subr.mxu0 0.0
    %2978 = vmatpush1.msra.mxu0 0.0
    %2979 = vmatprep.subr.mxu0 0.0
    %2980 = vmatpush1.msra.mxu0 0.0
    %2981 = vmatprep.subr.mxu0 0.0
    %2982 = vmatpush1.msra.mxu0 0.0
    %2983 = vmatprep.subr.mxu0 0.0
    %2984 = vmatpush1.msra.mxu0 0.0
    %2985 = vmatprep.subr.mxu0 0.0
    %2986 = vmatpush1.msra.mxu0 0.0
    %2987 = vmatprep.subr.mxu0 0.0
    %2988 = vmatpush1.msra.mxu0 0.0
    %2989 = vmatprep.subr.mxu0 0.0
    %2990 = vmatpush1.msra.mxu0 0.0
    %2991 = vmatprep.subr.mxu0 0.0
    %2992 = vmatpush1.msra.mxu0 0.0
    %2993 = vmatprep.subr.mxu0 0.0
    %2994 = vmatpush1.msra.mxu0 0.0
    %2995 = vmatprep.subr.mxu0 0.0
    %2996 = vmatpush1.msra.mxu0 0.0
    %2997 = vmatprep.mubr.f32.mxu0 0.0
    %2998 = vmatmul.mubr.f32.gmra.mrb[0].mxu0 %v201
    %v2999 = vpop.f32.mrb[0].mxu0
    %v3000 = vadd.f32 0.0, %v2999
    %v3001 = vpop.f32.mrb[0].mxu0
    %3002 = vdwg.mxu0
    %v3043 = vcombine.high %v270, %v270
    %v3045 = vunpack.c.l.s4 1983009808
    %v3046 = vunpack.c.0.s8 %v3045
    %v3047 = vlaneseq
    %v3048 = vshrl.u32 %v3047, 7
    %v3049 = vsub.s32 %v3046, %v3048
    %v3050 = vrot.slane %v270, %v3049
    %v3052 = vunpack.c.l.s4 1983009808
    %v3053 = vunpack.c.0.s8 %v3052
    %v3054 = vlaneseq
    %v3055 = vshrl.u32 %v3054, 7
    %v3056 = vsub.s32 %v3053, %v3055
    %v3057 = vrot.slane %v3043, %v3056
    %v3058 = vcombine.high %v3050, %v3050
    %v3059 = vcombine.high %v340, %v340
    %v3061 = vunpack.c.l.s4 1983009808
    %v3062 = vunpack.c.0.s8 %v3061
    %v3063 = vlaneseq
    %v3064 = vshrl.u32 %v3063, 7
    %v3065 = vsub.s32 %v3062, %v3064
    %v3066 = vrot.slane %v340, %v3065
    %v3068 = vunpack.c.l.s4 1983009808
    %v3069 = vunpack.c.0.s8 %v3068
    %v3070 = vlaneseq
    %v3071 = vshrl.u32 %v3070, 7
    %v3072 = vsub.s32 %v3069, %v3071
    %v3073 = vrot.slane %v3059, %v3072
    %v3074 = vcombine.high %v3066, %v3066
    %v3075 = vcombine.high %v410, %v410
    %v3077 = vunpack.c.l.s4 1983009808
    %v3078 = vunpack.c.0.s8 %v3077
    %v3079 = vlaneseq
    %v3080 = vshrl.u32 %v3079, 7
    %v3081 = vsub.s32 %v3078, %v3080
    %v3082 = vrot.slane %v410, %v3081
    %v3084 = vunpack.c.l.s4 1983009808
    %v3085 = vunpack.c.0.s8 %v3084
    %v3086 = vlaneseq
    %v3087 = vshrl.u32 %v3086, 7
    %v3088 = vsub.s32 %v3085, %v3087
    %v3089 = vrot.slane %v3075, %v3088
    %v3090 = vcombine.high %v3082, %v3082
    %v3091 = vcombine.high %v480, %v480
    %v3093 = vunpack.c.l.s4 1983009808
    %v3094 = vunpack.c.0.s8 %v3093
    %v3095 = vlaneseq
    %v3096 = vshrl.u32 %v3095, 7
    %v3097 = vsub.s32 %v3094, %v3096
    %v3098 = vrot.slane %v480, %v3097
    %v3100 = vunpack.c.l.s4 1983009808
    %v3101 = vunpack.c.0.s8 %v3100
    %v3102 = vlaneseq
    %v3103 = vshrl.u32 %v3102, 7
    %v3104 = vsub.s32 %v3101, %v3103
    %v3105 = vrot.slane %v3091, %v3104
    %v3106 = vcombine.high %v3098, %v3098
    %v3107 = vcombine.high %v550, %v550
    %v3109 = vunpack.c.l.s4 1983009808
    %v3110 = vunpack.c.0.s8 %v3109
    %v3111 = vlaneseq
    %v3112 = vshrl.u32 %v3111, 7
    %v3113 = vsub.s32 %v3110, %v3112
    %v3114 = vrot.slane %v550, %v3113
    %v3116 = vunpack.c.l.s4 1983009808
    %v3117 = vunpack.c.0.s8 %v3116
    %v3118 = vlaneseq
    %v3119 = vshrl.u32 %v3118, 7
    %v3120 = vsub.s32 %v3117, %v3119
    %v3121 = vrot.slane %v3107, %v3120
    %v3122 = vcombine.high %v3114, %v3114
    %v3123 = vcombine.high %v620, %v620
    %v3125 = vunpack.c.l.s4 1983009808
    %v3126 = vunpack.c.0.s8 %v3125
    %v3127 = vlaneseq
    %v3128 = vshrl.u32 %v3127, 7
    %v3129 = vsub.s32 %v3126, %v3128
    %v3130 = vrot.slane %v620, %v3129
    %v3132 = vunpack.c.l.s4 1983009808
    %v3133 = vunpack.c.0.s8 %v3132
    %v3134 = vlaneseq
    %v3135 = vshrl.u32 %v3134, 7
    %v3136 = vsub.s32 %v3133, %v3135
    %v3137 = vrot.slane %v3123, %v3136
    %v3138 = vcombine.high %v3130, %v3130
    %v3139 = vcombine.high %v690, %v690
    %v3141 = vunpack.c.l.s4 1983009808
    %v3142 = vunpack.c.0.s8 %v3141
    %v3143 = vlaneseq
    %v3144 = vshrl.u32 %v3143, 7
    %v3145 = vsub.s32 %v3142, %v3144
    %v3146 = vrot.slane %v690, %v3145
    %v3148 = vunpack.c.l.s4 1983009808
    %v3149 = vunpack.c.0.s8 %v3148
    %v3150 = vlaneseq
    %v3151 = vshrl.u32 %v3150, 7
    %v3152 = vsub.s32 %v3149, %v3151
    %v3153 = vrot.slane %v3139, %v3152
    %v3154 = vcombine.high %v3146, %v3146
    %v3155 = vcombine.high %v760, %v760
    %v3157 = vunpack.c.l.s4 1983009808
    %v3158 = vunpack.c.0.s8 %v3157
    %v3159 = vlaneseq
    %v3160 = vshrl.u32 %v3159, 7
    %v3161 = vsub.s32 %v3158, %v3160
    %v3162 = vrot.slane %v760, %v3161
    %v3164 = vunpack.c.l.s4 1983009808
    %v3165 = vunpack.c.0.s8 %v3164
    %v3166 = vlaneseq
    %v3167 = vshrl.u32 %v3166, 7
    %v3168 = vsub.s32 %v3165, %v3167
    %v3169 = vrot.slane %v3155, %v3168
    %v3170 = vcombine.high %v3162, %v3162
    %v3171 = vcombine.high %v830, %v830
    %v3173 = vunpack.c.l.s4 1983009808
    %v3174 = vunpack.c.0.s8 %v3173
    %v3175 = vlaneseq
    %v3176 = vshrl.u32 %v3175, 7
    %v3177 = vsub.s32 %v3174, %v3176
    %v3178 = vrot.slane %v830, %v3177
    %v3180 = vunpack.c.l.s4 1983009808
    %v3181 = vunpack.c.0.s8 %v3180
    %v3182 = vlaneseq
    %v3183 = vshrl.u32 %v3182, 7
    %v3184 = vsub.s32 %v3181, %v3183
    %v3185 = vrot.slane %v3171, %v3184
    %v3186 = vcombine.high %v3178, %v3178
    %v3187 = vcombine.high %v900, %v900
    %v3189 = vunpack.c.l.s4 1983009808
    %v3190 = vunpack.c.0.s8 %v3189
    %v3191 = vlaneseq
    %v3192 = vshrl.u32 %v3191, 7
    %v3193 = vsub.s32 %v3190, %v3192
    %v3194 = vrot.slane %v900, %v3193
    %v3196 = vunpack.c.l.s4 1983009808
    %v3197 = vunpack.c.0.s8 %v3196
    %v3198 = vlaneseq
    %v3199 = vshrl.u32 %v3198, 7
    %v3200 = vsub.s32 %v3197, %v3199
    %v3201 = vrot.slane %v3187, %v3200
    %v3202 = vcombine.high %v3194, %v3194
    %v3203 = vcombine.high %v970, %v970
    %v3205 = vunpack.c.l.s4 1983009808
    %v3206 = vunpack.c.0.s8 %v3205
    %v3207 = vlaneseq
    %v3208 = vshrl.u32 %v3207, 7
    %v3209 = vsub.s32 %v3206, %v3208
    %v3210 = vrot.slane %v970, %v3209
    %v3212 = vunpack.c.l.s4 1983009808
    %v3213 = vunpack.c.0.s8 %v3212
    %v3214 = vlaneseq
    %v3215 = vshrl.u32 %v3214, 7
    %v3216 = vsub.s32 %v3213, %v3215
    %v3217 = vrot.slane %v3203, %v3216
    %v3218 = vcombine.high %v3210, %v3210
    %v3219 = vcombine.high %v1040, %v1040
    %v3221 = vunpack.c.l.s4 1983009808
    %v3222 = vunpack.c.0.s8 %v3221
    %v3223 = vlaneseq
    %v3224 = vshrl.u32 %v3223, 7
    %v3225 = vsub.s32 %v3222, %v3224
    %v3226 = vrot.slane %v1040, %v3225
    %v3228 = vunpack.c.l.s4 1983009808
    %v3229 = vunpack.c.0.s8 %v3228
    %v3230 = vlaneseq
    %v3231 = vshrl.u32 %v3230, 7
    %v3232 = vsub.s32 %v3229, %v3231
    %v3233 = vrot.slane %v3219, %v3232
    %v3234 = vcombine.high %v3226, %v3226
    %v3235 = vcombine.high %v1110, %v1110
    %v3237 = vunpack.c.l.s4 1983009808
    %v3238 = vunpack.c.0.s8 %v3237
    %v3239 = vlaneseq
    %v3240 = vshrl.u32 %v3239, 7
    %v3241 = vsub.s32 %v3238, %v3240
    %v3242 = vrot.slane %v1110, %v3241
    %v3244 = vunpack.c.l.s4 1983009808
    %v3245 = vunpack.c.0.s8 %v3244
    %v3246 = vlaneseq
    %v3247 = vshrl.u32 %v3246, 7
    %v3248 = vsub.s32 %v3245, %v3247
    %v3249 = vrot.slane %v3235, %v3248
    %v3250 = vcombine.high %v3242, %v3242
    %v3251 = vcombine.high %v1180, %v1180
    %v3253 = vunpack.c.l.s4 1983009808
    %v3254 = vunpack.c.0.s8 %v3253
    %v3255 = vlaneseq
    %v3256 = vshrl.u32 %v3255, 7
    %v3257 = vsub.s32 %v3254, %v3256
    %v3258 = vrot.slane %v1180, %v3257
    %v3260 = vunpack.c.l.s4 1983009808
    %v3261 = vunpack.c.0.s8 %v3260
    %v3262 = vlaneseq
    %v3263 = vshrl.u32 %v3262, 7
    %v3264 = vsub.s32 %v3261, %v3263
    %v3265 = vrot.slane %v3251, %v3264
    %v3266 = vcombine.high %v3258, %v3258
    %v3267 = vcombine.high %v1250, %v1250
    %v3269 = vunpack.c.l.s4 1983009808
    %v3270 = vunpack.c.0.s8 %v3269
    %v3271 = vlaneseq
    %v3272 = vshrl.u32 %v3271, 7
    %v3273 = vsub.s32 %v3270, %v3272
    %v3274 = vrot.slane %v1250, %v3273
    %v3276 = vunpack.c.l.s4 1983009808
    %v3277 = vunpack.c.0.s8 %v3276
    %v3278 = vlaneseq
    %v3279 = vshrl.u32 %v3278, 7
    %v3280 = vsub.s32 %v3277, %v3279
    %v3281 = vrot.slane %v3267, %v3280
    %v3282 = vcombine.high %v3274, %v3274
    %v3283 = vcombine.high %v1320, %v1320
    %v3285 = vunpack.c.l.s4 1983009808
    %v3286 = vunpack.c.0.s8 %v3285
    %v3287 = vlaneseq
    %v3288 = vshrl.u32 %v3287, 7
    %v3289 = vsub.s32 %v3286, %v3288
    %v3290 = vrot.slane %v1320, %v3289
    %v3292 = vunpack.c.l.s4 1983009808
    %v3293 = vunpack.c.0.s8 %v3292
    %v3294 = vlaneseq
    %v3295 = vshrl.u32 %v3294, 7
    %v3296 = vsub.s32 %v3293, %v3295
    %v3297 = vrot.slane %v3283, %v3296
    %v3298 = vcombine.high %v3290, %v3290
    %v3299 = vcombine.high %v1390, %v1390
    %v3301 = vunpack.c.l.s4 1983009808
    %v3302 = vunpack.c.0.s8 %v3301
    %v3303 = vlaneseq
    %v3304 = vshrl.u32 %v3303, 7
    %v3305 = vsub.s32 %v3302, %v3304
    %v3306 = vrot.slane %v1390, %v3305
    %v3308 = vunpack.c.l.s4 1983009808
    %v3309 = vunpack.c.0.s8 %v3308
    %v3310 = vlaneseq
    %v3311 = vshrl.u32 %v3310, 7
    %v3312 = vsub.s32 %v3309, %v3311
    %v3313 = vrot.slane %v3299, %v3312
    %v3314 = vcombine.high %v3306, %v3306
    %v3315 = vcombine.high %v1460, %v1460
    %v3317 = vunpack.c.l.s4 1983009808
    %v3318 = vunpack.c.0.s8 %v3317
    %v3319 = vlaneseq
    %v3320 = vshrl.u32 %v3319, 7
    %v3321 = vsub.s32 %v3318, %v3320
    %v3322 = vrot.slane %v1460, %v3321
    %v3324 = vunpack.c.l.s4 1983009808
    %v3325 = vunpack.c.0.s8 %v3324
    %v3326 = vlaneseq
    %v3327 = vshrl.u32 %v3326, 7
    %v3328 = vsub.s32 %v3325, %v3327
    %v3329 = vrot.slane %v3315, %v3328
    %v3330 = vcombine.high %v3322, %v3322
    %v3331 = vcombine.high %v1530, %v1530
    %v3333 = vunpack.c.l.s4 1983009808
    %v3334 = vunpack.c.0.s8 %v3333
    %v3335 = vlaneseq
    %v3336 = vshrl.u32 %v3335, 7
    %v3337 = vsub.s32 %v3334, %v3336
    %v3338 = vrot.slane %v1530, %v3337
    %v3340 = vunpack.c.l.s4 1983009808
    %v3341 = vunpack.c.0.s8 %v3340
    %v3342 = vlaneseq
    %v3343 = vshrl.u32 %v3342, 7
    %v3344 = vsub.s32 %v3341, %v3343
    %v3345 = vrot.slane %v3331, %v3344
    %v3346 = vcombine.high %v3338, %v3338
    %v3347 = vcombine.high %v1600, %v1600
    %v3349 = vunpack.c.l.s4 1983009808
    %v3350 = vunpack.c.0.s8 %v3349
    %v3351 = vlaneseq
    %v3352 = vshrl.u32 %v3351, 7
    %v3353 = vsub.s32 %v3350, %v3352
    %v3354 = vrot.slane %v1600, %v3353
    %v3356 = vunpack.c.l.s4 1983009808
    %v3357 = vunpack.c.0.s8 %v3356
    %v3358 = vlaneseq
    %v3359 = vshrl.u32 %v3358, 7
    %v3360 = vsub.s32 %v3357, %v3359
    %v3361 = vrot.slane %v3347, %v3360
    %v3362 = vcombine.high %v3354, %v3354
    %v3363 = vcombine.high %v1670, %v1670
    %v3365 = vunpack.c.l.s4 1983009808
    %v3366 = vunpack.c.0.s8 %v3365
    %v3367 = vlaneseq
    %v3368 = vshrl.u32 %v3367, 7
    %v3369 = vsub.s32 %v3366, %v3368
    %v3370 = vrot.slane %v1670, %v3369
    %v3372 = vunpack.c.l.s4 1983009808
    %v3373 = vunpack.c.0.s8 %v3372
    %v3374 = vlaneseq
    %v3375 = vshrl.u32 %v3374, 7
    %v3376 = vsub.s32 %v3373, %v3375
    %v3377 = vrot.slane %v3363, %v3376
    %v3378 = vcombine.high %v3370, %v3370
    %v3379 = vcombine.high %v1740, %v1740
    %v3381 = vunpack.c.l.s4 1983009808
    %v3382 = vunpack.c.0.s8 %v3381
    %v3383 = vlaneseq
    %v3384 = vshrl.u32 %v3383, 7
    %v3385 = vsub.s32 %v3382, %v3384
    %v3386 = vrot.slane %v1740, %v3385
    %v3388 = vunpack.c.l.s4 1983009808
    %v3389 = vunpack.c.0.s8 %v3388
    %v3390 = vlaneseq
    %v3391 = vshrl.u32 %v3390, 7
    %v3392 = vsub.s32 %v3389, %v3391
    %v3393 = vrot.slane %v3379, %v3392
    %v3394 = vcombine.high %v3386, %v3386
    %v3395 = vcombine.high %v1810, %v1810
    %v3397 = vunpack.c.l.s4 1983009808
    %v3398 = vunpack.c.0.s8 %v3397
    %v3399 = vlaneseq
    %v3400 = vshrl.u32 %v3399, 7
    %v3401 = vsub.s32 %v3398, %v3400
    %v3402 = vrot.slane %v1810, %v3401
    %v3404 = vunpack.c.l.s4 1983009808
    %v3405 = vunpack.c.0.s8 %v3404
    %v3406 = vlaneseq
    %v3407 = vshrl.u32 %v3406, 7
    %v3408 = vsub.s32 %v3405, %v3407
    %v3409 = vrot.slane %v3395, %v3408
    %v3410 = vcombine.high %v3402, %v3402
    %v3411 = vcombine.high %v1880, %v1880
    %v3413 = vunpack.c.l.s4 1983009808
    %v3414 = vunpack.c.0.s8 %v3413
    %v3415 = vlaneseq
    %v3416 = vshrl.u32 %v3415, 7
    %v3417 = vsub.s32 %v3414, %v3416
    %v3418 = vrot.slane %v1880, %v3417
    %v3420 = vunpack.c.l.s4 1983009808
    %v3421 = vunpack.c.0.s8 %v3420
    %v3422 = vlaneseq
    %v3423 = vshrl.u32 %v3422, 7
    %v3424 = vsub.s32 %v3421, %v3423
    %v3425 = vrot.slane %v3411, %v3424
    %v3426 = vcombine.high %v3418, %v3418
    %v3427 = vcombine.high %v1950, %v1950
    %v3429 = vunpack.c.l.s4 1983009808
    %v3430 = vunpack.c.0.s8 %v3429
    %v3431 = vlaneseq
    %v3432 = vshrl.u32 %v3431, 7
    %v3433 = vsub.s32 %v3430, %v3432
    %v3434 = vrot.slane %v1950, %v3433
    %v3436 = vunpack.c.l.s4 1983009808
    %v3437 = vunpack.c.0.s8 %v3436
    %v3438 = vlaneseq
    %v3439 = vshrl.u32 %v3438, 7
    %v3440 = vsub.s32 %v3437, %v3439
    %v3441 = vrot.slane %v3427, %v3440
    %v3442 = vcombine.high %v3434, %v3434
    %v3443 = vcombine.high %v2020, %v2020
    %v3445 = vunpack.c.l.s4 1983009808
    %v3446 = vunpack.c.0.s8 %v3445
    %v3447 = vlaneseq
    %v3448 = vshrl.u32 %v3447, 7
    %v3449 = vsub.s32 %v3446, %v3448
    %v3450 = vrot.slane %v2020, %v3449
    %v3452 = vunpack.c.l.s4 1983009808
    %v3453 = vunpack.c.0.s8 %v3452
    %v3454 = vlaneseq
    %v3455 = vshrl.u32 %v3454, 7
    %v3456 = vsub.s32 %v3453, %v3455
    %v3457 = vrot.slane %v3443, %v3456
    %v3458 = vcombine.high %v3450, %v3450
    %v3459 = vcombine.high %v2090, %v2090
    %v3461 = vunpack.c.l.s4 1983009808
    %v3462 = vunpack.c.0.s8 %v3461
    %v3463 = vlaneseq
    %v3464 = vshrl.u32 %v3463, 7
    %v3465 = vsub.s32 %v3462, %v3464
    %v3466 = vrot.slane %v2090, %v3465
    %v3468 = vunpack.c.l.s4 1983009808
    %v3469 = vunpack.c.0.s8 %v3468
    %v3470 = vlaneseq
    %v3471 = vshrl.u32 %v3470, 7
    %v3472 = vsub.s32 %v3469, %v3471
    %v3473 = vrot.slane %v3459, %v3472
    %v3474 = vcombine.high %v3466, %v3466
    %v3475 = vcombine.high %v2160, %v2160
    %v3477 = vunpack.c.l.s4 1983009808
    %v3478 = vunpack.c.0.s8 %v3477
    %v3479 = vlaneseq
    %v3480 = vshrl.u32 %v3479, 7
    %v3481 = vsub.s32 %v3478, %v3480
    %v3482 = vrot.slane %v2160, %v3481
    %v3484 = vunpack.c.l.s4 1983009808
    %v3485 = vunpack.c.0.s8 %v3484
    %v3486 = vlaneseq
    %v3487 = vshrl.u32 %v3486, 7
    %v3488 = vsub.s32 %v3485, %v3487
    %v3489 = vrot.slane %v3475, %v3488
    %v3490 = vcombine.high %v3482, %v3482
    %v3491 = vcombine.high %v2230, %v2230
    %v3493 = vunpack.c.l.s4 1983009808
    %v3494 = vunpack.c.0.s8 %v3493
    %v3495 = vlaneseq
    %v3496 = vshrl.u32 %v3495, 7
    %v3497 = vsub.s32 %v3494, %v3496
    %v3498 = vrot.slane %v2230, %v3497
    %v3500 = vunpack.c.l.s4 1983009808
    %v3501 = vunpack.c.0.s8 %v3500
    %v3502 = vlaneseq
    %v3503 = vshrl.u32 %v3502, 7
    %v3504 = vsub.s32 %v3501, %v3503
    %v3505 = vrot.slane %v3491, %v3504
    %v3506 = vcombine.high %v3498, %v3498
    %v3507 = vcombine.high %v2300, %v2300
    %v3509 = vunpack.c.l.s4 1983009808
    %v3510 = vunpack.c.0.s8 %v3509
    %v3511 = vlaneseq
    %v3512 = vshrl.u32 %v3511, 7
    %v3513 = vsub.s32 %v3510, %v3512
    %v3514 = vrot.slane %v2300, %v3513
    %v3516 = vunpack.c.l.s4 1983009808
    %v3517 = vunpack.c.0.s8 %v3516
    %v3518 = vlaneseq
    %v3519 = vshrl.u32 %v3518, 7
    %v3520 = vsub.s32 %v3517, %v3519
    %v3521 = vrot.slane %v3507, %v3520
    %v3522 = vcombine.high %v3514, %v3514
    %v3523 = vcombine.high %v2370, %v2370
    %v3525 = vunpack.c.l.s4 1983009808
    %v3526 = vunpack.c.0.s8 %v3525
    %v3527 = vlaneseq
    %v3528 = vshrl.u32 %v3527, 7
    %v3529 = vsub.s32 %v3526, %v3528
    %v3530 = vrot.slane %v2370, %v3529
    %v3532 = vunpack.c.l.s4 1983009808
    %v3533 = vunpack.c.0.s8 %v3532
    %v3534 = vlaneseq
    %v3535 = vshrl.u32 %v3534, 7
    %v3536 = vsub.s32 %v3533, %v3535
    %v3537 = vrot.slane %v3523, %v3536
    %v3538 = vcombine.high %v3530, %v3530
    %v3539 = vcombine.high %v2440, %v2440
    %v3541 = vunpack.c.l.s4 1983009808
    %v3542 = vunpack.c.0.s8 %v3541
    %v3543 = vlaneseq
    %v3544 = vshrl.u32 %v3543, 7
    %v3545 = vsub.s32 %v3542, %v3544
    %v3546 = vrot.slane %v2440, %v3545
    %v3548 = vunpack.c.l.s4 1983009808
    %v3549 = vunpack.c.0.s8 %v3548
    %v3550 = vlaneseq
    %v3551 = vshrl.u32 %v3550, 7
    %v3552 = vsub.s32 %v3549, %v3551
    %v3553 = vrot.slane %v3539, %v3552
    %v3554 = vcombine.high %v3546, %v3546
    %v3555 = vcombine.high %v2510, %v2510
    %v3557 = vunpack.c.l.s4 1983009808
    %v3558 = vunpack.c.0.s8 %v3557
    %v3559 = vlaneseq
    %v3560 = vshrl.u32 %v3559, 7
    %v3561 = vsub.s32 %v3558, %v3560
    %v3562 = vrot.slane %v2510, %v3561
    %v3564 = vunpack.c.l.s4 1983009808
    %v3565 = vunpack.c.0.s8 %v3564
    %v3566 = vlaneseq
    %v3567 = vshrl.u32 %v3566, 7
    %v3568 = vsub.s32 %v3565, %v3567
    %v3569 = vrot.slane %v3555, %v3568
    %v3570 = vcombine.high %v3562, %v3562
    %v3571 = vcombine.high %v2580, %v2580
    %v3573 = vunpack.c.l.s4 1983009808
    %v3574 = vunpack.c.0.s8 %v3573
    %v3575 = vlaneseq
    %v3576 = vshrl.u32 %v3575, 7
    %v3577 = vsub.s32 %v3574, %v3576
    %v3578 = vrot.slane %v2580, %v3577
    %v3580 = vunpack.c.l.s4 1983009808
    %v3581 = vunpack.c.0.s8 %v3580
    %v3582 = vlaneseq
    %v3583 = vshrl.u32 %v3582, 7
    %v3584 = vsub.s32 %v3581, %v3583
    %v3585 = vrot.slane %v3571, %v3584
    %v3586 = vcombine.high %v3578, %v3578
    %v3587 = vcombine.high %v2650, %v2650
    %v3589 = vunpack.c.l.s4 1983009808
    %v3590 = vunpack.c.0.s8 %v3589
    %v3591 = vlaneseq
    %v3592 = vshrl.u32 %v3591, 7
    %v3593 = vsub.s32 %v3590, %v3592
    %v3594 = vrot.slane %v2650, %v3593
    %v3596 = vunpack.c.l.s4 1983009808
    %v3597 = vunpack.c.0.s8 %v3596
    %v3598 = vlaneseq
    %v3599 = vshrl.u32 %v3598, 7
    %v3600 = vsub.s32 %v3597, %v3599
    %v3601 = vrot.slane %v3587, %v3600
    %v3602 = vcombine.high %v3594, %v3594
    %v3603 = vcombine.high %v2720, %v2720
    %v3605 = vunpack.c.l.s4 1983009808
    %v3606 = vunpack.c.0.s8 %v3605
    %v3607 = vlaneseq
    %v3608 = vshrl.u32 %v3607, 7
    %v3609 = vsub.s32 %v3606, %v3608
    %v3610 = vrot.slane %v2720, %v3609
    %v3612 = vunpack.c.l.s4 1983009808
    %v3613 = vunpack.c.0.s8 %v3612
    %v3614 = vlaneseq
    %v3615 = vshrl.u32 %v3614, 7
    %v3616 = vsub.s32 %v3613, %v3615
    %v3617 = vrot.slane %v3603, %v3616
    %v3618 = vcombine.high %v3610, %v3610
    %v3619 = vcombine.high %v2790, %v2790
    %v3621 = vunpack.c.l.s4 1983009808
    %v3622 = vunpack.c.0.s8 %v3621
    %v3623 = vlaneseq
    %v3624 = vshrl.u32 %v3623, 7
    %v3625 = vsub.s32 %v3622, %v3624
    %v3626 = vrot.slane %v2790, %v3625
    %v3628 = vunpack.c.l.s4 1983009808
    %v3629 = vunpack.c.0.s8 %v3628
    %v3630 = vlaneseq
    %v3631 = vshrl.u32 %v3630, 7
    %v3632 = vsub.s32 %v3629, %v3631
    %v3633 = vrot.slane %v3619, %v3632
    %v3634 = vcombine.high %v3626, %v3626
    %v3635 = vcombine.high %v2860, %v2860
    %v3637 = vunpack.c.l.s4 1983009808
    %v3638 = vunpack.c.0.s8 %v3637
    %v3639 = vlaneseq
    %v3640 = vshrl.u32 %v3639, 7
    %v3641 = vsub.s32 %v3638, %v3640
    %v3642 = vrot.slane %v2860, %v3641
    %v3644 = vunpack.c.l.s4 1983009808
    %v3645 = vunpack.c.0.s8 %v3644
    %v3646 = vlaneseq
    %v3647 = vshrl.u32 %v3646, 7
    %v3648 = vsub.s32 %v3645, %v3647
    %v3649 = vrot.slane %v3635, %v3648
    %v3650 = vcombine.high %v3642, %v3642
    %v3651 = vcombine.high %v2930, %v2930
    %v3653 = vunpack.c.l.s4 1983009808
    %v3654 = vunpack.c.0.s8 %v3653
    %v3655 = vlaneseq
    %v3656 = vshrl.u32 %v3655, 7
    %v3657 = vsub.s32 %v3654, %v3656
    %v3658 = vrot.slane %v2930, %v3657
    %v3660 = vunpack.c.l.s4 1983009808
    %v3661 = vunpack.c.0.s8 %v3660
    %v3662 = vlaneseq
    %v3663 = vshrl.u32 %v3662, 7
    %v3664 = vsub.s32 %v3661, %v3663
    %v3665 = vrot.slane %v3651, %v3664
    %v3666 = vcombine.high %v3658, %v3658
    %v3667 = vcombine.high %v3000, %v3000
    %v3669 = vunpack.c.l.s4 1983009808
    %v3670 = vunpack.c.0.s8 %v3669
    %v3671 = vlaneseq
    %v3672 = vshrl.u32 %v3671, 7
    %v3673 = vsub.s32 %v3670, %v3672
    %v3674 = vrot.slane %v3000, %v3673
    %v3676 = vunpack.c.l.s4 1983009808
    %v3677 = vunpack.c.0.s8 %v3676
    %v3678 = vlaneseq
    %v3679 = vshrl.u32 %v3678, 7
    %v3680 = vsub.s32 %v3677, %v3679
    %v3681 = vrot.slane %v3667, %v3680
    %v3682 = vcombine.high %v3674, %v3674
    %v3683 = vld [vmem:[%s3] sm:$0xff]
    %v3684 = vld [vmem:[%s3 + $0x8] sm:$0xff]
    %v3685 = vcombine.low %v3050, %v3058
    %v3686 = vcombine.low %v3057, %v3066
    %v3688 = vunpack.c.l.s4 1983009808
    %v3689 = vunpack.c.0.s8 %v3688
    %v3690 = vlaneseq
    %v3691 = vshrl.u32 %v3690, 7
    %v3692 = vsub.s32 %v3689, %v3691
    %v3693 = vrot.slane %v3685, %v3692
    %v3695 = vunpack.c.l.s4 1983009808
    %v3696 = vunpack.c.0.s8 %v3695
    %v3697 = vlaneseq
    %v3698 = vshrl.u32 %v3697, 7
    %v3699 = vsub.s32 %v3696, %v3698
    %v3700 = vrot.slane %v3686, %v3699
    %v3701 = vcombine.low %v3693, %v3700
    %v3702 = vcombine.low %v3074, %v3073
    %v3703 = vcombine.low %v3082, %v3090
    %v3705 = vunpack.c.l.s4 1983009808
    %v3706 = vunpack.c.0.s8 %v3705
    %v3707 = vlaneseq
    %v3708 = vshrl.u32 %v3707, 7
    %v3709 = vsub.s32 %v3706, %v3708
    %v3710 = vrot.slane %v3702, %v3709
    %v3712 = vunpack.c.l.s4 1983009808
    %v3713 = vunpack.c.0.s8 %v3712
    %v3714 = vlaneseq
    %v3715 = vshrl.u32 %v3714, 7
    %v3716 = vsub.s32 %v3713, %v3715
    %v3717 = vrot.slane %v3703, %v3716
    %v3718 = vcombine.low %v3710, %v3717
    %v3719 = vcombine.low %v3089, %v3098
    %v3720 = vcombine.low %v3106, %v3105
    %v3722 = vunpack.c.l.s4 1983009808
    %v3723 = vunpack.c.0.s8 %v3722
    %v3724 = vlaneseq
    %v3725 = vshrl.u32 %v3724, 7
    %v3726 = vsub.s32 %v3723, %v3725
    %v3727 = vrot.slane %v3719, %v3726
    %v3729 = vunpack.c.l.s4 1983009808
    %v3730 = vunpack.c.0.s8 %v3729
    %v3731 = vlaneseq
    %v3732 = vshrl.u32 %v3731, 7
    %v3733 = vsub.s32 %v3730, %v3732
    %v3734 = vrot.slane %v3720, %v3733
    %v3735 = vcombine.low %v3727, %v3734
    %v3736 = vcombine.low %v3114, %v3122
    %v3737 = vcombine.low %v3121, %v3130
    %v3739 = vunpack.c.l.s4 1983009808
    %v3740 = vunpack.c.0.s8 %v3739
    %v3741 = vlaneseq
    %v3742 = vshrl.u32 %v3741, 7
    %v3743 = vsub.s32 %v3740, %v3742
    %v3744 = vrot.slane %v3736, %v3743
    %v3746 = vunpack.c.l.s4 1983009808
    %v3747 = vunpack.c.0.s8 %v3746
    %v3748 = vlaneseq
    %v3749 = vshrl.u32 %v3748, 7
    %v3750 = vsub.s32 %v3747, %v3749
    %v3751 = vrot.slane %v3737, %v3750
    %v3752 = vcombine.low %v3744, %v3751
    %v3753 = vcombine.low %v3138, %v3137
    %v3754 = vcombine.low %v3146, %v3154
    %v3756 = vunpack.c.l.s4 1983009808
    %v3757 = vunpack.c.0.s8 %v3756
    %v3758 = vlaneseq
    %v3759 = vshrl.u32 %v3758, 7
    %v3760 = vsub.s32 %v3757, %v3759
    %v3761 = vrot.slane %v3753, %v3760
    %v3763 = vunpack.c.l.s4 1983009808
    %v3764 = vunpack.c.0.s8 %v3763
    %v3765 = vlaneseq
    %v3766 = vshrl.u32 %v3765, 7
    %v3767 = vsub.s32 %v3764, %v3766
    %v3768 = vrot.slane %v3754, %v3767
    %v3769 = vcombine.low %v3761, %v3768
    %v3770 = vcombine.low %v3153, %v3162
    %v3771 = vcombine.low %v3170, %v3169
    %v3773 = vunpack.c.l.s4 1983009808
    %v3774 = vunpack.c.0.s8 %v3773
    %v3775 = vlaneseq
    %v3776 = vshrl.u32 %v3775, 7
    %v3777 = vsub.s32 %v3774, %v3776
    %v3778 = vrot.slane %v3770, %v3777
    %v3780 = vunpack.c.l.s4 1983009808
    %v3781 = vunpack.c.0.s8 %v3780
    %v3782 = vlaneseq
    %v3783 = vshrl.u32 %v3782, 7
    %v3784 = vsub.s32 %v3781, %v3783
    %v3785 = vrot.slane %v3771, %v3784
    %v3786 = vcombine.low %v3778, %v3785
    %v3787 = vcombine.low %v3178, %v3186
    %v3788 = vcombine.low %v3185, %v3194
    %v3790 = vunpack.c.l.s4 1983009808
    %v3791 = vunpack.c.0.s8 %v3790
    %v3792 = vlaneseq
    %v3793 = vshrl.u32 %v3792, 7
    %v3794 = vsub.s32 %v3791, %v3793
    %v3795 = vrot.slane %v3787, %v3794
    %v3797 = vunpack.c.l.s4 1983009808
    %v3798 = vunpack.c.0.s8 %v3797
    %v3799 = vlaneseq
    %v3800 = vshrl.u32 %v3799, 7
    %v3801 = vsub.s32 %v3798, %v3800
    %v3802 = vrot.slane %v3788, %v3801
    %v3803 = vcombine.low %v3795, %v3802
    %v3804 = vcombine.low %v3202, %v3201
    %v3805 = vcombine.low %v3210, %v3218
    %v3807 = vunpack.c.l.s4 1983009808
    %v3808 = vunpack.c.0.s8 %v3807
    %v3809 = vlaneseq
    %v3810 = vshrl.u32 %v3809, 7
    %v3811 = vsub.s32 %v3808, %v3810
    %v3812 = vrot.slane %v3804, %v3811
    %v3814 = vunpack.c.l.s4 1983009808
    %v3815 = vunpack.c.0.s8 %v3814
    %v3816 = vlaneseq
    %v3817 = vshrl.u32 %v3816, 7
    %v3818 = vsub.s32 %v3815, %v3817
    %v3819 = vrot.slane %v3805, %v3818
    %v3820 = vcombine.low %v3812, %v3819
    %v3821 = vcombine.low %v3217, %v3226
    %v3822 = vcombine.low %v3234, %v3233
    %v3824 = vunpack.c.l.s4 1983009808
    %v3825 = vunpack.c.0.s8 %v3824
    %v3826 = vlaneseq
    %v3827 = vshrl.u32 %v3826, 7
    %v3828 = vsub.s32 %v3825, %v3827
    %v3829 = vrot.slane %v3821, %v3828
    %v3831 = vunpack.c.l.s4 1983009808
    %v3832 = vunpack.c.0.s8 %v3831
    %v3833 = vlaneseq
    %v3834 = vshrl.u32 %v3833, 7
    %v3835 = vsub.s32 %v3832, %v3834
    %v3836 = vrot.slane %v3822, %v3835
    %v3837 = vcombine.low %v3829, %v3836
    %v3838 = vcombine.low %v3242, %v3250
    %v3839 = vcombine.low %v3249, %v3258
    %v3841 = vunpack.c.l.s4 1983009808
    %v3842 = vunpack.c.0.s8 %v3841
    %v3843 = vlaneseq
    %v3844 = vshrl.u32 %v3843, 7
    %v3845 = vsub.s32 %v3842, %v3844
    %v3846 = vrot.slane %v3838, %v3845
    %v3848 = vunpack.c.l.s4 1983009808
    %v3849 = vunpack.c.0.s8 %v3848
    %v3850 = vlaneseq
    %v3851 = vshrl.u32 %v3850, 7
    %v3852 = vsub.s32 %v3849, %v3851
    %v3853 = vrot.slane %v3839, %v3852
    %v3854 = vcombine.low %v3846, %v3853
    %v3855 = vcombine.low %v3266, %v3265
    %v3856 = vcombine.low %v3274, %v3282
    %v3858 = vunpack.c.l.s4 1983009808
    %v3859 = vunpack.c.0.s8 %v3858
    %v3860 = vlaneseq
    %v3861 = vshrl.u32 %v3860, 7
    %v3862 = vsub.s32 %v3859, %v3861
    %v3863 = vrot.slane %v3855, %v3862
    %v3865 = vunpack.c.l.s4 1983009808
    %v3866 = vunpack.c.0.s8 %v3865
    %v3867 = vlaneseq
    %v3868 = vshrl.u32 %v3867, 7
    %v3869 = vsub.s32 %v3866, %v3868
    %v3870 = vrot.slane %v3856, %v3869
    %v3871 = vcombine.low %v3863, %v3870
    %v3872 = vcombine.low %v3281, %v3290
    %v3873 = vcombine.low %v3298, %v3297
    %v3875 = vunpack.c.l.s4 1983009808
    %v3876 = vunpack.c.0.s8 %v3875
    %v3877 = vlaneseq
    %v3878 = vshrl.u32 %v3877, 7
    %v3879 = vsub.s32 %v3876, %v3878
    %v3880 = vrot.slane %v3872, %v3879
    %v3882 = vunpack.c.l.s4 1983009808
    %v3883 = vunpack.c.0.s8 %v3882
    %v3884 = vlaneseq
    %v3885 = vshrl.u32 %v3884, 7
    %v3886 = vsub.s32 %v3883, %v3885
    %v3887 = vrot.slane %v3873, %v3886
    %v3888 = vcombine.low %v3880, %v3887
    %v3889 = vcombine.low %v3306, %v3314
    %v3890 = vcombine.low %v3313, %v3322
    %v3892 = vunpack.c.l.s4 1983009808
    %v3893 = vunpack.c.0.s8 %v3892
    %v3894 = vlaneseq
    %v3895 = vshrl.u32 %v3894, 7
    %v3896 = vsub.s32 %v3893, %v3895
    %v3897 = vrot.slane %v3889, %v3896
    %v3899 = vunpack.c.l.s4 1983009808
    %v3900 = vunpack.c.0.s8 %v3899
    %v3901 = vlaneseq
    %v3902 = vshrl.u32 %v3901, 7
    %v3903 = vsub.s32 %v3900, %v3902
    %v3904 = vrot.slane %v3890, %v3903
    %v3905 = vcombine.low %v3897, %v3904
    %v3906 = vcombine.low %v3330, %v3329
    %v3907 = vcombine.low %v3338, %v3346
    %v3909 = vunpack.c.l.s4 1983009808
    %v3910 = vunpack.c.0.s8 %v3909
    %v3911 = vlaneseq
    %v3912 = vshrl.u32 %v3911, 7
    %v3913 = vsub.s32 %v3910, %v3912
    %v3914 = vrot.slane %v3906, %v3913
    %v3916 = vunpack.c.l.s4 1983009808
    %v3917 = vunpack.c.0.s8 %v3916
    %v3918 = vlaneseq
    %v3919 = vshrl.u32 %v3918, 7
    %v3920 = vsub.s32 %v3917, %v3919
    %v3921 = vrot.slane %v3907, %v3920
    %v3922 = vcombine.low %v3914, %v3921
    %v3923 = vcombine.low %v3345, %v3354
    %v3924 = vcombine.low %v3362, %v3361
    %v3926 = vunpack.c.l.s4 1983009808
    %v3927 = vunpack.c.0.s8 %v3926
    %v3928 = vlaneseq
    %v3929 = vshrl.u32 %v3928, 7
    %v3930 = vsub.s32 %v3927, %v3929
    %v3931 = vrot.slane %v3923, %v3930
    %v3933 = vunpack.c.l.s4 1983009808
    %v3934 = vunpack.c.0.s8 %v3933
    %v3935 = vlaneseq
    %v3936 = vshrl.u32 %v3935, 7
    %v3937 = vsub.s32 %v3934, %v3936
    %v3938 = vrot.slane %v3924, %v3937
    %v3939 = vcombine.low %v3931, %v3938
    %v3940 = vcombine.low %v3370, %v3378
    %v3941 = vcombine.low %v3377, %v3386
    %v3943 = vunpack.c.l.s4 1983009808
    %v3944 = vunpack.c.0.s8 %v3943
    %v3945 = vlaneseq
    %v3946 = vshrl.u32 %v3945, 7
    %v3947 = vsub.s32 %v3944, %v3946
    %v3948 = vrot.slane %v3940, %v3947
    %v3950 = vunpack.c.l.s4 1983009808
    %v3951 = vunpack.c.0.s8 %v3950
    %v3952 = vlaneseq
    %v3953 = vshrl.u32 %v3952, 7
    %v3954 = vsub.s32 %v3951, %v3953
    %v3955 = vrot.slane %v3941, %v3954
    %v3956 = vcombine.low %v3948, %v3955
    %v3957 = vcombine.low %v3394, %v3393
    %v3958 = vcombine.low %v3402, %v3410
    %v3960 = vunpack.c.l.s4 1983009808
    %v3961 = vunpack.c.0.s8 %v3960
    %v3962 = vlaneseq
    %v3963 = vshrl.u32 %v3962, 7
    %v3964 = vsub.s32 %v3961, %v3963
    %v3965 = vrot.slane %v3957, %v3964
    %v3967 = vunpack.c.l.s4 1983009808
    %v3968 = vunpack.c.0.s8 %v3967
    %v3969 = vlaneseq
    %v3970 = vshrl.u32 %v3969, 7
    %v3971 = vsub.s32 %v3968, %v3970
    %v3972 = vrot.slane %v3958, %v3971
    %v3973 = vcombine.low %v3965, %v3972
    %v3974 = vcombine.low %v3409, %v3418
    %v3975 = vcombine.low %v3426, %v3425
    %v3977 = vunpack.c.l.s4 1983009808
    %v3978 = vunpack.c.0.s8 %v3977
    %v3979 = vlaneseq
    %v3980 = vshrl.u32 %v3979, 7
    %v3981 = vsub.s32 %v3978, %v3980
    %v3982 = vrot.slane %v3974, %v3981
    %v3984 = vunpack.c.l.s4 1983009808
    %v3985 = vunpack.c.0.s8 %v3984
    %v3986 = vlaneseq
    %v3987 = vshrl.u32 %v3986, 7
    %v3988 = vsub.s32 %v3985, %v3987
    %v3989 = vrot.slane %v3975, %v3988
    %v3990 = vcombine.low %v3982, %v3989
    %v3991 = vcombine.low %v3434, %v3442
    %v3992 = vcombine.low %v3441, %v3450
    %v3994 = vunpack.c.l.s4 1983009808
    %v3995 = vunpack.c.0.s8 %v3994
    %v3996 = vlaneseq
    %v3997 = vshrl.u32 %v3996, 7
    %v3998 = vsub.s32 %v3995, %v3997
    %v3999 = vrot.slane %v3991, %v3998
    %v4001 = vunpack.c.l.s4 1983009808
    %v4002 = vunpack.c.0.s8 %v4001
    %v4003 = vlaneseq
    %v4004 = vshrl.u32 %v4003, 7
    %v4005 = vsub.s32 %v4002, %v4004
    %v4006 = vrot.slane %v3992, %v4005
    %v4007 = vcombine.low %v3999, %v4006
    %v4008 = vcombine.low %v3458, %v3457
    %v4009 = vcombine.low %v3466, %v3474
    %v4011 = vunpack.c.l.s4 1983009808
    %v4012 = vunpack.c.0.s8 %v4011
    %v4013 = vlaneseq
    %v4014 = vshrl.u32 %v4013, 7
    %v4015 = vsub.s32 %v4012, %v4014
    %v4016 = vrot.slane %v4008, %v4015
    %v4018 = vunpack.c.l.s4 1983009808
    %v4019 = vunpack.c.0.s8 %v4018
    %v4020 = vlaneseq
    %v4021 = vshrl.u32 %v4020, 7
    %v4022 = vsub.s32 %v4019, %v4021
    %v4023 = vrot.slane %v4009, %v4022
    %v4024 = vcombine.low %v4016, %v4023
    %v4025 = vcombine.low %v3473, %v3482
    %v4026 = vcombine.low %v3490, %v3489
    %v4028 = vunpack.c.l.s4 1983009808
    %v4029 = vunpack.c.0.s8 %v4028
    %v4030 = vlaneseq
    %v4031 = vshrl.u32 %v4030, 7
    %v4032 = vsub.s32 %v4029, %v4031
    %v4033 = vrot.slane %v4025, %v4032
    %v4035 = vunpack.c.l.s4 1983009808
    %v4036 = vunpack.c.0.s8 %v4035
    %v4037 = vlaneseq
    %v4038 = vshrl.u32 %v4037, 7
    %v4039 = vsub.s32 %v4036, %v4038
    %v4040 = vrot.slane %v4026, %v4039
    %v4041 = vcombine.low %v4033, %v4040
    %v4042 = vcombine.low %v3498, %v3506
    %v4043 = vcombine.low %v3505, %v3514
    %v4045 = vunpack.c.l.s4 1983009808
    %v4046 = vunpack.c.0.s8 %v4045
    %v4047 = vlaneseq
    %v4048 = vshrl.u32 %v4047, 7
    %v4049 = vsub.s32 %v4046, %v4048
    %v4050 = vrot.slane %v4042, %v4049
    %v4052 = vunpack.c.l.s4 1983009808
    %v4053 = vunpack.c.0.s8 %v4052
    %v4054 = vlaneseq
    %v4055 = vshrl.u32 %v4054, 7
    %v4056 = vsub.s32 %v4053, %v4055
    %v4057 = vrot.slane %v4043, %v4056
    %v4058 = vcombine.low %v4050, %v4057
    %v4059 = vcombine.low %v3522, %v3521
    %v4060 = vcombine.low %v3530, %v3538
    %v4062 = vunpack.c.l.s4 1983009808
    %v4063 = vunpack.c.0.s8 %v4062
    %v4064 = vlaneseq
    %v4065 = vshrl.u32 %v4064, 7
    %v4066 = vsub.s32 %v4063, %v4065
    %v4067 = vrot.slane %v4059, %v4066
    %v4069 = vunpack.c.l.s4 1983009808
    %v4070 = vunpack.c.0.s8 %v4069
    %v4071 = vlaneseq
    %v4072 = vshrl.u32 %v4071, 7
    %v4073 = vsub.s32 %v4070, %v4072
    %v4074 = vrot.slane %v4060, %v4073
    %v4075 = vcombine.low %v4067, %v4074
    %v4076 = vcombine.low %v3537, %v3546
    %v4077 = vcombine.low %v3554, %v3553
    %v4079 = vunpack.c.l.s4 1983009808
    %v4080 = vunpack.c.0.s8 %v4079
    %v4081 = vlaneseq
    %v4082 = vshrl.u32 %v4081, 7
    %v4083 = vsub.s32 %v4080, %v4082
    %v4084 = vrot.slane %v4076, %v4083
    %v4086 = vunpack.c.l.s4 1983009808
    %v4087 = vunpack.c.0.s8 %v4086
    %v4088 = vlaneseq
    %v4089 = vshrl.u32 %v4088, 7
    %v4090 = vsub.s32 %v4087, %v4089
    %v4091 = vrot.slane %v4077, %v4090
    %v4092 = vcombine.low %v4084, %v4091
    %v4093 = vcombine.low %v3562, %v3570
    %v4094 = vcombine.low %v3569, %v3578
    %v4096 = vunpack.c.l.s4 1983009808
    %v4097 = vunpack.c.0.s8 %v4096
    %v4098 = vlaneseq
    %v4099 = vshrl.u32 %v4098, 7
    %v4100 = vsub.s32 %v4097, %v4099
    %v4101 = vrot.slane %v4093, %v4100
    %v4103 = vunpack.c.l.s4 1983009808
    %v4104 = vunpack.c.0.s8 %v4103
    %v4105 = vlaneseq
    %v4106 = vshrl.u32 %v4105, 7
    %v4107 = vsub.s32 %v4104, %v4106
    %v4108 = vrot.slane %v4094, %v4107
    %v4109 = vcombine.low %v4101, %v4108
    %v4110 = vcombine.low %v3586, %v3585
    %v4111 = vcombine.low %v3594, %v3602
    %v4113 = vunpack.c.l.s4 1983009808
    %v4114 = vunpack.c.0.s8 %v4113
    %v4115 = vlaneseq
    %v4116 = vshrl.u32 %v4115, 7
    %v4117 = vsub.s32 %v4114, %v4116
    %v4118 = vrot.slane %v4110, %v4117
    %v4120 = vunpack.c.l.s4 1983009808
    %v4121 = vunpack.c.0.s8 %v4120
    %v4122 = vlaneseq
    %v4123 = vshrl.u32 %v4122, 7
    %v4124 = vsub.s32 %v4121, %v4123
    %v4125 = vrot.slane %v4111, %v4124
    %v4126 = vcombine.low %v4118, %v4125
    %v4127 = vcombine.low %v3601, %v3610
    %v4128 = vcombine.low %v3618, %v3617
    %v4130 = vunpack.c.l.s4 1983009808
    %v4131 = vunpack.c.0.s8 %v4130
    %v4132 = vlaneseq
    %v4133 = vshrl.u32 %v4132, 7
    %v4134 = vsub.s32 %v4131, %v4133
    %v4135 = vrot.slane %v4127, %v4134
    %v4137 = vunpack.c.l.s4 1983009808
    %v4138 = vunpack.c.0.s8 %v4137
    %v4139 = vlaneseq
    %v4140 = vshrl.u32 %v4139, 7
    %v4141 = vsub.s32 %v4138, %v4140
    %v4142 = vrot.slane %v4128, %v4141
    %v4143 = vcombine.low %v4135, %v4142
    %v4144 = vcombine.low %v3626, %v3634
    %v4145 = vcombine.low %v3633, %v3642
    %v4147 = vunpack.c.l.s4 1983009808
    %v4148 = vunpack.c.0.s8 %v4147
    %v4149 = vlaneseq
    %v4150 = vshrl.u32 %v4149, 7
    %v4151 = vsub.s32 %v4148, %v4150
    %v4152 = vrot.slane %v4144, %v4151
    %v4154 = vunpack.c.l.s4 1983009808
    %v4155 = vunpack.c.0.s8 %v4154
    %v4156 = vlaneseq
    %v4157 = vshrl.u32 %v4156, 7
    %v4158 = vsub.s32 %v4155, %v4157
    %v4159 = vrot.slane %v4145, %v4158
    %v4160 = vcombine.low %v4152, %v4159
    %v4161 = vcombine.low %v3650, %v3649
    %v4162 = vcombine.low %v3658, %v3666
    %v4164 = vunpack.c.l.s4 1983009808
    %v4165 = vunpack.c.0.s8 %v4164
    %v4166 = vlaneseq
    %v4167 = vshrl.u32 %v4166, 7
    %v4168 = vsub.s32 %v4165, %v4167
    %v4169 = vrot.slane %v4161, %v4168
    %v4171 = vunpack.c.l.s4 1983009808
    %v4172 = vunpack.c.0.s8 %v4171
    %v4173 = vlaneseq
    %v4174 = vshrl.u32 %v4173, 7
    %v4175 = vsub.s32 %v4172, %v4174
    %v4176 = vrot.slane %v4162, %v4175
    %v4177 = vcombine.low %v4169, %v4176
    %v4178 = vcombine.low %v3665, %v3674
    %v4179 = vcombine.low %v3682, %v3681
    %v4181 = vunpack.c.l.s4 1983009808
    %v4182 = vunpack.c.0.s8 %v4181
    %v4183 = vlaneseq
    %v4184 = vshrl.u32 %v4183, 7
    %v4185 = vsub.s32 %v4182, %v4184
    %v4186 = vrot.slane %v4178, %v4185
    %v4188 = vunpack.c.l.s4 1983009808
    %v4189 = vunpack.c.0.s8 %v4188
    %v4190 = vlaneseq
    %v4191 = vshrl.u32 %v4190, 7
    %v4192 = vsub.s32 %v4189, %v4191
    %v4193 = vrot.slane %v4179, %v4192
    %v4194 = vcombine.low %v4186, %v4193
    %v4195 = vsel %vm110, %v3701, 0
    %v4197 = vsel %vm110, %v3718, 0
    %v4199 = vsel %vm110, %v3735, 0
    %v4201 = vsel %vm110, %v3752, 0
    %v4203 = vsel %vm110, %v3769, 0
    %v4205 = vsel %vm110, %v3786, 0
    %v4207 = vsel %vm110, %v3803, 0
    %v4209 = vsel %vm110, %v3820, 0
    %v4211 = vsel %vm110, %v3837, 0
    %v4213 = vsel %vm110, %v3854, 0
    %v4215 = vsel %vm110, %v3871, 0
    %v4217 = vsel %vm110, %v3888, 0
    %v4219 = vsel %vm110, %v3905, 0
    %v4221 = vsel %vm110, %v3922, 0
    %v4223 = vsel %vm110, %v3939, 0
    %v4225 = vsel %vm110, %v3956, 0
    %v4227 = vsel %vm110, %v3973, 0
    %v4229 = vsel %vm110, %v3990, 0
    %v4231 = vsel %vm110, %v4007, 0
    %v4233 = vsel %vm110, %v4024, 0
    %v4235 = vsel %vm110, %v4041, 0
    %v4237 = vsel %vm110, %v4058, 0
    %v4239 = vsel %vm110, %v4075, 0
    %v4241 = vsel %vm110, %v4092, 0
    %v4243 = vsel %vm110, %v4109, 0
    %v4245 = vsel %vm110, %v4126, 0
    %v4247 = vsel %vm110, %v4143, 0
    %v4249 = vsel %vm110, %v4160, 0
    %v4251 = vsel %vm110, %v4177, 0
    %v4253 = vsel %vm110, %v4194, 0
    %4255 = vmatprep.subr.mxu0 0.0
    %4256 = vmatpush1.msra.mxu0 %v3683
    %4257 = vmatprep.subr.mxu0 0.0
    %4258 = vmatpush1.msra.mxu0 %v3684
    %4259 = vmatprep.subr.mxu0 0.0
    %4260 = vmatpush1.msra.mxu0 0.0
    %4261 = vmatprep.subr.mxu0 0.0
    %4262 = vmatpush1.msra.mxu0 0.0
    %4263 = vmatprep.subr.mxu0 0.0
    %4264 = vmatpush1.msra.mxu0 0.0
    %4265 = vmatprep.subr.mxu0 0.0
    %4266 = vmatpush1.msra.mxu0 0.0
    %4267 = vmatprep.subr.mxu0 0.0
    %4268 = vmatpush1.msra.mxu0 0.0
    %4269 = vmatprep.subr.mxu0 0.0
    %4270 = vmatpush1.msra.mxu0 0.0
    %4271 = vmatprep.subr.mxu0 0.0
    %4272 = vmatpush1.msra.mxu0 0.0
    %4273 = vmatprep.subr.mxu0 0.0
    %4274 = vmatpush1.msra.mxu0 0.0
    %4275 = vmatprep.subr.mxu0 0.0
    %4276 = vmatpush1.msra.mxu0 0.0
    %4277 = vmatprep.subr.mxu0 0.0
    %4278 = vmatpush1.msra.mxu0 0.0
    %4279 = vmatprep.subr.mxu0 0.0
    %4280 = vmatpush1.msra.mxu0 0.0
    %4281 = vmatprep.subr.mxu0 0.0
    %4282 = vmatpush1.msra.mxu0 0.0
    %4283 = vmatprep.subr.mxu0 0.0
    %4284 = vmatpush1.msra.mxu0 0.0
    %4285 = vmatprep.subr.mxu0 0.0
    %4286 = vmatpush1.msra.mxu0 0.0
    %4287 = vmatprep.subr.mxu0 0.0
    %4288 = vmatpush1.msra.mxu0 0.0
    %4289 = vmatprep.subr.mxu0 0.0
    %4290 = vmatpush1.msra.mxu0 0.0
    %4291 = vmatprep.subr.mxu0 0.0
    %4292 = vmatpush1.msra.mxu0 0.0
    %4293 = vmatprep.subr.mxu0 0.0
    %4294 = vmatpush1.msra.mxu0 0.0
    %4295 = vmatprep.subr.mxu0 0.0
    %4296 = vmatpush1.msra.mxu0 0.0
    %4297 = vmatprep.subr.mxu0 0.0
    %4298 = vmatpush1.msra.mxu0 0.0
    %4299 = vmatprep.subr.mxu0 0.0
    %4300 = vmatpush1.msra.mxu0 0.0
    %4301 = vmatprep.subr.mxu0 0.0
    %4302 = vmatpush1.msra.mxu0 0.0
    %4303 = vmatprep.subr.mxu0 0.0
    %4304 = vmatpush1.msra.mxu0 0.0
    %4305 = vmatprep.subr.mxu0 0.0
    %4306 = vmatpush1.msra.mxu0 0.0
    %4307 = vmatprep.subr.mxu0 0.0
    %4308 = vmatpush1.msra.mxu0 0.0
    %4309 = vmatprep.subr.mxu0 0.0
    %4310 = vmatpush1.msra.mxu0 0.0
    %4311 = vmatprep.subr.mxu0 0.0
    %4312 = vmatpush1.msra.mxu0 0.0
    %4313 = vmatprep.subr.mxu0 0.0
    %4314 = vmatpush1.msra.mxu0 0.0
    %4315 = vmatprep.subr.mxu0 0.0
    %4316 = vmatpush1.msra.mxu0 0.0
    %4317 = vmatprep.subr.mxu0 0.0
    %4318 = vmatpush1.msra.mxu0 0.0
    %4319 = vmatprep.mubr.f32.mxu0 0.0
    %4320 = vmatmul.mubr.f32.gmra.mrb[0].mxu0 %v4195
    %v4321 = vpop.f32.mrb[0].mxu0
    %v4322 = vadd.f32 0.0, %v4321
    %v4323 = vpop.f32.mrb[0].mxu0
    %4324 = vmatprep.mubr.f32.mxu0 0.0
    %4325 = vmatmul.mubr.f32.gmra.mrb[0].mxu0 %v4197
    %v4326 = vpop.f32.mrb[0].mxu0
    %v4327 = vadd.f32 0.0, %v4326
    %v4328 = vpop.f32.mrb[0].mxu0
    %4329 = vmatprep.mubr.f32.mxu0 0.0
    %4330 = vmatmul.mubr.f32.gmra.mrb[0].mxu0 %v4199
    %v4331 = vpop.f32.mrb[0].mxu0
    %v4332 = vadd.f32 0.0, %v4331
    %v4333 = vpop.f32.mrb[0].mxu0
    %4334 = vmatprep.mubr.f32.mxu0 0.0
    %4335 = vmatmul.mubr.f32.gmra.mrb[0].mxu0 %v4201
    %v4336 = vpop.f32.mrb[0].mxu0
    %v4337 = vadd.f32 0.0, %v4336
    %v4338 = vpop.f32.mrb[0].mxu0
    %4339 = vmatprep.mubr.f32.mxu0 0.0
    %4340 = vmatmul.mubr.f32.gmra.mrb[0].mxu0 %v4203
    %v4341 = vpop.f32.mrb[0].mxu0
    %v4342 = vadd.f32 0.0, %v4341
    %v4343 = vpop.f32.mrb[0].mxu0
    %4344 = vmatprep.mubr.f32.mxu0 0.0
    %4345 = vmatmul.mubr.f32.gmra.mrb[0].mxu0 %v4205
    %v4346 = vpop.f32.mrb[0].mxu0
    %v4347 = vadd.f32 0.0, %v4346
    %v4348 = vpop.f32.mrb[0].mxu0
    %4349 = vmatprep.mubr.f32.mxu0 0.0
    %4350 = vmatmul.mubr.f32.gmra.mrb[0].mxu0 %v4207
    %v4351 = vpop.f32.mrb[0].mxu0
    %v4352 = vadd.f32 0.0, %v4351
    %v4353 = vpop.f32.mrb[0].mxu0
    %4354 = vmatprep.mubr.f32.mxu0 0.0
    %4355 = vmatmul.mubr.f32.gmra.mrb[0].mxu0 %v4209
    %v4356 = vpop.f32.mrb[0].mxu0
    %v4357 = vadd.f32 0.0, %v4356
    %v4358 = vpop.f32.mrb[0].mxu0
    %4359 = vmatprep.mubr.f32.mxu0 0.0
    %4360 = vmatmul.mubr.f32.gmra.mrb[0].mxu0 %v4211
    %v4361 = vpop.f32.mrb[0].mxu0
    %v4362 = vadd.f32 0.0, %v4361
    %v4363 = vpop.f32.mrb[0].mxu0
    %4364 = vmatprep.mubr.f32.mxu0 0.0
    %4365 = vmatmul.mubr.f32.gmra.mrb[0].mxu0 %v4213
    %v4366 = vpop.f32.mrb[0].mxu0
    %v4367 = vadd.f32 0.0, %v4366
    %v4368 = vpop.f32.mrb[0].mxu0
    %4369 = vmatprep.mubr.f32.mxu0 0.0
    %4370 = vmatmul.mubr.f32.gmra.mrb[0].mxu0 %v4215
    %v4371 = vpop.f32.mrb[0].mxu0
    %v4372 = vadd.f32 0.0, %v4371
    %v4373 = vpop.f32.mrb[0].mxu0
    %4374 = vmatprep.mubr.f32.mxu0 0.0
    %4375 = vmatmul.mubr.f32.gmra.mrb[0].mxu0 %v4217
    %v4376 = vpop.f32.mrb[0].mxu0
    %v4377 = vadd.f32 0.0, %v4376
    %v4378 = vpop.f32.mrb[0].mxu0
    %4379 = vmatprep.mubr.f32.mxu0 0.0
    %4380 = vmatmul.mubr.f32.gmra.mrb[0].mxu0 %v4219
    %v4381 = vpop.f32.mrb[0].mxu0
    %v4382 = vadd.f32 0.0, %v4381
    %v4383 = vpop.f32.mrb[0].mxu0
    %4384 = vmatprep.mubr.f32.mxu0 0.0
    %4385 = vmatmul.mubr.f32.gmra.mrb[0].mxu0 %v4221
    %v4386 = vpop.f32.mrb[0].mxu0
    %v4387 = vadd.f32 0.0, %v4386
    %v4388 = vpop.f32.mrb[0].mxu0
    %4389 = vmatprep.mubr.f32.mxu0 0.0
    %4390 = vmatmul.mubr.f32.gmra.mrb[0].mxu0 %v4223
    %v4391 = vpop.f32.mrb[0].mxu0
    %v4392 = vadd.f32 0.0, %v4391
    %v4393 = vpop.f32.mrb[0].mxu0
    %4394 = vmatprep.mubr.f32.mxu0 0.0
    %4395 = vmatmul.mubr.f32.gmra.mrb[0].mxu0 %v4225
    %v4396 = vpop.f32.mrb[0].mxu0
    %v4397 = vadd.f32 0.0, %v4396
    %v4398 = vpop.f32.mrb[0].mxu0
    %4399 = vmatprep.mubr.f32.mxu0 0.0
    %4400 = vmatmul.mubr.f32.gmra.mrb[0].mxu0 %v4227
    %v4401 = vpop.f32.mrb[0].mxu0
    %v4402 = vadd.f32 0.0, %v4401
    %v4403 = vpop.f32.mrb[0].mxu0
    %4404 = vmatprep.mubr.f32.mxu0 0.0
    %4405 = vmatmul.mubr.f32.gmra.mrb[0].mxu0 %v4229
    %v4406 = vpop.f32.mrb[0].mxu0
    %v4407 = vadd.f32 0.0, %v4406
    %v4408 = vpop.f32.mrb[0].mxu0
    %4409 = vmatprep.mubr.f32.mxu0 0.0
    %4410 = vmatmul.mubr.f32.gmra.mrb[0].mxu0 %v4231
    %v4411 = vpop.f32.mrb[0].mxu0
    %v4412 = vadd.f32 0.0, %v4411
    %v4413 = vpop.f32.mrb[0].mxu0
    %4414 = vmatprep.mubr.f32.mxu0 0.0
    %4415 = vmatmul.mubr.f32.gmra.mrb[0].mxu0 %v4233
    %v4416 = vpop.f32.mrb[0].mxu0
    %v4417 = vadd.f32 0.0, %v4416
    %v4418 = vpop.f32.mrb[0].mxu0
    %4419 = vmatprep.mubr.f32.mxu0 0.0
    %4420 = vmatmul.mubr.f32.gmra.mrb[0].mxu0 %v4235
    %v4421 = vpop.f32.mrb[0].mxu0
    %v4422 = vadd.f32 0.0, %v4421
    %v4423 = vpop.f32.mrb[0].mxu0
    %4424 = vmatprep.mubr.f32.mxu0 0.0
    %4425 = vmatmul.mubr.f32.gmra.mrb[0].mxu0 %v4237
    %v4426 = vpop.f32.mrb[0].mxu0
    %v4427 = vadd.f32 0.0, %v4426
    %v4428 = vpop.f32.mrb[0].mxu0
    %4429 = vmatprep.mubr.f32.mxu0 0.0
    %4430 = vmatmul.mubr.f32.gmra.mrb[0].mxu0 %v4239
    %v4431 = vpop.f32.mrb[0].mxu0
    %v4432 = vadd.f32 0.0, %v4431
    %v4433 = vpop.f32.mrb[0].mxu0
    %4434 = vmatprep.mubr.f32.mxu0 0.0
    %4435 = vmatmul.mubr.f32.gmra.mrb[0].mxu0 %v4241
    %v4436 = vpop.f32.mrb[0].mxu0
    %v4437 = vadd.f32 0.0, %v4436
    %v4438 = vpop.f32.mrb[0].mxu0
    %4439 = vmatprep.mubr.f32.mxu0 0.0
    %4440 = vmatmul.mubr.f32.gmra.mrb[0].mxu0 %v4243
    %v4441 = vpop.f32.mrb[0].mxu0
    %v4442 = vadd.f32 0.0, %v4441
    %v4443 = vpop.f32.mrb[0].mxu0
    %4444 = vmatprep.mubr.f32.mxu0 0.0
    %4445 = vmatmul.mubr.f32.gmra.mrb[0].mxu0 %v4245
    %v4446 = vpop.f32.mrb[0].mxu0
    %v4447 = vadd.f32 0.0, %v4446
    %v4448 = vpop.f32.mrb[0].mxu0
    %4449 = vmatprep.mubr.f32.mxu0 0.0
    %4450 = vmatmul.mubr.f32.gmra.mrb[0].mxu0 %v4247
    %v4451 = vpop.f32.mrb[0].mxu0
    %v4452 = vadd.f32 0.0, %v4451
    %v4453 = vpop.f32.mrb[0].mxu0
    %4454 = vmatprep.mubr.f32.mxu0 0.0
    %4455 = vmatmul.mubr.f32.gmra.mrb[0].mxu0 %v4249
    %v4456 = vpop.f32.mrb[0].mxu0
    %v4457 = vadd.f32 0.0, %v4456
    %v4458 = vpop.f32.mrb[0].mxu0
    %4459 = vmatprep.mubr.f32.mxu0 0.0
    %4460 = vmatmul.mubr.f32.gmra.mrb[0].mxu0 %v4251
    %v4461 = vpop.f32.mrb[0].mxu0
    %v4462 = vadd.f32 0.0, %v4461
    %v4463 = vpop.f32.mrb[0].mxu0
    %4464 = vmatprep.mubr.f32.mxu0 0.0
    %4465 = vmatmul.mubr.f32.gmra.mrb[0].mxu0 %v4253
    %v4466 = vpop.f32.mrb[0].mxu0
    %v4467 = vadd.f32 0.0, %v4466
    %v4468 = vpop.f32.mrb[0].mxu0
    %4469 = vdwg.mxu0
    %v4470 = vmul.f32 %v4322, %v4322
    %v4471 = vmul.f32 %v4327, %v4327
    %v4472 = vmul.f32 %v4332, %v4332
    %v4473 = vmul.f32 %v4337, %v4337
    %v4474 = vmul.f32 %v4342, %v4342
    %v4475 = vmul.f32 %v4347, %v4347
    %v4476 = vmul.f32 %v4352, %v4352
    %v4477 = vmul.f32 %v4357, %v4357
    %v4478 = vmul.f32 %v4362, %v4362
    %v4479 = vmul.f32 %v4367, %v4367
    %v4480 = vmul.f32 %v4372, %v4372
    %v4481 = vmul.f32 %v4377, %v4377
    %v4482 = vmul.f32 %v4322, %v4352
    %v4483 = vmul.f32 %v4327, %v4357
    %v4484 = vmul.f32 %v4332, %v4362
    %v4485 = vmul.f32 %v4337, %v4367
    %v4486 = vmul.f32 %v4342, %v4372
    %v4487 = vmul.f32 %v4347, %v4377
    %v4488 = vsub.f32 %v4382, %v4470
    %v4489 = vsub.f32 %v4387, %v4471
    %v4490 = vsub.f32 %v4392, %v4472
    %v4491 = vsub.f32 %v4397, %v4473
    %v4492 = vsub.f32 %v4402, %v4474
    %v4493 = vsub.f32 %v4407, %v4475
    %v4494 = vsub.f32 %v4412, %v4476
    %v4495 = vsub.f32 %v4417, %v4477
    %v4496 = vsub.f32 %v4422, %v4478
    %v4497 = vsub.f32 %v4427, %v4479
    %v4498 = vsub.f32 %v4432, %v4480
    %v4499 = vsub.f32 %v4437, %v4481
    %v4500 = vsub.f32 %v4442, %v4482
    %v4501 = vsub.f32 %v4447, %v4483
    %v4502 = vsub.f32 %v4452, %v4484
    %v4503 = vsub.f32 %v4457, %v4485
    %v4504 = vsub.f32 %v4462, %v4486
    %v4505 = vsub.f32 %v4467, %v4487
    %v4506 = vmul.f32 %v4482, 2.0
    %v4507 = vmul.f32 %v4483, 2.0
    %v4508 = vmul.f32 %v4484, 2.0
    %v4509 = vmul.f32 %v4485, 2.0
    %v4510 = vmul.f32 %v4486, 2.0
    %v4511 = vmul.f32 %v4487, 2.0
    %v4512 = vadd.f32 %v4506, 0.0001
    %v4513 = vadd.f32 %v4507, 0.0001
    %v4514 = vadd.f32 %v4508, 0.0001
    %v4515 = vadd.f32 %v4509, 0.0001
    %v4516 = vadd.f32 %v4510, 0.0001
    %v4517 = vadd.f32 %v4511, 0.0001
    %v4518 = vmul.f32 %v4500, 2.0
    %v4519 = vmul.f32 %v4501, 2.0
    %v4520 = vmul.f32 %v4502, 2.0
    %v4521 = vmul.f32 %v4503, 2.0
    %v4522 = vmul.f32 %v4504, 2.0
    %v4523 = vmul.f32 %v4505, 2.0
    %v4524 = vadd.f32 %v4518, 0.0009
    %v4525 = vadd.f32 %v4519, 0.0009
    %v4526 = vadd.f32 %v4520, 0.0009
    %v4527 = vadd.f32 %v4521, 0.0009
    %v4528 = vadd.f32 %v4522, 0.0009
    %v4529 = vadd.f32 %v4523, 0.0009
    %v4530 = vmul.f32 %v4512, %v4524
    %v4531 = vmul.f32 %v4513, %v4525
    %v4532 = vmul.f32 %v4514, %v4526
    %v4533 = vmul.f32 %v4515, %v4527
    %v4534 = vmul.f32 %v4516, %v4528
    %v4535 = vmul.f32 %v4517, %v4529
    %v4536 = vadd.f32 %v4470, %v4476
    %v4537 = vadd.f32 %v4471, %v4477
    %v4538 = vadd.f32 %v4472, %v4478
    %v4539 = vadd.f32 %v4473, %v4479
    %v4540 = vadd.f32 %v4474, %v4480
    %v4541 = vadd.f32 %v4475, %v4481
    %v4542 = vadd.f32 %v4536, 0.0001
    %v4543 = vadd.f32 %v4537, 0.0001
    %v4544 = vadd.f32 %v4538, 0.0001
    %v4545 = vadd.f32 %v4539, 0.0001
    %v4546 = vadd.f32 %v4540, 0.0001
    %v4547 = vadd.f32 %v4541, 0.0001
    %v4548 = vadd.f32 %v4488, %v4494
    %v4549 = vadd.f32 %v4489, %v4495
    %v4550 = vadd.f32 %v4490, %v4496
    %v4551 = vadd.f32 %v4491, %v4497
    %v4552 = vadd.f32 %v4492, %v4498
    %v4553 = vadd.f32 %v4493, %v4499
    %v4554 = vadd.f32 %v4548, 0.0009
    %v4555 = vadd.f32 %v4549, 0.0009
    %v4556 = vadd.f32 %v4550, 0.0009
    %v4557 = vadd.f32 %v4551, 0.0009
    %v4558 = vadd.f32 %v4552, 0.0009
    %v4559 = vadd.f32 %v4553, 0.0009
    %v4560 = vmul.f32 %v4542, %v4554
    %v4561 = vmul.f32 %v4543, %v4555
    %v4562 = vmul.f32 %v4544, %v4556
    %v4563 = vmul.f32 %v4545, %v4557
    %v4564 = vmul.f32 %v4546, %v4558
    %v4565 = vmul.f32 %v4547, %v4559
    %v4566 = vrcp.pop %v4560
    %v4567 = vmul.f32 %v4530, %v4566
    %v4568 = vrcp.pop %v4561
    %v4569 = vmul.f32 %v4531, %v4568
    %v4570 = vrcp.pop %v4562
    %v4571 = vmul.f32 %v4532, %v4570
    %v4572 = vrcp.pop %v4563
    %v4573 = vmul.f32 %v4533, %v4572
    %v4574 = vrcp.pop %v4564
    %v4575 = vmul.f32 %v4534, %v4574
    %v4576 = vrcp.pop %v4565
    %v4577 = vmul.f32 %v4535, %v4576
    %vm4578 = vcmask 48128
    %v4579 = vsel %vm4578, %v4567, 0.0
    %v4580 = vsel %vm4578, %v4569, 0.0
    %v4581 = vadd.f32 %v4579, %v4580
    %v4582 = vsel %vm4578, %v4571, 0.0
    %v4583 = vadd.f32 %v4581, %v4582
    %v4584 = vsel %vm4578, %v4573, 0.0
    %v4585 = vadd.f32 %v4583, %v4584
    %v4586 = vsel %vm4578, %v4575, 0.0
    %v4587 = vadd.f32 %v4585, %v4586
    %v4588 = vsel %vm4578, %v4577, 0.0
    %v4589 = vadd.f32 %v4587, %v4588
    %4590 = vadd.xlane.f32.xlu0 %v4589
    %v4591 = vpop.xlane.xlu0 %4590
    %v4592 = vrot.slane %v4591, 4
    %v4593 = vadd.f32 %v4591, %v4592
    %v4594 = vrot.slane %v4593, 2
    %v4595 = vadd.f32 %v4593, %v4594
    %v4596 = vrot.slane %v4595, 1
    %v4597 = vadd.f32 %v4595, %v4596
    %s4598 = vtos %v4597
    %v4599 = vlaneseq
    %v4600 = vshrl.u32 %v4599, 7
    %v4601 = vlaneseq
    %v4602 = vand.u32 %v4601, 127
    %vm4603 = vcmp.eq.s32.totalorder %v4600, 0
    %vm4604 = vcmp.eq.s32.totalorder %v4602, 0
    %vm4605 = vmand %vm4603, %vm4604
    %vm4606 = vcmp.eq.s32.totalorder %v4602, 1
    %vm4607 = vmand %vm4603, %vm4606
    %v4608 = vstv %s4598
    %v4609 = vsel %vm4607, %v4608, 0.0
    %v4610 = vstv %s150
    %v4611 = vsel %vm4605, %v4610, %v4609
    %4612 = vst [vmem:[#allocation7] sm:$0xff] %v4611
    // Predicated region
    $region26: #{tpu_custom_call.1} parent=1 // pred_check
      _
    $region27: #{tpu_custom_call.1} parent=1 // pred_check_branch
      %4614 = sbr.rel (0) target = $region29
    $region28: #{tpu_custom_call.1} parent=1 // pred_region
      %s4616 = ssub.s32 128, 128
      %4617 = vsyncadd [#allocation4], %s4616
      %s4619 = sshll.u32 [#allocation7], 4
      %s4620 = int_to_ptr.vmem [resolvable:$true] %s4619
      %4622 = dma.vmem_to_hbm [thread:$0]  %s4620, 128, %s4, [#allocation4]
    $region29: #{tpu_custom_call.1} parent=1 // pred_fallthru
      _
    // Predicated region
    $region30: #{tpu_custom_call.1} parent=1 // pred_check
      _
    $region31: #{tpu_custom_call.1} parent=1 // pred_check_branch
      %4624 = sbr.rel (0) target = $region33
    $region32: #{tpu_custom_call.1} parent=1 // pred_region
      %4625 = dma.done [#allocation4], 128
    $region33: #{tpu_custom_call.1} parent=1 // pred_fallthru
      _
    %4626 = vsyncpa [#allocation3], 1
    %4627 = vsyncpa [#allocation6], 1
    %4628 = vsyncpa [#allocation4], 1

</llo_original>
